<compile_context>
chip_gen: v5e
topology: v5e:2x2
jax: 0.10.0
libtpu: 0.0.40
codegen_flags: <defaults>
</compile_context>

<pallas_src>
import math
import functools

import jax
import jax.numpy as jnp
from jax.experimental import pallas as pl
from jax.experimental.pallas import tpu as pltpu

HIDDEN_DIM = 32      # per-branch hidden size
NHEADS = 4
BATCH = 8
SEQ = 64             # sequence length folded into the row axis
TILE_ROWS = 256      # rows per grid step (weights stay resident)
LN_EPS = 1e-5        # nn.LayerNorm default


# ----------------------------------------------------------------------------
# Pallas kernel: fused dual-branch forward on one block of rows.
# ----------------------------------------------------------------------------
def _mh_cross_att_fused_kernel(vx_ref, sx_ref, w_sqw3_ref, w_ex_ref, w2_ref,
                               w1_ref, b_ref, vo_ref, so_ref):
    f32 = jnp.float32
    bf16 = jnp.bfloat16
    H = vx_ref.shape[-1]          # per-branch hidden (32)
    W = 2 * H                     # lane-packed width (64)
    R = vx_ref.shape[0]           # rows in this block

    # Lane-pack the two branches in VMEM: x = [vx | sx]   (no wrapper concat).
    x = jnp.concatenate([vx_ref[...], sx_ref[...]], axis=-1)      # [R, W] f32
    xb = x.astype(bf16)

    # Bias / LN rows hoisted once at the top of the kernel and reused.
    b = b_ref[...]                                                # [8, W] f32
    b_sq, b_w3, b_ex, b_w2 = b[0:1], b[1:2], b[2:3], b[3:4]
    ln_g, ln_b, b_w1 = b[4:5], b[5:6], b[6:7]

    def dot(a, w):
        return jnp.dot(a, w, preferred_element_type=f32)

    # Stage 1 + 3 fused: one [R,W] x [W,2W] matmul gives both the cross-wired
    # squeeze pre-activation (lanes 0:W) and the per-branch W3 projection
    # (lanes W:2W) as a single 128-lane-dense result.
    pre = dot(xb, w_sqw3_ref[...])                                # [R, 2W] f32
    sq = jax.nn.relu(pre[:, :W] + b_sq)                           # [R, W]
    w3v = pre[:, W:] + b_w3                                       # [R, W]

    # Stage 2: per-head excite (block-diagonal), sigmoid gate, apply gate.
    att = jax.nn.sigmoid(dot(sq.astype(bf16), w_ex_ref[...]) + b_ex)
    emb = att * w3v                                               # [R, W] f32

    # Stage 4: bottleneck W2 (block-diagonal per branch).
    h = dot(emb.astype(bf16), w2_ref[...]) + b_w2                 # [R, W] f32

    # Segmented LayerNorm, one-pass moments: stack [h ; h*h] along sublanes,
    # one matmul with the block-diagonal 1/H averaging selector gives E[h]
    # and E[h^2] per 32-lane half; var = E[h^2] - mu^2 (all f32 on the VPU).
    blk = jnp.full((H, H), 1.0 / H, dtype=f32)
    zro = jnp.zeros((H, H), dtype=f32)
    sel = jnp.concatenate(
        [jnp.concatenate([blk, zro], axis=1),
         jnp.concatenate([zro, blk], axis=1)], axis=0)            # [W, W] f32
    mom = dot(jnp.concatenate([h, h * h], axis=0), sel)           # [2R, W] f32
    mu = mom[:R]
    var = mom[R:] - mu * mu
    hn = (h - mu) * jax.lax.rsqrt(var + LN_EPS) * ln_g + ln_b

    # Stage 5: W1 + residual (residual and bias stay f32).
    y = x + dot(jax.nn.relu(hn).astype(bf16), w1_ref[...]) + b_w1  # [R, W] f32

    vo_ref[...] = y[:, :H].astype(vo_ref.dtype)
    so_ref[...] = y[:, H:].astype(so_ref.dtype)


# ----------------------------------------------------------------------------
# Wrapper: fold leading dims into a row axis, grid over row blocks, weights
# resident (constant index_map), parallel semantics for megacore (v7x).
# ----------------------------------------------------------------------------
def mh_cross_att_layer(vx, sx, packed, *, tile_rows=TILE_ROWS):
    """Fused MHCrossAttLayer forward. vx, sx: [..., H] float32."""
    w_sqw3, w_ex, w2, w1, b_slab = packed
    orig_shape = vx.shape
    H = orig_shape[-1]
    rows = math.prod(orig_shape[:-1])
    vx2 = vx.reshape(rows, H)
    sx2 = sx.reshape(rows, H)

    pad = (-rows) % tile_rows
    if pad:
        vx2 = jnp.pad(vx2, ((0, pad), (0, 0)))
        sx2 = jnp.pad(sx2, ((0, pad), (0, 0)))
    rows_p = rows + pad
    grid = (rows_p // tile_rows,)

    row_spec = pl.BlockSpec((tile_rows, H), lambda i: (i, 0))
    const2 = lambda i: (0, 0)

    vo, so = pl.pallas_call(
        _mh_cross_att_fused_kernel,
        out_shape=(jax.ShapeDtypeStruct((rows_p, H), vx.dtype),
                   jax.ShapeDtypeStruct((rows_p, H), vx.dtype)),
        grid=grid,
        in_specs=[
            row_spec,                                          # vx block
            row_spec,                                          # sx block
            pl.BlockSpec(w_sqw3.shape, const2),                # fused W_sq||W3
            pl.BlockSpec(w_ex.shape, const2),                  # W_ex
            pl.BlockSpec(w2.shape, const2),                    # W2
            pl.BlockSpec(w1.shape, const2),                    # W1
            pl.BlockSpec(b_slab.shape, const2),                # bias / LN slab
        ],
        out_specs=(row_spec, row_spec),
        compiler_params=pltpu.CompilerParams(
            dimension_semantics=("parallel",)),
    )(vx2, sx2, w_sqw3, w_ex, w2, w1, b_slab)

    if pad:
        vo = vo[:rows]
        so = so[:rows]
    return vo.reshape(orig_shape), so.reshape(orig_shape)


# ----------------------------------------------------------------------------
# Deterministic parameter construction (mirrors PyTorch nn.Linear shapes)
# ----------------------------------------------------------------------------
def _linear(key, in_dim, out_dim):
    """PyTorch-style Linear init: returns (weight [out,in], bias [out])."""
    kw, kb = jax.random.split(key)
    bound = 1.0 / math.sqrt(in_dim)
    w = jax.random.uniform(kw, (out_dim, in_dim), jnp.float32, -bound, bound)
    b = jax.random.uniform(kb, (out_dim,), jnp.float32, -bound, bound)
    return w, b


def make_params(key, hidden_dim, nheads):
    hh = hidden_dim // nheads
    keys = iter(jax.random.split(key, 64))

    def stacked_heads(in_dim, out_dim):
        # nheads independent Linear(in_dim -> out_dim); stack along output.
        ws, bs = [], []
        for _ in range(nheads):
            w, b = _linear(next(keys), in_dim, out_dim)
            ws.append(w.T)        # [in, out]
            bs.append(b)
        return jnp.concatenate(ws, axis=1), jnp.concatenate(bs)

    def block_diag_heads(dim):
        # nheads Linear(dim -> dim) applied per-head slice -> block diagonal.
        big = jnp.zeros((nheads * dim, nheads * dim), jnp.float32)
        bs = []
        for i in range(nheads):
            w, b = _linear(next(keys), dim, dim)
            big = big.at[i * dim:(i + 1) * dim, i * dim:(i + 1) * dim].set(w.T)
            bs.append(b)
        return big, jnp.concatenate(bs)

    def branch_params():
        sq_w, sq_b = stacked_heads(hidden_dim, hh)      # [H, H], [H]
        ex_w, ex_b = block_diag_heads(hh)               # [H, H], [H]
        w3_w, w3_b = stacked_heads(hidden_dim, hh)      # [H, H], [H]
        w2, b2 = _linear(next(keys), hidden_dim, hidden_dim)
        w1, b1 = _linear(next(keys), hidden_dim, hidden_dim)
        ln_g = jnp.ones((hidden_dim,), jnp.float32)
        ln_b = jnp.zeros((hidden_dim,), jnp.float32)
        return [sq_w, sq_b, ex_w, ex_b, w3_w, w3_b,
                w2.T, b2, ln_g, ln_b, w1.T, b1]

    return branch_params() + branch_params()


def pack_params(params, hidden_dim):
    """Build the fused weights (bf16) and the f32 bias/LN slab."""
    (v_sq_w, v_sq_b, v_ex_w, v_ex_b, v_w3_w, v_w3_b,
     v_w2_w, v_w2_b, v_ln_g, v_ln_b, v_w1_w, v_w1_b) = params[:12]
    (s_sq_w, s_sq_b, s_ex_w, s_ex_b, s_w3_w, s_w3_b,
     s_w2_w, s_w2_b, s_ln_g, s_ln_b, s_w1_w, s_w1_b) = params[12:]

    H = hidden_dim
    Z = jnp.zeros((H, H), jnp.float32)

    # x = [vx | sx]. Vision sq reads sx; semantic sq reads vx -> off-diagonal.
    w_sq = jnp.block([[Z,      s_sq_w],
                      [v_sq_w, Z]])
    # The rest act per-branch on their own half -> block-diagonal.
    w3 = jnp.block([[v_w3_w, Z], [Z, s_w3_w]])
    w_sqw3 = jnp.concatenate([w_sq, w3], axis=1).astype(jnp.bfloat16)  # [2H,4H]
    w_ex = jnp.block([[v_ex_w, Z], [Z, s_ex_w]]).astype(jnp.bfloat16)
    w2 = jnp.block([[v_w2_w, Z], [Z, s_w2_w]]).astype(jnp.bfloat16)
    w1 = jnp.block([[v_w1_w, Z], [Z, s_w1_w]]).astype(jnp.bfloat16)

    def row(a, b):
        return jnp.concatenate([a.reshape(-1), b.reshape(-1)])[None, :]

    b_slab = jnp.concatenate(
        [row(v_sq_b, s_sq_b),            # 0: squeeze bias
         row(v_w3_b, s_w3_b),            # 1: W3 bias
         row(v_ex_b, s_ex_b),            # 2: excite bias
         row(v_w2_b, s_w2_b),            # 3: W2 bias
         row(v_ln_g, s_ln_g),            # 4: LN gamma
         row(v_ln_b, s_ln_b),            # 5: LN beta
         row(v_w1_b, s_w1_b),            # 6: W1 bias
         jnp.zeros((1, 2 * H), jnp.float32)],  # 7: pad to 8 sublanes
        axis=0).astype(jnp.float32)      # [8, 2H]
    return w_sqw3, w_ex, w2, w1, b_slab


# ----------------------------------------------------------------------------
# Pure-JAX f32 reference (unfused, same math as the PyTorch module)
# ----------------------------------------------------------------------------
def reference(vx, sx, params):
    def branch(x_in, gate_in, p):
        (sq_w, sq_b, ex_w, ex_b, w3_w, w3_b,
         w2_w, w2_b, ln_g, ln_b, w1_w, w1_b) = p
        att = jax.nn.sigmoid(jax.nn.relu(gate_in @ sq_w + sq_b) @ ex_w + ex_b)
        emb = att * (x_in @ w3_w + w3_b)
        h = emb @ w2_w + w2_b
        mu = jnp.mean(h, -1, keepdims=True)
        var = jnp.mean((h - mu) ** 2, -1, keepdims=True)
        hn = (h - mu) / jnp.sqrt(var + LN_EPS) * ln_g + ln_b
        return x_in + (jax.nn.relu(hn) @ w1_w + w1_b)

    return branch(vx, sx, params[:12]), branch(sx, vx, params[12:])


if __name__ == "__main__":
    key = jax.random.PRNGKey(0)
    k_vx, k_sx, k_p = jax.random.split(key, 3)

    vx = jax.random.normal(k_vx, (BATCH, SEQ, HIDDEN_DIM), jnp.float32)
    sx = jax.random.normal(k_sx, (BATCH, SEQ, HIDDEN_DIM), jnp.float32)
    params = make_params(k_p, HIDDEN_DIM, NHEADS)
    packed = pack_params(params, HIDDEN_DIM)

    fwd = jax.jit(functools.partial(mh_cross_att_layer, tile_rows=TILE_ROWS))
    vx_out, sx_out = fwd(vx, sx, packed)
    jax.block_until_ready((vx_out, sx_out))

    vx_ref, sx_ref = reference(vx, sx, params)
    assert vx_out.shape == vx.shape and sx_out.shape == sx.shape
    # bf16 MXU operands -> compare at bf16-appropriate tolerance (LN stats,
    # gating, residual are f32 inside the kernel).
    assert jnp.allclose(vx_out, vx_ref, atol=5e-2, rtol=5e-2), \
        float(jnp.max(jnp.abs(vx_out - vx_ref)))
    assert jnp.allclose(sx_out, sx_ref, atol=5e-2, rtol=5e-2), \
        float(jnp.max(jnp.abs(sx_out - sx_ref)))

    print("KERNEL_OK")
</pallas_src>

<mosaic_0001>
module attributes {stable_mosaic.version = 11 : i64} {
  func.func @_mh_cross_att_fused_kernel(%arg0: i32, %arg1: memref<256x32xf32, #tpu.memory_space<vmem>>, %arg2: memref<256x32xf32, #tpu.memory_space<vmem>>, %arg3: memref<64x128xbf16, #tpu.memory_space<vmem>>, %arg4: memref<64x64xbf16, #tpu.memory_space<vmem>>, %arg5: memref<64x64xbf16, #tpu.memory_space<vmem>>, %arg6: memref<64x64xbf16, #tpu.memory_space<vmem>>, %arg7: memref<8x64xf32, #tpu.memory_space<vmem>>, %arg8: memref<256x32xf32, #tpu.memory_space<vmem>>, %arg9: memref<256x32xf32, #tpu.memory_space<vmem>>) attributes {dimension_semantics = [#tpu.dimension_semantics<parallel>], iteration_bounds = array<i64: 2>, scalar_prefetch = 0 : i64, scratch_operands = 0 : i64, tpu.core_type = #tpu.core_type<tc>, window_params = [{transform_indices = @transform_0, window_bounds = array<i64: 256, 32>}, {transform_indices = @transform_1, window_bounds = array<i64: 256, 32>}, {pipeline_mode = #tpu.pipeline_mode<synchronous>, transform_indices = @transform_2, window_bounds = array<i64: 64, 128>}, {pipeline_mode = #tpu.pipeline_mode<synchronous>, transform_indices = @transform_3, window_bounds = array<i64: 64, 64>}, {pipeline_mode = #tpu.pipeline_mode<synchronous>, transform_indices = @transform_4, window_bounds = array<i64: 64, 64>}, {pipeline_mode = #tpu.pipeline_mode<synchronous>, transform_indices = @transform_5, window_bounds = array<i64: 64, 64>}, {pipeline_mode = #tpu.pipeline_mode<synchronous>, transform_indices = @transform_6, window_bounds = array<i64: 8, 64>}, {transform_indices = @transform_7, window_bounds = array<i64: 256, 32>}, {transform_indices = @transform_8, window_bounds = array<i64: 256, 32>}]} {
    %c0 = arith.constant 0 : index
    %c0_0 = arith.constant 0 : index
    %0 = vector.load %arg1[%c0, %c0_0] : memref<256x32xf32, #tpu.memory_space<vmem>>, vector<256x32xf32>
    %c0_1 = arith.constant 0 : index
    %c0_2 = arith.constant 0 : index
    %1 = vector.load %arg2[%c0_1, %c0_2] : memref<256x32xf32, #tpu.memory_space<vmem>>, vector<256x32xf32>
    %2 = tpu.concatenate %0, %1 in 1 : vector<256x32xf32>, vector<256x32xf32> -> vector<256x64xf32>
    %3 = arith.truncf %2 : vector<256x64xf32> to vector<256x64xbf16>
    %c0_3 = arith.constant 0 : index
    %c0_4 = arith.constant 0 : index
    %4 = vector.load %arg7[%c0_3, %c0_4] : memref<8x64xf32, #tpu.memory_space<vmem>>, vector<8x64xf32>
    %5 = vector.extract_strided_slice %4 {offsets = [0, 0], sizes = [1, 64], strides = [1, 1]} : vector<8x64xf32> to vector<1x64xf32>
    %6 = vector.extract_strided_slice %4 {offsets = [1, 0], sizes = [1, 64], strides = [1, 1]} : vector<8x64xf32> to vector<1x64xf32>
    %7 = vector.extract_strided_slice %4 {offsets = [2, 0], sizes = [1, 64], strides = [1, 1]} : vector<8x64xf32> to vector<1x64xf32>
    %8 = vector.extract_strided_slice %4 {offsets = [3, 0], sizes = [1, 64], strides = [1, 1]} : vector<8x64xf32> to vector<1x64xf32>
    %9 = vector.extract_strided_slice %4 {offsets = [4, 0], sizes = [1, 64], strides = [1, 1]} : vector<8x64xf32> to vector<1x64xf32>
    %10 = vector.extract_strided_slice %4 {offsets = [5, 0], sizes = [1, 64], strides = [1, 1]} : vector<8x64xf32> to vector<1x64xf32>
    %11 = vector.extract_strided_slice %4 {offsets = [6, 0], sizes = [1, 64], strides = [1, 1]} : vector<8x64xf32> to vector<1x64xf32>
    %c0_5 = arith.constant 0 : index
    %c0_6 = arith.constant 0 : index
    %12 = vector.load %arg3[%c0_5, %c0_6] : memref<64x128xbf16, #tpu.memory_space<vmem>>, vector<64x128xbf16>
    %cst = arith.constant dense<0.000000e+00> : vector<256x128xf32>
    %13 = tpu.matmul %3, %12, %cst {dimension_numbers = #tpu.dot_dimension_numbers<[1], [0], [0], [1], [0, 0, 1, 1], [], []>} : vector<256x64xbf16>, vector<64x128xbf16>, vector<256x128xf32> -> vector<256x128xf32>
    %14 = vector.extract_strided_slice %13 {offsets = [0, 0], sizes = [256, 64], strides = [1, 1]} : vector<256x128xf32> to vector<256x64xf32>
    %15 = vector.broadcast %5 : vector<1x64xf32> to vector<256x64xf32>
    %16 = arith.addf %14, %15 : vector<256x64xf32>
    %cst_7 = arith.constant 0.000000e+00 : f32
    %17 = vector.broadcast %cst_7 : f32 to vector<256x64xf32>
    %18 = arith.maximumf %16, %17 : vector<256x64xf32>
    %19 = vector.extract_strided_slice %13 {offsets = [0, 64], sizes = [256, 64], strides = [1, 1]} : vector<256x128xf32> to vector<256x64xf32>
    %20 = vector.broadcast %6 : vector<1x64xf32> to vector<256x64xf32>
    %21 = arith.addf %19, %20 : vector<256x64xf32>
    %22 = arith.truncf %18 : vector<256x64xf32> to vector<256x64xbf16>
    %c0_8 = arith.constant 0 : index
    %c0_9 = arith.constant 0 : index
    %23 = vector.load %arg4[%c0_8, %c0_9] : memref<64x64xbf16, #tpu.memory_space<vmem>>, vector<64x64xbf16>
    %cst_10 = arith.constant dense<0.000000e+00> : vector<256x64xf32>
    %24 = tpu.matmul %22, %23, %cst_10 {dimension_numbers = #tpu.dot_dimension_numbers<[1], [0], [0], [1], [0, 0, 1, 1], [], []>} : vector<256x64xbf16>, vector<64x64xbf16>, vector<256x64xf32> -> vector<256x64xf32>
    %25 = vector.broadcast %7 : vector<1x64xf32> to vector<256x64xf32>
    %26 = arith.addf %24, %25 : vector<256x64xf32>
    %27 = arith.negf %26 : vector<256x64xf32>
    %28 = math.exp %27 : vector<256x64xf32>
    %cst_11 = arith.constant 1.000000e+00 : f32
    %29 = vector.broadcast %cst_11 : f32 to vector<256x64xf32>
    %30 = arith.addf %29, %28 : vector<256x64xf32>
    %31 = arith.divf %29, %30 : vector<256x64xf32>
    %32 = arith.mulf %31, %21 : vector<256x64xf32>
    %33 = arith.truncf %32 : vector<256x64xf32> to vector<256x64xbf16>
    %c0_12 = arith.constant 0 : index
    %c0_13 = arith.constant 0 : index
    %34 = vector.load %arg5[%c0_12, %c0_13] : memref<64x64xbf16, #tpu.memory_space<vmem>>, vector<64x64xbf16>
    %cst_14 = arith.constant dense<0.000000e+00> : vector<256x64xf32>
    %35 = tpu.matmul %33, %34, %cst_14 {dimension_numbers = #tpu.dot_dimension_numbers<[1], [0], [0], [1], [0, 0, 1, 1], [], []>} : vector<256x64xbf16>, vector<64x64xbf16>, vector<256x64xf32> -> vector<256x64xf32>
    %36 = vector.broadcast %8 : vector<1x64xf32> to vector<256x64xf32>
    %37 = arith.addf %35, %36 : vector<256x64xf32>
    %cst_15 = arith.constant 3.125000e-02 : f32
    %38 = vector.broadcast %cst_15 : f32 to vector<32x32xf32>
    %cst_16 = arith.constant 0.000000e+00 : f32
    %39 = vector.broadcast %cst_16 : f32 to vector<32x32xf32>
    %40 = tpu.concatenate %38, %39 in 1 : vector<32x32xf32>, vector<32x32xf32> -> vector<32x64xf32>
    %41 = tpu.concatenate %39, %38 in 1 : vector<32x32xf32>, vector<32x32xf32> -> vector<32x64xf32>
    %42 = tpu.concatenate %40, %41 in 0 : vector<32x64xf32>, vector<32x64xf32> -> vector<64x64xf32>
    %43 = arith.mulf %37, %37 : vector<256x64xf32>
    %44 = tpu.concatenate %37, %43 in 0 : vector<256x64xf32>, vector<256x64xf32> -> vector<512x64xf32>
    %cst_17 = arith.constant dense<0.000000e+00> : vector<512x64xf32>
    %45 = tpu.matmul %44, %42, %cst_17 {dimension_numbers = #tpu.dot_dimension_numbers<[1], [0], [0], [1], [0, 0, 1, 1], [], []>} : vector<512x64xf32>, vector<64x64xf32>, vector<512x64xf32> -> vector<512x64xf32>
    %46 = vector.extract_strided_slice %45 {offsets = [0, 0], sizes = [256, 64], strides = [1, 1]} : vector<512x64xf32> to vector<256x64xf32>
    %47 = vector.extract_strided_slice %45 {offsets = [256, 0], sizes = [256, 64], strides = [1, 1]} : vector<512x64xf32> to vector<256x64xf32>
    %48 = arith.mulf %46, %46 : vector<256x64xf32>
    %49 = arith.subf %47, %48 : vector<256x64xf32>
    %50 = arith.subf %37, %46 : vector<256x64xf32>
    %cst_18 = arith.constant 9.99999974E-6 : f32
    %51 = vector.broadcast %cst_18 : f32 to vector<256x64xf32>
    %52 = arith.addf %49, %51 : vector<256x64xf32>
    %53 = math.rsqrt %52 : vector<256x64xf32>
    %54 = arith.mulf %50, %53 : vector<256x64xf32>
    %55 = vector.broadcast %9 : vector<1x64xf32> to vector<256x64xf32>
    %56 = arith.mulf %54, %55 : vector<256x64xf32>
    %57 = vector.broadcast %10 : vector<1x64xf32> to vector<256x64xf32>
    %58 = arith.addf %56, %57 : vector<256x64xf32>
    %cst_19 = arith.constant 0.000000e+00 : f32
    %59 = vector.broadcast %cst_19 : f32 to vector<256x64xf32>
    %60 = arith.maximumf %58, %59 : vector<256x64xf32>
    %61 = arith.truncf %60 : vector<256x64xf32> to vector<256x64xbf16>
    %c0_20 = arith.constant 0 : index
    %c0_21 = arith.constant 0 : index
    %62 = vector.load %arg6[%c0_20, %c0_21] : memref<64x64xbf16, #tpu.memory_space<vmem>>, vector<64x64xbf16>
    %cst_22 = arith.constant dense<0.000000e+00> : vector<256x64xf32>
    %63 = tpu.matmul %61, %62, %cst_22 {dimension_numbers = #tpu.dot_dimension_numbers<[1], [0], [0], [1], [0, 0, 1, 1], [], []>} : vector<256x64xbf16>, vector<64x64xbf16>, vector<256x64xf32> -> vector<256x64xf32>
    %64 = arith.addf %2, %63 : vector<256x64xf32>
    %65 = vector.broadcast %11 : vector<1x64xf32> to vector<256x64xf32>
    %66 = arith.addf %64, %65 : vector<256x64xf32>
    %67 = vector.extract_strided_slice %66 {offsets = [0, 0], sizes = [256, 32], strides = [1, 1]} : vector<256x64xf32> to vector<256x32xf32>
    %c0_23 = arith.constant 0 : index
    %c0_24 = arith.constant 0 : index
    %68 = vector.load %arg8[%c0_23, %c0_24] : memref<256x32xf32, #tpu.memory_space<vmem>>, vector<256x32xf32>
    tpu.vector_store %arg8[%c0_23, %c0_24], %67 {strides = array<i32>} : memref<256x32xf32, #tpu.memory_space<vmem>>, vector<256x32xf32>,
    %69 = vector.extract_strided_slice %66 {offsets = [0, 32], sizes = [256, 32], strides = [1, 1]} : vector<256x64xf32> to vector<256x32xf32>
    %c0_25 = arith.constant 0 : index
    %c0_26 = arith.constant 0 : index
    %70 = vector.load %arg9[%c0_25, %c0_26] : memref<256x32xf32, #tpu.memory_space<vmem>>, vector<256x32xf32>
    tpu.vector_store %arg9[%c0_25, %c0_26], %69 {strides = array<i32>} : memref<256x32xf32, #tpu.memory_space<vmem>>, vector<256x32xf32>,
    return
  }
  func.func @transform_0(%arg0: i32) -> (i32, i32) {
    %c0_i32 = arith.constant 0 : i32
    %c0_i32_0 = arith.constant 0 : i32
    return %arg0, %c0_i32 : i32, i32
  }
  func.func @transform_1(%arg0: i32) -> (i32, i32) {
    %c0_i32 = arith.constant 0 : i32
    %c0_i32_0 = arith.constant 0 : i32
    return %arg0, %c0_i32 : i32, i32
  }
  func.func @transform_2(%arg0: i32) -> (i32, i32) {
    %c0_i32 = arith.constant 0 : i32
    %c0_i32_0 = arith.constant 0 : i32
    %c0_i32_1 = arith.constant 0 : i32
    return %c0_i32, %c0_i32_0 : i32, i32
  }
  func.func @transform_3(%arg0: i32) -> (i32, i32) {
    %c0_i32 = arith.constant 0 : i32
    %c0_i32_0 = arith.constant 0 : i32
    %c0_i32_1 = arith.constant 0 : i32
    return %c0_i32, %c0_i32_0 : i32, i32
  }
  func.func @transform_4(%arg0: i32) -> (i32, i32) {
    %c0_i32 = arith.constant 0 : i32
    %c0_i32_0 = arith.constant 0 : i32
    %c0_i32_1 = arith.constant 0 : i32
    return %c0_i32, %c0_i32_0 : i32, i32
  }
  func.func @transform_5(%arg0: i32) -> (i32, i32) {
    %c0_i32 = arith.constant 0 : i32
    %c0_i32_0 = arith.constant 0 : i32
    %c0_i32_1 = arith.constant 0 : i32
    return %c0_i32, %c0_i32_0 : i32, i32
  }
  func.func @transform_6(%arg0: i32) -> (i32, i32) {
    %c0_i32 = arith.constant 0 : i32
    %c0_i32_0 = arith.constant 0 : i32
    %c0_i32_1 = arith.constant 0 : i32
    return %c0_i32, %c0_i32_0 : i32, i32
  }
  func.func @transform_7(%arg0: i32) -> (i32, i32) {
    %c0_i32 = arith.constant 0 : i32
    %c0_i32_0 = arith.constant 0 : i32
    return %arg0, %c0_i32 : i32, i32
  }
  func.func @transform_8(%arg0: i32) -> (i32, i32) {
    %c0_i32 = arith.constant 0 : i32
    %c0_i32_0 = arith.constant 0 : i32
    return %arg0, %c0_i32 : i32, i32
  }
}

</mosaic_0001>

<llo_original>
// kernel: mh_cross_att_layer.1
$region0: #{mh_cross_att_layer.1}
  #allocation0 [shape = 'u32[]', space=smem, size = 0x4, offset = 0x4, fixed_abs, tag = 'smem constant byte address 0x4 - core index']
  #allocation1 [shape = 'u32[72,128]{1,0:T(1,128)}', space=vmem, size = 0x9000, scoped, tag = 'internal scratch']
  %s0 = inlined_call_operand.vmem [shape: f32[512,32], index: 0, kind: input, shape index: {}]
  %s1 = inlined_call_operand.vmem [shape: f32[512,32], index: 1, kind: input, shape index: {}]
  %s2 = inlined_call_operand.vmem [shape: bf16[64,128], index: 2, kind: input, shape index: {}]
  %s3 = inlined_call_operand.vmem [shape: bf16[64,64], index: 3, kind: input, shape index: {}]
  %s4 = inlined_call_operand.vmem [shape: bf16[64,64], index: 4, kind: input, shape index: {}]
  %s5 = inlined_call_operand.vmem [shape: bf16[64,64], index: 5, kind: input, shape index: {}]
  %s6 = inlined_call_operand.vmem [shape: f32[8,64], index: 6, kind: input, shape index: {}]
  %s7 = inlined_call_operand.vmem [shape: f32[512,32], index: 7, kind: output, shape index: {0}]
  %s8 = inlined_call_operand.vmem [shape: f32[512,32], index: 8, kind: output, shape index: {1}]
  %9 = xla_tuple %s7, %s8
  %s10 = sld [smem:[#allocation0]]
  $region69: #{mh_cross_att_layer.1} parent=0
    _
  %s12 = ssub.s32 1, %s10
  %s13 = scalar_select 0, %s12, %s10
  loop: start=0, step=1, limit=4
  $region2: #{mh_cross_att_layer.1} parent=0 // loop_pre_header
    _
  $region3: #{mh_cross_att_layer.1} parent=0 // loop_header
    %s15 = sphi 0, %s19
    %p16 = scmp.ge.s32.totalorder %s15, 4
    %s25 = sphi 0, %s27
    %s28 = sphi 0, %s25
    %s29 = sphi 0, %s28
    %s45 = sphi 0, %s29
    %s51 = sphi 0, %s53
    %s54 = sphi 0, %s51
    %s55 = sphi 0, %s54
    %s71 = sphi 0, %s55
    %s75 = sphi 0, %s75
    %s77 = sphi 0, %s75
    %s78 = sphi 0, %s77
    %s92 = sphi 0, %s78
    %s96 = sphi 0, %s96
    %s98 = sphi 0, %s96
    %s99 = sphi 0, %s98
    %s113 = sphi 0, %s99
    %s117 = sphi 0, %s117
    %s119 = sphi 0, %s117
    %s120 = sphi 0, %s119
    %s134 = sphi 0, %s120
    %s138 = sphi 0, %s138
    %s140 = sphi 0, %s138
    %s141 = sphi 0, %s140
    %s155 = sphi 0, %s141
    %s159 = sphi 0, %s159
    %s161 = sphi 0, %s159
    %s162 = sphi 0, %s161
    %s176 = sphi 0, %s162
    %s182 = sphi 0, %s184
    %s185 = sphi 0, %s182
    %s186 = sphi 0, %s185
    %s202 = sphi 0, %s186
    %s208 = sphi 0, %s210
    %s211 = sphi 0, %s208
    %s212 = sphi 0, %s211
    %s228 = sphi 0, %s212
  $region4: #{mh_cross_att_layer.1} parent=0 // loop_header_branch
    %18 = sbr.rel (%p16) target = $region8
  $region5: #{mh_cross_att_layer.1} parent=0 // loop_body
    %s20 = ssub.s32 %s15, 1
    %s21 = ssub.s32 %s15, 2
    %s22 = sadd.s32 %s15, 1
    %s23 = ssub.s32 %s15, %s22
    %p24 = scmp.eq.s32.totalorder %s23, 0
    %s26 = sadd.s32 %s25, 1
    %s27 = scalar_select %p24, %s25, %s26
    %p30 = pneg %p24
    %p31 = scmp.eq.s32.totalorder %s15, 1
    %p32 = por %p30, %p31
    %p33 = scmp.ne.s32.totalorder %s25, %s28
    %p34 = scmp.eq.s32.totalorder %s15, 0
    %p35 = por %p33, %p34
    %p36 = scmp.ne.s32.totalorder %s25, %s28
    %p37 = scmp.eq.s32.totalorder %s20, 1
    %p38 = por %p36, %p37
    %p39 = scmp.ne.s32.totalorder %s28, %s29
    %p40 = scmp.eq.s32.totalorder %s20, 0
    %p41 = por %p39, %p40
    %p42 = scmp.ne.s32.totalorder %s28, %s29
    %p43 = scmp.eq.s32.totalorder %s21, 1
    %p44 = por %p42, %p43
    %p46 = scmp.ne.s32.totalorder %s29, %s45
    %p47 = scmp.eq.s32.totalorder %s21, 0
    %p48 = por %p46, %p47
    %s49 = ssub.s32 %s15, %s22
    %p50 = scmp.eq.s32.totalorder %s49, 0
    %s52 = sadd.s32 %s51, 1
    %s53 = scalar_select %p50, %s51, %s52
    %p56 = pneg %p50
    %p57 = scmp.eq.s32.totalorder %s15, 1
    %p58 = por %p56, %p57
    %p59 = scmp.ne.s32.totalorder %s51, %s54
    %p60 = scmp.eq.s32.totalorder %s15, 0
    %p61 = por %p59, %p60
    %p62 = scmp.ne.s32.totalorder %s51, %s54
    %p63 = scmp.eq.s32.totalorder %s20, 1
    %p64 = por %p62, %p63
    %p65 = scmp.ne.s32.totalorder %s54, %s55
    %p66 = scmp.eq.s32.totalorder %s20, 0
    %p67 = por %p65, %p66
    %p68 = scmp.ne.s32.totalorder %s54, %s55
    %p69 = scmp.eq.s32.totalorder %s21, 1
    %p70 = por %p68, %p69
    %p72 = scmp.ne.s32.totalorder %s55, %s71
    %p73 = scmp.eq.s32.totalorder %s21, 0
    %p74 = por %p72, %p73
    %s76 = sadd.s32 %s75, 1
    %p79 = scmp.eq.s32.totalorder %s15, 1
    %p80 = scmp.ne.s32.totalorder %s75, %s77
    %p81 = scmp.eq.s32.totalorder %s15, 0
    %p82 = por %p80, %p81
    %p83 = scmp.ne.s32.totalorder %s75, %s77
    %p84 = scmp.eq.s32.totalorder %s20, 1
    %p85 = por %p83, %p84
    %p86 = scmp.ne.s32.totalorder %s77, %s78
    %p87 = scmp.eq.s32.totalorder %s20, 0
    %p88 = por %p86, %p87
    %p89 = scmp.ne.s32.totalorder %s77, %s78
    %p90 = scmp.eq.s32.totalorder %s21, 1
    %p91 = por %p89, %p90
    %p93 = scmp.ne.s32.totalorder %s78, %s92
    %p94 = scmp.eq.s32.totalorder %s21, 0
    %p95 = por %p93, %p94
    %s97 = sadd.s32 %s96, 1
    %p100 = scmp.eq.s32.totalorder %s15, 1
    %p101 = scmp.ne.s32.totalorder %s96, %s98
    %p102 = scmp.eq.s32.totalorder %s15, 0
    %p103 = por %p101, %p102
    %p104 = scmp.ne.s32.totalorder %s96, %s98
    %p105 = scmp.eq.s32.totalorder %s20, 1
    %p106 = por %p104, %p105
    %p107 = scmp.ne.s32.totalorder %s98, %s99
    %p108 = scmp.eq.s32.totalorder %s20, 0
    %p109 = por %p107, %p108
    %p110 = scmp.ne.s32.totalorder %s98, %s99
    %p111 = scmp.eq.s32.totalorder %s21, 1
    %p112 = por %p110, %p111
    %p114 = scmp.ne.s32.totalorder %s99, %s113
    %p115 = scmp.eq.s32.totalorder %s21, 0
    %p116 = por %p114, %p115
    %s118 = sadd.s32 %s117, 1
    %p121 = scmp.eq.s32.totalorder %s15, 1
    %p122 = scmp.ne.s32.totalorder %s117, %s119
    %p123 = scmp.eq.s32.totalorder %s15, 0
    %p124 = por %p122, %p123
    %p125 = scmp.ne.s32.totalorder %s117, %s119
    %p126 = scmp.eq.s32.totalorder %s20, 1
    %p127 = por %p125, %p126
    %p128 = scmp.ne.s32.totalorder %s119, %s120
    %p129 = scmp.eq.s32.totalorder %s20, 0
    %p130 = por %p128, %p129
    %p131 = scmp.ne.s32.totalorder %s119, %s120
    %p132 = scmp.eq.s32.totalorder %s21, 1
    %p133 = por %p131, %p132
    %p135 = scmp.ne.s32.totalorder %s120, %s134
    %p136 = scmp.eq.s32.totalorder %s21, 0
    %p137 = por %p135, %p136
    %s139 = sadd.s32 %s138, 1
    %p142 = scmp.eq.s32.totalorder %s15, 1
    %p143 = scmp.ne.s32.totalorder %s138, %s140
    %p144 = scmp.eq.s32.totalorder %s15, 0
    %p145 = por %p143, %p144
    %p146 = scmp.ne.s32.totalorder %s138, %s140
    %p147 = scmp.eq.s32.totalorder %s20, 1
    %p148 = por %p146, %p147
    %p149 = scmp.ne.s32.totalorder %s140, %s141
    %p150 = scmp.eq.s32.totalorder %s20, 0
    %p151 = por %p149, %p150
    %p152 = scmp.ne.s32.totalorder %s140, %s141
    %p153 = scmp.eq.s32.totalorder %s21, 1
    %p154 = por %p152, %p153
    %p156 = scmp.ne.s32.totalorder %s141, %s155
    %p157 = scmp.eq.s32.totalorder %s21, 0
    %p158 = por %p156, %p157
    %s160 = sadd.s32 %s159, 1
    %p163 = scmp.eq.s32.totalorder %s15, 1
    %p164 = scmp.ne.s32.totalorder %s159, %s161
    %p165 = scmp.eq.s32.totalorder %s15, 0
    %p166 = por %p164, %p165
    %p167 = scmp.ne.s32.totalorder %s159, %s161
    %p168 = scmp.eq.s32.totalorder %s20, 1
    %p169 = por %p167, %p168
    %p170 = scmp.ne.s32.totalorder %s161, %s162
    %p171 = scmp.eq.s32.totalorder %s20, 0
    %p172 = por %p170, %p171
    %p173 = scmp.ne.s32.totalorder %s161, %s162
    %p174 = scmp.eq.s32.totalorder %s21, 1
    %p175 = por %p173, %p174
    %p177 = scmp.ne.s32.totalorder %s162, %s176
    %p178 = scmp.eq.s32.totalorder %s21, 0
    %p179 = por %p177, %p178
    %s180 = ssub.s32 %s15, %s22
    %p181 = scmp.eq.s32.totalorder %s180, 0
    %s183 = sadd.s32 %s182, 1
    %s184 = scalar_select %p181, %s182, %s183
    %p187 = pneg %p181
    %p188 = scmp.eq.s32.totalorder %s15, 1
    %p189 = por %p187, %p188
    %p190 = scmp.ne.s32.totalorder %s182, %s185
    %p191 = scmp.eq.s32.totalorder %s15, 0
    %p192 = por %p190, %p191
    %p193 = scmp.ne.s32.totalorder %s182, %s185
    %p194 = scmp.eq.s32.totalorder %s20, 1
    %p195 = por %p193, %p194
    %p196 = scmp.ne.s32.totalorder %s185, %s186
    %p197 = scmp.eq.s32.totalorder %s20, 0
    %p198 = por %p196, %p197
    %p199 = scmp.ne.s32.totalorder %s185, %s186
    %p200 = scmp.eq.s32.totalorder %s21, 1
    %p201 = por %p199, %p200
    %p203 = scmp.ne.s32.totalorder %s186, %s202
    %p204 = scmp.eq.s32.totalorder %s21, 0
    %p205 = por %p203, %p204
    %s206 = ssub.s32 %s15, %s22
    %p207 = scmp.eq.s32.totalorder %s206, 0
    %s209 = sadd.s32 %s208, 1
    %s210 = scalar_select %p207, %s208, %s209
    %p213 = pneg %p207
    %p214 = scmp.eq.s32.totalorder %s15, 1
    %p215 = por %p213, %p214
    %p216 = scmp.ne.s32.totalorder %s208, %s211
    %p217 = scmp.eq.s32.totalorder %s15, 0
    %p218 = por %p216, %p217
    %p219 = scmp.ne.s32.totalorder %s208, %s211
    %p220 = scmp.eq.s32.totalorder %s20, 1
    %p221 = por %p219, %p220
    %p222 = scmp.ne.s32.totalorder %s211, %s212
    %p223 = scmp.eq.s32.totalorder %s20, 0
    %p224 = por %p222, %p223
    %p225 = scmp.ne.s32.totalorder %s211, %s212
    %p226 = scmp.eq.s32.totalorder %s21, 1
    %p227 = por %p225, %p226
    %p229 = scmp.ne.s32.totalorder %s212, %s228
    %p230 = scmp.eq.s32.totalorder %s21, 0
    %p231 = por %p229, %p230
    %p232 = scmp.le.s32.totalorder 1, %s15
    %p233 = scmp.lt.s32.totalorder %s15, 3
    %p234 = pnand %p232, %p233
    %p235 = pneg %p234
    // Predicated region
    $region9: #{mh_cross_att_layer.1} parent=5 // pred_check
      _
    $region10: #{mh_cross_att_layer.1} parent=5 // pred_check_branch
      %237 = sbr.rel (%p234) target = $region12
    $region11: #{mh_cross_att_layer.1} parent=5 // pred_region
      %s238 = ssub.s32 %s15, 1
      // Predicated region
      $region13: #{mh_cross_att_layer.1} parent=11 // pred_check
        %p239 = pneg %p88
      $region14: #{mh_cross_att_layer.1} parent=11 // pred_check_branch
        %241 = sbr.rel (%p239) target = $region16
      $region15: #{mh_cross_att_layer.1} parent=11 // pred_region
        _
      $region16: #{mh_cross_att_layer.1} parent=11 // pred_fallthru
        _
      // Predicated region
      $region17: #{mh_cross_att_layer.1} parent=11 // pred_check
        %p242 = pneg %p109
      $region18: #{mh_cross_att_layer.1} parent=11 // pred_check_branch
        %244 = sbr.rel (%p242) target = $region20
      $region19: #{mh_cross_att_layer.1} parent=11 // pred_region
        _
      $region20: #{mh_cross_att_layer.1} parent=11 // pred_fallthru
        _
      // Predicated region
      $region21: #{mh_cross_att_layer.1} parent=11 // pred_check
        %p245 = pneg %p130
      $region22: #{mh_cross_att_layer.1} parent=11 // pred_check_branch
        %247 = sbr.rel (%p245) target = $region24
      $region23: #{mh_cross_att_layer.1} parent=11 // pred_region
        _
      $region24: #{mh_cross_att_layer.1} parent=11 // pred_fallthru
        _
      // Predicated region
      $region25: #{mh_cross_att_layer.1} parent=11 // pred_check
        %p248 = pneg %p151
      $region26: #{mh_cross_att_layer.1} parent=11 // pred_check_branch
        %250 = sbr.rel (%p248) target = $region28
      $region27: #{mh_cross_att_layer.1} parent=11 // pred_region
        _
      $region28: #{mh_cross_att_layer.1} parent=11 // pred_fallthru
        _
      // Predicated region
      $region29: #{mh_cross_att_layer.1} parent=11 // pred_check
        %p251 = pneg %p172
      $region30: #{mh_cross_att_layer.1} parent=11 // pred_check_branch
        %253 = sbr.rel (%p251) target = $region32
      $region31: #{mh_cross_att_layer.1} parent=11 // pred_region
        _
      $region32: #{mh_cross_att_layer.1} parent=11 // pred_fallthru
        _
    $region12: #{mh_cross_att_layer.1} parent=5 // pred_fallthru
      _
    %p254 = scmp.lt.s32.totalorder %s15, 2
    // Predicated region
    $region33: #{mh_cross_att_layer.1} parent=5 // pred_check
      %p255 = pneg %p254
    $region34: #{mh_cross_att_layer.1} parent=5 // pred_check_branch
      %257 = sbr.rel (%p255) target = $region36
    $region35: #{mh_cross_att_layer.1} parent=5 // pred_region
      // Predicated region
      $region37: #{mh_cross_att_layer.1} parent=35 // pred_check
        %p258 = pneg %p35
      $region38: #{mh_cross_att_layer.1} parent=35 // pred_check_branch
        %260 = sbr.rel (%p258) target = $region40
      $region39: #{mh_cross_att_layer.1} parent=35 // pred_region
        %s261 = smul.u32 32, %s15
        %p262 = scmp.lt.s32.totalorder %s261, 63
        %s263 = scalar_select %p262, %s261, 63
        %s264 = smul.addr %s263, 8
        %s265 = scalar_lea.vmem %s0, %s264
        %s266 = smul.u32 32, %s15
      $region40: #{mh_cross_att_layer.1} parent=35 // pred_fallthru
        _
      // Predicated region
      $region41: #{mh_cross_att_layer.1} parent=35 // pred_check
        %p267 = pneg %p61
      $region42: #{mh_cross_att_layer.1} parent=35 // pred_check_branch
        %269 = sbr.rel (%p267) target = $region44
      $region43: #{mh_cross_att_layer.1} parent=35 // pred_region
        %s270 = smul.u32 32, %s15
        %p271 = scmp.lt.s32.totalorder %s270, 63
        %s272 = scalar_select %p271, %s270, 63
        %s273 = smul.addr %s272, 8
        %s274 = scalar_lea.vmem %s1, %s273
        %s275 = smul.u32 32, %s15
      $region44: #{mh_cross_att_layer.1} parent=35 // pred_fallthru
        _
    $region36: #{mh_cross_att_layer.1} parent=5 // pred_fallthru
      _
    %p276 = scmp.le.s32.totalorder 1, %s15
    %p277 = scmp.lt.s32.totalorder %s15, 3
    %p278 = pnand %p276, %p277
    %p279 = pneg %p278
    // Predicated region
    $region45: #{mh_cross_att_layer.1} parent=5 // pred_check
      _
    $region46: #{mh_cross_att_layer.1} parent=5 // pred_check_branch
      %281 = sbr.rel (%p278) target = $region48
    $region47: #{mh_cross_att_layer.1} parent=5 // pred_region
      %s282 = ssub.s32 %s15, 1
      %s283 = smul.u32 32, %s20
      %p284 = scmp.lt.s32.totalorder %s283, 63
      %s285 = scalar_select %p284, %s283, 63
      %s286 = smul.addr %s285, 8
      %s287 = scalar_lea.vmem %s0, %s286
      %p288 = pneg %p41
      %p289 = pneg %p38
      %s290 = smul.u32 32, %s20
      %p291 = scmp.lt.s32.totalorder %s290, 63
      %s292 = scalar_select %p291, %s290, 63
      %s293 = smul.addr %s292, 8
      %s294 = scalar_lea.vmem %s1, %s293
      %p295 = pneg %p67
      %p296 = pneg %p64
      %p297 = pneg %p88
      %p298 = pneg %p85
      %p299 = pneg %p109
      %p300 = pneg %p106
      %p301 = pneg %p130
      %p302 = pneg %p127
      %p303 = pneg %p151
      %p304 = pneg %p148
      %p305 = pneg %p172
      %p306 = pneg %p169
      %p307 = pneg %p198
      %p308 = pneg %p195
      %s309 = smul.u32 32, %s20
      %p310 = scmp.lt.s32.totalorder %s309, 63
      %s311 = scalar_select %p310, %s309, 63
      %s312 = smul.addr %s311, 8
      %s313 = scalar_lea.vmem %s7, %s312
      %p314 = pneg %p224
      %p315 = pneg %p221
      %s316 = smul.u32 32, %s20
      %p317 = scmp.lt.s32.totalorder %s316, 63
      %s318 = scalar_select %p317, %s316, 63
      %s319 = smul.addr %s318, 8
      %s320 = scalar_lea.vmem %s8, %s319
      %s321 = smul.u32 32, %s20
      %p322 = scmp.lt.s32.totalorder %s321, 63
      %s323 = scalar_select %p322, %s321, 63
      %s324 = smul.addr %s323, 8
      %s325 = scalar_lea.vmem %s0, %s324
      %s326 = smul.u32 32, %s20
      %s327 = smul.u32 32, %s20
      %p328 = scmp.lt.s32.totalorder %s327, 63
      %s329 = scalar_select %p328, %s327, 63
      %s330 = smul.addr %s329, 8
      %s331 = scalar_lea.vmem %s1, %s330
      %s332 = smul.u32 32, %s20
      %s333 = smul.u32 32, %s20
      %p334 = scmp.lt.s32.totalorder %s333, 63
      %s335 = scalar_select %p334, %s333, 63
      %s336 = smul.addr %s335, 8
      %s337 = scalar_lea.vmem %s7, %s336
      %s338 = smul.u32 32, %s20
      %s339 = smul.u32 32, %s20
      %p340 = scmp.lt.s32.totalorder %s339, 63
      %s341 = scalar_select %p340, %s339, 63
      %s342 = smul.addr %s341, 8
      %s343 = scalar_lea.vmem %s8, %s342
      %s344 = smul.u32 32, %s20
      %v346 = vld [vmem:[%s325] sm:$0xff]
      %v347 = vld [vmem:[%s325 + $0x8] sm:$0xff]
      %v348 = vld [vmem:[%s325 + $0x10] sm:$0xff]
      %v349 = vld [vmem:[%s325 + $0x18] sm:$0xff]
      %v350 = vld [vmem:[%s325 + $0x20] sm:$0xff]
      %v351 = vld [vmem:[%s325 + $0x28] sm:$0xff]
      %v352 = vld [vmem:[%s325 + $0x30] sm:$0xff]
      %v353 = vld [vmem:[%s325 + $0x38] sm:$0xff]
      %v354 = vld [vmem:[%s325 + $0x40] sm:$0xff]
      %v355 = vld [vmem:[%s325 + $0x48] sm:$0xff]
      %v356 = vld [vmem:[%s325 + $0x50] sm:$0xff]
      %v357 = vld [vmem:[%s325 + $0x58] sm:$0xff]
      %v358 = vld [vmem:[%s325 + $0x60] sm:$0xff]
      %v359 = vld [vmem:[%s325 + $0x68] sm:$0xff]
      %v360 = vld [vmem:[%s325 + $0x70] sm:$0xff]
      %v361 = vld [vmem:[%s325 + $0x78] sm:$0xff]
      %v362 = vld [vmem:[%s325 + $0x80] sm:$0xff]
      %v363 = vld [vmem:[%s325 + $0x88] sm:$0xff]
      %v364 = vld [vmem:[%s325 + $0x90] sm:$0xff]
      %v365 = vld [vmem:[%s325 + $0x98] sm:$0xff]
      %v366 = vld [vmem:[%s325 + $0xa0] sm:$0xff]
      %v367 = vld [vmem:[%s325 + $0xa8] sm:$0xff]
      %v368 = vld [vmem:[%s325 + $0xb0] sm:$0xff]
      %v369 = vld [vmem:[%s325 + $0xb8] sm:$0xff]
      %v370 = vld [vmem:[%s325 + $0xc0] sm:$0xff]
      %v371 = vld [vmem:[%s325 + $0xc8] sm:$0xff]
      %v372 = vld [vmem:[%s325 + $0xd0] sm:$0xff]
      %v373 = vld [vmem:[%s325 + $0xd8] sm:$0xff]
      %v374 = vld [vmem:[%s325 + $0xe0] sm:$0xff]
      %v375 = vld [vmem:[%s325 + $0xe8] sm:$0xff]
      %v376 = vld [vmem:[%s325 + $0xf0] sm:$0xff]
      %v377 = vld [vmem:[%s325 + $0xf8] sm:$0xff]
      %v378 = vld [vmem:[%s331] sm:$0xff]
      %v379 = vld [vmem:[%s331 + $0x8] sm:$0xff]
      %v380 = vld [vmem:[%s331 + $0x10] sm:$0xff]
      %v381 = vld [vmem:[%s331 + $0x18] sm:$0xff]
      %v382 = vld [vmem:[%s331 + $0x20] sm:$0xff]
      %v383 = vld [vmem:[%s331 + $0x28] sm:$0xff]
      %v384 = vld [vmem:[%s331 + $0x30] sm:$0xff]
      %v385 = vld [vmem:[%s331 + $0x38] sm:$0xff]
      %v386 = vld [vmem:[%s331 + $0x40] sm:$0xff]
      %v387 = vld [vmem:[%s331 + $0x48] sm:$0xff]
      %v388 = vld [vmem:[%s331 + $0x50] sm:$0xff]
      %v389 = vld [vmem:[%s331 + $0x58] sm:$0xff]
      %v390 = vld [vmem:[%s331 + $0x60] sm:$0xff]
      %v391 = vld [vmem:[%s331 + $0x68] sm:$0xff]
      %v392 = vld [vmem:[%s331 + $0x70] sm:$0xff]
      %v393 = vld [vmem:[%s331 + $0x78] sm:$0xff]
      %v394 = vld [vmem:[%s331 + $0x80] sm:$0xff]
      %v395 = vld [vmem:[%s331 + $0x88] sm:$0xff]
      %v396 = vld [vmem:[%s331 + $0x90] sm:$0xff]
      %v397 = vld [vmem:[%s331 + $0x98] sm:$0xff]
      %v398 = vld [vmem:[%s331 + $0xa0] sm:$0xff]
      %v399 = vld [vmem:[%s331 + $0xa8] sm:$0xff]
      %v400 = vld [vmem:[%s331 + $0xb0] sm:$0xff]
      %v401 = vld [vmem:[%s331 + $0xb8] sm:$0xff]
      %v402 = vld [vmem:[%s331 + $0xc0] sm:$0xff]
      %v403 = vld [vmem:[%s331 + $0xc8] sm:$0xff]
      %v404 = vld [vmem:[%s331 + $0xd0] sm:$0xff]
      %v405 = vld [vmem:[%s331 + $0xd8] sm:$0xff]
      %v406 = vld [vmem:[%s331 + $0xe0] sm:$0xff]
      %v407 = vld [vmem:[%s331 + $0xe8] sm:$0xff]
      %v408 = vld [vmem:[%s331 + $0xf0] sm:$0xff]
      %v409 = vld [vmem:[%s331 + $0xf8] sm:$0xff]
      %442 = vrot.lane.b32.xlu0 %v378, 32
      %v443 = vpop.permute.xlu0 %442
      %444 = vrot.lane.b32.xlu0 %v379, 32
      %v445 = vpop.permute.xlu0 %444
      %446 = vrot.lane.b32.xlu0 %v380, 32
      %v447 = vpop.permute.xlu0 %446
      %448 = vrot.lane.b32.xlu0 %v381, 32
      %v449 = vpop.permute.xlu0 %448
      %450 = vrot.lane.b32.xlu0 %v382, 32
      %v451 = vpop.permute.xlu0 %450
      %452 = vrot.lane.b32.xlu0 %v383, 32
      %v453 = vpop.permute.xlu0 %452
      %454 = vrot.lane.b32.xlu0 %v384, 32
      %v455 = vpop.permute.xlu0 %454
      %456 = vrot.lane.b32.xlu0 %v385, 32
      %v457 = vpop.permute.xlu0 %456
      %458 = vrot.lane.b32.xlu0 %v386, 32
      %v459 = vpop.permute.xlu0 %458
      %460 = vrot.lane.b32.xlu0 %v387, 32
      %v461 = vpop.permute.xlu0 %460
      %462 = vrot.lane.b32.xlu0 %v388, 32
      %v463 = vpop.permute.xlu0 %462
      %464 = vrot.lane.b32.xlu0 %v389, 32
      %v465 = vpop.permute.xlu0 %464
      %466 = vrot.lane.b32.xlu0 %v390, 32
      %v467 = vpop.permute.xlu0 %466
      %468 = vrot.lane.b32.xlu0 %v391, 32
      %v469 = vpop.permute.xlu0 %468
      %470 = vrot.lane.b32.xlu0 %v392, 32
      %v471 = vpop.permute.xlu0 %470
      %472 = vrot.lane.b32.xlu0 %v393, 32
      %v473 = vpop.permute.xlu0 %472
      %474 = vrot.lane.b32.xlu0 %v394, 32
      %v475 = vpop.permute.xlu0 %474
      %476 = vrot.lane.b32.xlu0 %v395, 32
      %v477 = vpop.permute.xlu0 %476
      %478 = vrot.lane.b32.xlu0 %v396, 32
      %v479 = vpop.permute.xlu0 %478
      %480 = vrot.lane.b32.xlu0 %v397, 32
      %v481 = vpop.permute.xlu0 %480
      %482 = vrot.lane.b32.xlu0 %v398, 32
      %v483 = vpop.permute.xlu0 %482
      %484 = vrot.lane.b32.xlu0 %v399, 32
      %v485 = vpop.permute.xlu0 %484
      %486 = vrot.lane.b32.xlu0 %v400, 32
      %v487 = vpop.permute.xlu0 %486
      %488 = vrot.lane.b32.xlu0 %v401, 32
      %v489 = vpop.permute.xlu0 %488
      %490 = vrot.lane.b32.xlu0 %v402, 32
      %v491 = vpop.permute.xlu0 %490
      %492 = vrot.lane.b32.xlu0 %v403, 32
      %v493 = vpop.permute.xlu0 %492
      %494 = vrot.lane.b32.xlu0 %v404, 32
      %v495 = vpop.permute.xlu0 %494
      %496 = vrot.lane.b32.xlu0 %v405, 32
      %v497 = vpop.permute.xlu0 %496
      %498 = vrot.lane.b32.xlu0 %v406, 32
      %v499 = vpop.permute.xlu0 %498
      %500 = vrot.lane.b32.xlu0 %v407, 32
      %v501 = vpop.permute.xlu0 %500
      %502 = vrot.lane.b32.xlu0 %v408, 32
      %v503 = vpop.permute.xlu0 %502
      %504 = vrot.lane.b32.xlu0 %v409, 32
      %v505 = vpop.permute.xlu0 %504
      %vm538 = vcmask 261120
      %v539 = vsel %vm538, %v346, %v443
      %v540 = vsel %vm538, %v347, %v445
      %v541 = vsel %vm538, %v348, %v447
      %v542 = vsel %vm538, %v349, %v449
      %v543 = vsel %vm538, %v350, %v451
      %v544 = vsel %vm538, %v351, %v453
      %v545 = vsel %vm538, %v352, %v455
      %v546 = vsel %vm538, %v353, %v457
      %v547 = vsel %vm538, %v354, %v459
      %v548 = vsel %vm538, %v355, %v461
      %v549 = vsel %vm538, %v356, %v463
      %v550 = vsel %vm538, %v357, %v465
      %v551 = vsel %vm538, %v358, %v467
      %v552 = vsel %vm538, %v359, %v469
      %v553 = vsel %vm538, %v360, %v471
      %v554 = vsel %vm538, %v361, %v473
      %v555 = vsel %vm538, %v362, %v475
      %v556 = vsel %vm538, %v363, %v477
      %v557 = vsel %vm538, %v364, %v479
      %v558 = vsel %vm538, %v365, %v481
      %v559 = vsel %vm538, %v366, %v483
      %v560 = vsel %vm538, %v367, %v485
      %v561 = vsel %vm538, %v368, %v487
      %v562 = vsel %vm538, %v369, %v489
      %v563 = vsel %vm538, %v370, %v491
      %v564 = vsel %vm538, %v371, %v493
      %v565 = vsel %vm538, %v372, %v495
      %v566 = vsel %vm538, %v373, %v497
      %v567 = vsel %vm538, %v374, %v499
      %v568 = vsel %vm538, %v375, %v501
      %v569 = vsel %vm538, %v376, %v503
      %v570 = vsel %vm538, %v377, %v505
      %v571 = vpack.c.bf16 %v540, %v539
      %v572 = vpack.c.bf16 %v542, %v541
      %v573 = vpack.c.bf16 %v544, %v543
      %v574 = vpack.c.bf16 %v546, %v545
      %v575 = vpack.c.bf16 %v548, %v547
      %v576 = vpack.c.bf16 %v550, %v549
      %v577 = vpack.c.bf16 %v552, %v551
      %v578 = vpack.c.bf16 %v554, %v553
      %v579 = vpack.c.bf16 %v556, %v555
      %v580 = vpack.c.bf16 %v558, %v557
      %v581 = vpack.c.bf16 %v560, %v559
      %v582 = vpack.c.bf16 %v562, %v561
      %v583 = vpack.c.bf16 %v564, %v563
      %v584 = vpack.c.bf16 %v566, %v565
      %v585 = vpack.c.bf16 %v568, %v567
      %v586 = vpack.c.bf16 %v570, %v569
      %v587 = vld [vmem:[%s6] sm:$0xff]
      %v588 = vld [vmem:[%s2] sm:$0xf]
      %v589 = vld [vmem:[%s2 + $0x4] sm:$0xf]
      %v590 = vld [vmem:[%s2 + $0x8] sm:$0xf]
      %v591 = vld [vmem:[%s2 + $0xc] sm:$0xf]
      %v592 = vld [vmem:[%s2 + $0x10] sm:$0xf]
      %v593 = vld [vmem:[%s2 + $0x14] sm:$0xf]
      %v594 = vld [vmem:[%s2 + $0x18] sm:$0xf]
      %v595 = vld [vmem:[%s2 + $0x1c] sm:$0xf]
      %v604 = vunpack.c.l.b16 %v588
      %v605 = vunpack.c.l.b16 %v589
      %v606 = vunpack.c.l.b16 %v590
      %v607 = vunpack.c.l.b16 %v591
      %v608 = vunpack.c.l.b16 %v592
      %v609 = vunpack.c.l.b16 %v593
      %v610 = vunpack.c.l.b16 %v594
      %v611 = vunpack.c.l.b16 %v595
      %v612 = vpack.c.b16 %v605, %v604
      %v613 = vpack.c.b16 %v607, %v606
      %v614 = vpack.c.b16 %v609, %v608
      %v615 = vpack.c.b16 %v611, %v610
      %vm620 = vcmask 523264
      %v622 = vsel %vm620, %v571, 0
      %v625 = vsel %vm620, %v572, 0
      %v628 = vsel %vm620, %v573, 0
      %v631 = vsel %vm620, %v574, 0
      %v634 = vsel %vm620, %v575, 0
      %v637 = vsel %vm620, %v576, 0
      %v640 = vsel %vm620, %v577, 0
      %v643 = vsel %vm620, %v578, 0
      %v646 = vsel %vm620, %v579, 0
      %v649 = vsel %vm620, %v580, 0
      %v652 = vsel %vm620, %v581, 0
      %v655 = vsel %vm620, %v582, 0
      %v658 = vsel %vm620, %v583, 0
      %v661 = vsel %vm620, %v584, 0
      %v664 = vsel %vm620, %v585, 0
      %v667 = vsel %vm620, %v586, 0
      %669 = vmatpush.bf16.msra.mxu0 0
      %670 = vmatpush.bf16.msra.mxu0 0
      %671 = vmatpush.bf16.msra.mxu0 0
      %672 = vmatpush.bf16.msra.mxu0 0
      %673 = vmatpush.bf16.msra.mxu0 %v615
      %674 = vmatpush.bf16.msra.mxu0 %v614
      %675 = vmatpush.bf16.msra.mxu0 %v613
      %676 = vmatpush.bf16.msra.mxu0 %v612
      %677 = vmatmul.bf16.gmra.mxu0 %v622
      %v678 = vpop.f32.mrf.mxu0
      %v679 = vadd.f32 0.0, %v678
      %v680 = vpop.f32.mrf.mxu0
      %v681 = vadd.f32 0.0, %v680
      %682 = vmatmul.bf16.gmra.mxu0 %v625
      %v683 = vpop.f32.mrf.mxu0
      %v684 = vadd.f32 0.0, %v683
      %v685 = vpop.f32.mrf.mxu0
      %v686 = vadd.f32 0.0, %v685
      %687 = vmatmul.bf16.gmra.mxu0 %v628
      %v688 = vpop.f32.mrf.mxu0
      %v689 = vadd.f32 0.0, %v688
      %v690 = vpop.f32.mrf.mxu0
      %v691 = vadd.f32 0.0, %v690
      %692 = vmatmul.bf16.gmra.mxu0 %v631
      %v693 = vpop.f32.mrf.mxu0
      %v694 = vadd.f32 0.0, %v693
      %v695 = vpop.f32.mrf.mxu0
      %v696 = vadd.f32 0.0, %v695
      %697 = vmatmul.bf16.gmra.mxu0 %v634
      %v698 = vpop.f32.mrf.mxu0
      %v699 = vadd.f32 0.0, %v698
      %v700 = vpop.f32.mrf.mxu0
      %v701 = vadd.f32 0.0, %v700
      %702 = vmatmul.bf16.gmra.mxu0 %v637
      %v703 = vpop.f32.mrf.mxu0
      %v704 = vadd.f32 0.0, %v703
      %v705 = vpop.f32.mrf.mxu0
      %v706 = vadd.f32 0.0, %v705
      %707 = vmatmul.bf16.gmra.mxu0 %v640
      %v708 = vpop.f32.mrf.mxu0
      %v709 = vadd.f32 0.0, %v708
      %v710 = vpop.f32.mrf.mxu0
      %v711 = vadd.f32 0.0, %v710
      %712 = vmatmul.bf16.gmra.mxu0 %v643
      %v713 = vpop.f32.mrf.mxu0
      %v714 = vadd.f32 0.0, %v713
      %v715 = vpop.f32.mrf.mxu0
      %v716 = vadd.f32 0.0, %v715
      %717 = vmatmul.bf16.gmra.mxu0 %v646
      %v718 = vpop.f32.mrf.mxu0
      %v719 = vadd.f32 0.0, %v718
      %v720 = vpop.f32.mrf.mxu0
      %v721 = vadd.f32 0.0, %v720
      %722 = vmatmul.bf16.gmra.mxu0 %v649
      %v723 = vpop.f32.mrf.mxu0
      %v724 = vadd.f32 0.0, %v723
      %v725 = vpop.f32.mrf.mxu0
      %v726 = vadd.f32 0.0, %v725
      %727 = vmatmul.bf16.gmra.mxu0 %v652
      %v728 = vpop.f32.mrf.mxu0
      %v729 = vadd.f32 0.0, %v728
      %v730 = vpop.f32.mrf.mxu0
      %v731 = vadd.f32 0.0, %v730
      %732 = vmatmul.bf16.gmra.mxu0 %v655
      %v733 = vpop.f32.mrf.mxu0
      %v734 = vadd.f32 0.0, %v733
      %v735 = vpop.f32.mrf.mxu0
      %v736 = vadd.f32 0.0, %v735
      %737 = vmatmul.bf16.gmra.mxu0 %v658
      %v738 = vpop.f32.mrf.mxu0
      %v739 = vadd.f32 0.0, %v738
      %v740 = vpop.f32.mrf.mxu0
      %v741 = vadd.f32 0.0, %v740
      %742 = vmatmul.bf16.gmra.mxu0 %v661
      %v743 = vpop.f32.mrf.mxu0
      %v744 = vadd.f32 0.0, %v743
      %v745 = vpop.f32.mrf.mxu0
      %v746 = vadd.f32 0.0, %v745
      %747 = vmatmul.bf16.gmra.mxu0 %v664
      %v748 = vpop.f32.mrf.mxu0
      %v749 = vadd.f32 0.0, %v748
      %v750 = vpop.f32.mrf.mxu0
      %v751 = vadd.f32 0.0, %v750
      %752 = vmatmul.bf16.gmra.mxu0 %v667
      %v753 = vpop.f32.mrf.mxu0
      %v754 = vadd.f32 0.0, %v753
      %v755 = vpop.f32.mrf.mxu0
      %v756 = vadd.f32 0.0, %v755
      %757 = vdwg.mxu0
      %v758 = vperm.slane %v587, 0
      %v759 = vadd.f32 %v679, %v758
      %v760 = vadd.f32 %v681, %v758
      %v761 = vadd.f32 %v684, %v758
      %v762 = vadd.f32 %v686, %v758
      %v763 = vadd.f32 %v689, %v758
      %v764 = vadd.f32 %v691, %v758
      %v765 = vadd.f32 %v694, %v758
      %v766 = vadd.f32 %v696, %v758
      %v767 = vadd.f32 %v699, %v758
      %v768 = vadd.f32 %v701, %v758
      %v769 = vadd.f32 %v704, %v758
      %v770 = vadd.f32 %v706, %v758
      %v771 = vadd.f32 %v709, %v758
      %v772 = vadd.f32 %v711, %v758
      %v773 = vadd.f32 %v714, %v758
      %v774 = vadd.f32 %v716, %v758
      %v775 = vadd.f32 %v719, %v758
      %v776 = vadd.f32 %v721, %v758
      %v777 = vadd.f32 %v724, %v758
      %v778 = vadd.f32 %v726, %v758
      %v779 = vadd.f32 %v729, %v758
      %v780 = vadd.f32 %v731, %v758
      %v781 = vadd.f32 %v734, %v758
      %v782 = vadd.f32 %v736, %v758
      %v783 = vadd.f32 %v739, %v758
      %v784 = vadd.f32 %v741, %v758
      %v785 = vadd.f32 %v744, %v758
      %v786 = vadd.f32 %v746, %v758
      %v787 = vadd.f32 %v749, %v758
      %v788 = vadd.f32 %v751, %v758
      %v789 = vadd.f32 %v754, %v758
      %v790 = vadd.f32 %v756, %v758
      %v791 = vmax.f32 %v759, 0.0
      %v792 = vmax.f32 %v760, 0.0
      %v793 = vmax.f32 %v761, 0.0
      %v794 = vmax.f32 %v762, 0.0
      %v795 = vmax.f32 %v763, 0.0
      %v796 = vmax.f32 %v764, 0.0
      %v797 = vmax.f32 %v765, 0.0
      %v798 = vmax.f32 %v766, 0.0
      %v799 = vmax.f32 %v767, 0.0
      %v800 = vmax.f32 %v768, 0.0
      %v801 = vmax.f32 %v769, 0.0
      %v802 = vmax.f32 %v770, 0.0
      %v803 = vmax.f32 %v771, 0.0
      %v804 = vmax.f32 %v772, 0.0
      %v805 = vmax.f32 %v773, 0.0
      %v806 = vmax.f32 %v774, 0.0
      %v807 = vmax.f32 %v775, 0.0
      %v808 = vmax.f32 %v776, 0.0
      %v809 = vmax.f32 %v777, 0.0
      %v810 = vmax.f32 %v778, 0.0
      %v811 = vmax.f32 %v779, 0.0
      %v812 = vmax.f32 %v780, 0.0
      %v813 = vmax.f32 %v781, 0.0
      %v814 = vmax.f32 %v782, 0.0
      %v815 = vmax.f32 %v783, 0.0
      %v816 = vmax.f32 %v784, 0.0
      %v817 = vmax.f32 %v785, 0.0
      %v818 = vmax.f32 %v786, 0.0
      %v819 = vmax.f32 %v787, 0.0
      %v820 = vmax.f32 %v788, 0.0
      %v821 = vmax.f32 %v789, 0.0
      %v822 = vmax.f32 %v790, 0.0
      %v823 = vperm.slane %v587, 1
      %825 = vrot.lane.b32.xlu0 %v823, 64
      %v826 = vpop.permute.xlu0 %825
      %v828 = vadd.f32 %v679, %v826
      %v829 = vadd.f32 %v681, %v826
      %v830 = vadd.f32 %v684, %v826
      %v831 = vadd.f32 %v686, %v826
      %v832 = vadd.f32 %v689, %v826
      %v833 = vadd.f32 %v691, %v826
      %v834 = vadd.f32 %v694, %v826
      %v835 = vadd.f32 %v696, %v826
      %v836 = vadd.f32 %v699, %v826
      %v837 = vadd.f32 %v701, %v826
      %v838 = vadd.f32 %v704, %v826
      %v839 = vadd.f32 %v706, %v826
      %v840 = vadd.f32 %v709, %v826
      %v841 = vadd.f32 %v711, %v826
      %v842 = vadd.f32 %v714, %v826
      %v843 = vadd.f32 %v716, %v826
      %v844 = vadd.f32 %v719, %v826
      %v845 = vadd.f32 %v721, %v826
      %v846 = vadd.f32 %v724, %v826
      %v847 = vadd.f32 %v726, %v826
      %v848 = vadd.f32 %v729, %v826
      %v849 = vadd.f32 %v731, %v826
      %v850 = vadd.f32 %v734, %v826
      %v851 = vadd.f32 %v736, %v826
      %v852 = vadd.f32 %v739, %v826
      %v853 = vadd.f32 %v741, %v826
      %v854 = vadd.f32 %v744, %v826
      %v855 = vadd.f32 %v746, %v826
      %v856 = vadd.f32 %v749, %v826
      %v857 = vadd.f32 %v751, %v826
      %v858 = vadd.f32 %v754, %v826
      %v859 = vadd.f32 %v756, %v826
      %v860 = vpack.c.bf16 %v792, %v791
      %v861 = vpack.c.bf16 %v794, %v793
      %v862 = vpack.c.bf16 %v796, %v795
      %v863 = vpack.c.bf16 %v798, %v797
      %v864 = vpack.c.bf16 %v800, %v799
      %v865 = vpack.c.bf16 %v802, %v801
      %v866 = vpack.c.bf16 %v804, %v803
      %v867 = vpack.c.bf16 %v806, %v805
      %v868 = vpack.c.bf16 %v808, %v807
      %v869 = vpack.c.bf16 %v810, %v809
      %v870 = vpack.c.bf16 %v812, %v811
      %v871 = vpack.c.bf16 %v814, %v813
      %v872 = vpack.c.bf16 %v816, %v815
      %v873 = vpack.c.bf16 %v818, %v817
      %v874 = vpack.c.bf16 %v820, %v819
      %v875 = vpack.c.bf16 %v822, %v821
      %v876 = vld [vmem:[%s3] sm:$0xf]
      %v877 = vld [vmem:[%s3 + $0x4] sm:$0xf]
      %v878 = vld [vmem:[%s3 + $0x8] sm:$0xf]
      %v879 = vld [vmem:[%s3 + $0xc] sm:$0xf]
      %v880 = vld [vmem:[%s3 + $0x10] sm:$0xf]
      %v881 = vld [vmem:[%s3 + $0x14] sm:$0xf]
      %v882 = vld [vmem:[%s3 + $0x18] sm:$0xf]
      %v883 = vld [vmem:[%s3 + $0x1c] sm:$0xf]
      %v884 = vperm.slane %v587, 2
      %v893 = vunpack.c.l.b16 %v876
      %v894 = vunpack.c.l.b16 %v877
      %v895 = vunpack.c.l.b16 %v878
      %v896 = vunpack.c.l.b16 %v879
      %v897 = vunpack.c.l.b16 %v880
      %v898 = vunpack.c.l.b16 %v881
      %v899 = vunpack.c.l.b16 %v882
      %v900 = vunpack.c.l.b16 %v883
      %v901 = vpack.c.b16 %v894, %v893
      %v902 = vpack.c.b16 %v896, %v895
      %v903 = vpack.c.b16 %v898, %v897
      %v904 = vpack.c.b16 %v900, %v899
      %v910 = vsel %vm620, %v860, 0
      %v913 = vsel %vm620, %v861, 0
      %v916 = vsel %vm620, %v862, 0
      %v919 = vsel %vm620, %v863, 0
      %v922 = vsel %vm620, %v864, 0
      %v925 = vsel %vm620, %v865, 0
      %v928 = vsel %vm620, %v866, 0
      %v931 = vsel %vm620, %v867, 0
      %v934 = vsel %vm620, %v868, 0
      %v937 = vsel %vm620, %v869, 0
      %v940 = vsel %vm620, %v870, 0
      %v943 = vsel %vm620, %v871, 0
      %v946 = vsel %vm620, %v872, 0
      %v949 = vsel %vm620, %v873, 0
      %v952 = vsel %vm620, %v874, 0
      %v955 = vsel %vm620, %v875, 0
      %957 = vmatpush.bf16.msra.mxu0 0
      %958 = vmatpush.bf16.msra.mxu0 0
      %959 = vmatpush.bf16.msra.mxu0 0
      %960 = vmatpush.bf16.msra.mxu0 0
      %961 = vmatpush.bf16.msra.mxu0 %v904
      %962 = vmatpush.bf16.msra.mxu0 %v903
      %963 = vmatpush.bf16.msra.mxu0 %v902
      %964 = vmatpush.bf16.msra.mxu0 %v901
      %965 = vmatmul.bf16.gmra.mxu0 %v910
      %v966 = vpop.f32.mrf.mxu0
      %v967 = vadd.f32 %v884, %v966
      %v968 = vpop.f32.mrf.mxu0
      %v969 = vadd.f32 %v884, %v968
      %970 = vmatmul.bf16.gmra.mxu0 %v913
      %v971 = vpop.f32.mrf.mxu0
      %v972 = vadd.f32 %v884, %v971
      %v973 = vpop.f32.mrf.mxu0
      %v974 = vadd.f32 %v884, %v973
      %975 = vmatmul.bf16.gmra.mxu0 %v916
      %v976 = vpop.f32.mrf.mxu0
      %v977 = vadd.f32 %v884, %v976
      %v978 = vpop.f32.mrf.mxu0
      %v979 = vadd.f32 %v884, %v978
      %980 = vmatmul.bf16.gmra.mxu0 %v919
      %v981 = vpop.f32.mrf.mxu0
      %v982 = vadd.f32 %v884, %v981
      %v983 = vpop.f32.mrf.mxu0
      %v984 = vadd.f32 %v884, %v983
      %985 = vmatmul.bf16.gmra.mxu0 %v922
      %v986 = vpop.f32.mrf.mxu0
      %v987 = vadd.f32 %v884, %v986
      %v988 = vpop.f32.mrf.mxu0
      %v989 = vadd.f32 %v884, %v988
      %990 = vmatmul.bf16.gmra.mxu0 %v925
      %v991 = vpop.f32.mrf.mxu0
      %v992 = vadd.f32 %v884, %v991
      %v993 = vpop.f32.mrf.mxu0
      %v994 = vadd.f32 %v884, %v993
      %995 = vmatmul.bf16.gmra.mxu0 %v928
      %v996 = vpop.f32.mrf.mxu0
      %v997 = vadd.f32 %v884, %v996
      %v998 = vpop.f32.mrf.mxu0
      %v999 = vadd.f32 %v884, %v998
      %1000 = vmatmul.bf16.gmra.mxu0 %v931
      %v1001 = vpop.f32.mrf.mxu0
      %v1002 = vadd.f32 %v884, %v1001
      %v1003 = vpop.f32.mrf.mxu0
      %v1004 = vadd.f32 %v884, %v1003
      %1005 = vmatmul.bf16.gmra.mxu0 %v934
      %v1006 = vpop.f32.mrf.mxu0
      %v1007 = vadd.f32 %v884, %v1006
      %v1008 = vpop.f32.mrf.mxu0
      %v1009 = vadd.f32 %v884, %v1008
      %1010 = vmatmul.bf16.gmra.mxu0 %v937
      %v1011 = vpop.f32.mrf.mxu0
      %v1012 = vadd.f32 %v884, %v1011
      %v1013 = vpop.f32.mrf.mxu0
      %v1014 = vadd.f32 %v884, %v1013
      %1015 = vmatmul.bf16.gmra.mxu0 %v940
      %v1016 = vpop.f32.mrf.mxu0
      %v1017 = vadd.f32 %v884, %v1016
      %v1018 = vpop.f32.mrf.mxu0
      %v1019 = vadd.f32 %v884, %v1018
      %1020 = vmatmul.bf16.gmra.mxu0 %v943
      %v1021 = vpop.f32.mrf.mxu0
      %v1022 = vadd.f32 %v884, %v1021
      %v1023 = vpop.f32.mrf.mxu0
      %v1024 = vadd.f32 %v884, %v1023
      %1025 = vmatmul.bf16.gmra.mxu0 %v946
      %v1026 = vpop.f32.mrf.mxu0
      %v1027 = vadd.f32 %v884, %v1026
      %v1028 = vpop.f32.mrf.mxu0
      %v1029 = vadd.f32 %v884, %v1028
      %1030 = vmatmul.bf16.gmra.mxu0 %v949
      %v1031 = vpop.f32.mrf.mxu0
      %v1032 = vadd.f32 %v884, %v1031
      %v1033 = vpop.f32.mrf.mxu0
      %v1034 = vadd.f32 %v884, %v1033
      %1035 = vmatmul.bf16.gmra.mxu0 %v952
      %v1036 = vpop.f32.mrf.mxu0
      %v1037 = vadd.f32 %v884, %v1036
      %v1038 = vpop.f32.mrf.mxu0
      %v1039 = vadd.f32 %v884, %v1038
      %1040 = vmatmul.bf16.gmra.mxu0 %v955
      %v1041 = vpop.f32.mrf.mxu0
      %v1042 = vadd.f32 %v884, %v1041
      %v1043 = vpop.f32.mrf.mxu0
      %v1044 = vadd.f32 %v884, %v1043
      %1045 = vdwg.mxu0
      %v1046 = vxor.u32 %v967, 2147483648
      %v1047 = vxor.u32 %v969, 2147483648
      %v1048 = vxor.u32 %v972, 2147483648
      %v1049 = vxor.u32 %v974, 2147483648
      %v1050 = vxor.u32 %v977, 2147483648
      %v1051 = vxor.u32 %v979, 2147483648
      %v1052 = vxor.u32 %v982, 2147483648
      %v1053 = vxor.u32 %v984, 2147483648
      %v1054 = vxor.u32 %v987, 2147483648
      %v1055 = vxor.u32 %v989, 2147483648
      %v1056 = vxor.u32 %v992, 2147483648
      %v1057 = vxor.u32 %v994, 2147483648
      %v1058 = vxor.u32 %v997, 2147483648
      %v1059 = vxor.u32 %v999, 2147483648
      %v1060 = vxor.u32 %v1002, 2147483648
      %v1061 = vxor.u32 %v1004, 2147483648
      %v1062 = vxor.u32 %v1007, 2147483648
      %v1063 = vxor.u32 %v1009, 2147483648
      %v1064 = vxor.u32 %v1012, 2147483648
      %v1065 = vxor.u32 %v1014, 2147483648
      %v1066 = vxor.u32 %v1017, 2147483648
      %v1067 = vxor.u32 %v1019, 2147483648
      %v1068 = vxor.u32 %v1022, 2147483648
      %v1069 = vxor.u32 %v1024, 2147483648
      %v1070 = vxor.u32 %v1027, 2147483648
      %v1071 = vxor.u32 %v1029, 2147483648
      %v1072 = vxor.u32 %v1032, 2147483648
      %v1073 = vxor.u32 %v1034, 2147483648
      %v1074 = vxor.u32 %v1037, 2147483648
      %v1075 = vxor.u32 %v1039, 2147483648
      %v1076 = vxor.u32 %v1042, 2147483648
      %v1077 = vxor.u32 %v1044, 2147483648
      %v1078 = vmul.f32 %v1046, 1.442695
      %v1079 = vpow.pop %v1078
      %v1080 = vmul.f32 %v1047, 1.442695
      %v1081 = vpow.pop %v1080
      %v1082 = vmul.f32 %v1048, 1.442695
      %v1083 = vpow.pop %v1082
      %v1084 = vmul.f32 %v1049, 1.442695
      %v1085 = vpow.pop %v1084
      %v1086 = vmul.f32 %v1050, 1.442695
      %v1087 = vpow.pop %v1086
      %v1088 = vmul.f32 %v1051, 1.442695
      %v1089 = vpow.pop %v1088
      %v1090 = vmul.f32 %v1052, 1.442695
      %v1091 = vpow.pop %v1090
      %v1092 = vmul.f32 %v1053, 1.442695
      %v1093 = vpow.pop %v1092
      %v1094 = vmul.f32 %v1054, 1.442695
      %v1095 = vpow.pop %v1094
      %v1096 = vmul.f32 %v1055, 1.442695
      %v1097 = vpow.pop %v1096
      %v1098 = vmul.f32 %v1056, 1.442695
      %v1099 = vpow.pop %v1098
      %v1100 = vmul.f32 %v1057, 1.442695
      %v1101 = vpow.pop %v1100
      %v1102 = vmul.f32 %v1058, 1.442695
      %v1103 = vpow.pop %v1102
      %v1104 = vmul.f32 %v1059, 1.442695
      %v1105 = vpow.pop %v1104
      %v1106 = vmul.f32 %v1060, 1.442695
      %v1107 = vpow.pop %v1106
      %v1108 = vmul.f32 %v1061, 1.442695
      %v1109 = vpow.pop %v1108
      %v1110 = vmul.f32 %v1062, 1.442695
      %v1111 = vpow.pop %v1110
      %v1112 = vmul.f32 %v1063, 1.442695
      %v1113 = vpow.pop %v1112
      %v1114 = vmul.f32 %v1064, 1.442695
      %v1115 = vpow.pop %v1114
      %v1116 = vmul.f32 %v1065, 1.442695
      %v1117 = vpow.pop %v1116
      %v1118 = vmul.f32 %v1066, 1.442695
      %v1119 = vpow.pop %v1118
      %v1120 = vmul.f32 %v1067, 1.442695
      %v1121 = vpow.pop %v1120
      %v1122 = vmul.f32 %v1068, 1.442695
      %v1123 = vpow.pop %v1122
      %v1124 = vmul.f32 %v1069, 1.442695
      %v1125 = vpow.pop %v1124
      %v1126 = vmul.f32 %v1070, 1.442695
      %v1127 = vpow.pop %v1126
      %v1128 = vmul.f32 %v1071, 1.442695
      %v1129 = vpow.pop %v1128
      %v1130 = vmul.f32 %v1072, 1.442695
      %v1131 = vpow.pop %v1130
      %v1132 = vmul.f32 %v1073, 1.442695
      %v1133 = vpow.pop %v1132
      %v1134 = vmul.f32 %v1074, 1.442695
      %v1135 = vpow.pop %v1134
      %v1136 = vmul.f32 %v1075, 1.442695
      %v1137 = vpow.pop %v1136
      %v1138 = vmul.f32 %v1076, 1.442695
      %v1139 = vpow.pop %v1138
      %v1140 = vmul.f32 %v1077, 1.442695
      %v1141 = vpow.pop %v1140
      %v1142 = vadd.f32 %v1079, 1.0
      %v1143 = vadd.f32 %v1081, 1.0
      %v1144 = vadd.f32 %v1083, 1.0
      %v1145 = vadd.f32 %v1085, 1.0
      %v1146 = vadd.f32 %v1087, 1.0
      %v1147 = vadd.f32 %v1089, 1.0
      %v1148 = vadd.f32 %v1091, 1.0
      %v1149 = vadd.f32 %v1093, 1.0
      %v1150 = vadd.f32 %v1095, 1.0
      %v1151 = vadd.f32 %v1097, 1.0
      %v1152 = vadd.f32 %v1099, 1.0
      %v1153 = vadd.f32 %v1101, 1.0
      %v1154 = vadd.f32 %v1103, 1.0
      %v1155 = vadd.f32 %v1105, 1.0
      %v1156 = vadd.f32 %v1107, 1.0
      %v1157 = vadd.f32 %v1109, 1.0
      %v1158 = vadd.f32 %v1111, 1.0
      %v1159 = vadd.f32 %v1113, 1.0
      %v1160 = vadd.f32 %v1115, 1.0
      %v1161 = vadd.f32 %v1117, 1.0
      %v1162 = vadd.f32 %v1119, 1.0
      %v1163 = vadd.f32 %v1121, 1.0
      %v1164 = vadd.f32 %v1123, 1.0
      %v1165 = vadd.f32 %v1125, 1.0
      %v1166 = vadd.f32 %v1127, 1.0
      %v1167 = vadd.f32 %v1129, 1.0
      %v1168 = vadd.f32 %v1131, 1.0
      %v1169 = vadd.f32 %v1133, 1.0
      %v1170 = vadd.f32 %v1135, 1.0
      %v1171 = vadd.f32 %v1137, 1.0
      %v1172 = vadd.f32 %v1139, 1.0
      %v1173 = vadd.f32 %v1141, 1.0
      %v1174 = vrcp.pop %v1142
      %v1175 = vmul.f32 %v1142, %v1174
      %v1176 = vsub.f32 1.0, %v1175
      %v1177 = vmul.f32 %v1174, %v1176
      %v1178 = vadd.f32 %v1174, %v1177
      %vm1179 = vweird.f32 %v1142
      %vm1180 = vweird.f32 %v1174
      %vm1181 = vmor %vm1179, %vm1180
      %v1182 = vsel %vm1181, %v1174, %v1178
      %v1183 = vand.u32 2147483647, %v1142
      %vm1184 = vcmp.eq.f32.partialorder %v1183, 8.507059e+37
      %v1185 = vand.u32 %v1142, 2147483648
      %v1186 = vor.u32 1.1754944e-38, %v1185
      %v1187 = vsel %vm1184, %v1186, %v1182
      %v1188 = vmul.f32 1.0, %v1187
      %v1189 = vrcp.pop %v1143
      %v1190 = vmul.f32 %v1143, %v1189
      %v1191 = vsub.f32 1.0, %v1190
      %v1192 = vmul.f32 %v1189, %v1191
      %v1193 = vadd.f32 %v1189, %v1192
      %vm1194 = vweird.f32 %v1143
      %vm1195 = vweird.f32 %v1189
      %vm1196 = vmor %vm1194, %vm1195
      %v1197 = vsel %vm1196, %v1189, %v1193
      %v1198 = vand.u32 2147483647, %v1143
      %vm1199 = vcmp.eq.f32.partialorder %v1198, 8.507059e+37
      %v1200 = vand.u32 %v1143, 2147483648
      %v1201 = vor.u32 1.1754944e-38, %v1200
      %v1202 = vsel %vm1199, %v1201, %v1197
      %v1203 = vmul.f32 1.0, %v1202
      %v1204 = vrcp.pop %v1144
      %v1205 = vmul.f32 %v1144, %v1204
      %v1206 = vsub.f32 1.0, %v1205
      %v1207 = vmul.f32 %v1204, %v1206
      %v1208 = vadd.f32 %v1204, %v1207
      %vm1209 = vweird.f32 %v1144
      %vm1210 = vweird.f32 %v1204
      %vm1211 = vmor %vm1209, %vm1210
      %v1212 = vsel %vm1211, %v1204, %v1208
      %v1213 = vand.u32 2147483647, %v1144
      %vm1214 = vcmp.eq.f32.partialorder %v1213, 8.507059e+37
      %v1215 = vand.u32 %v1144, 2147483648
      %v1216 = vor.u32 1.1754944e-38, %v1215
      %v1217 = vsel %vm1214, %v1216, %v1212
      %v1218 = vmul.f32 1.0, %v1217
      %v1219 = vrcp.pop %v1145
      %v1220 = vmul.f32 %v1145, %v1219
      %v1221 = vsub.f32 1.0, %v1220
      %v1222 = vmul.f32 %v1219, %v1221
      %v1223 = vadd.f32 %v1219, %v1222
      %vm1224 = vweird.f32 %v1145
      %vm1225 = vweird.f32 %v1219
      %vm1226 = vmor %vm1224, %vm1225
      %v1227 = vsel %vm1226, %v1219, %v1223
      %v1228 = vand.u32 2147483647, %v1145
      %vm1229 = vcmp.eq.f32.partialorder %v1228, 8.507059e+37
      %v1230 = vand.u32 %v1145, 2147483648
      %v1231 = vor.u32 1.1754944e-38, %v1230
      %v1232 = vsel %vm1229, %v1231, %v1227
      %v1233 = vmul.f32 1.0, %v1232
      %v1234 = vrcp.pop %v1146
      %v1235 = vmul.f32 %v1146, %v1234
      %v1236 = vsub.f32 1.0, %v1235
      %v1237 = vmul.f32 %v1234, %v1236
      %v1238 = vadd.f32 %v1234, %v1237
      %vm1239 = vweird.f32 %v1146
      %vm1240 = vweird.f32 %v1234
      %vm1241 = vmor %vm1239, %vm1240
      %v1242 = vsel %vm1241, %v1234, %v1238
      %v1243 = vand.u32 2147483647, %v1146
      %vm1244 = vcmp.eq.f32.partialorder %v1243, 8.507059e+37
      %v1245 = vand.u32 %v1146, 2147483648
      %v1246 = vor.u32 1.1754944e-38, %v1245
      %v1247 = vsel %vm1244, %v1246, %v1242
      %v1248 = vmul.f32 1.0, %v1247
      %v1249 = vrcp.pop %v1147
      %v1250 = vmul.f32 %v1147, %v1249
      %v1251 = vsub.f32 1.0, %v1250
      %v1252 = vmul.f32 %v1249, %v1251
      %v1253 = vadd.f32 %v1249, %v1252
      %vm1254 = vweird.f32 %v1147
      %vm1255 = vweird.f32 %v1249
      %vm1256 = vmor %vm1254, %vm1255
      %v1257 = vsel %vm1256, %v1249, %v1253
      %v1258 = vand.u32 2147483647, %v1147
      %vm1259 = vcmp.eq.f32.partialorder %v1258, 8.507059e+37
      %v1260 = vand.u32 %v1147, 2147483648
      %v1261 = vor.u32 1.1754944e-38, %v1260
      %v1262 = vsel %vm1259, %v1261, %v1257
      %v1263 = vmul.f32 1.0, %v1262
      %v1264 = vrcp.pop %v1148
      %v1265 = vmul.f32 %v1148, %v1264
      %v1266 = vsub.f32 1.0, %v1265
      %v1267 = vmul.f32 %v1264, %v1266
      %v1268 = vadd.f32 %v1264, %v1267
      %vm1269 = vweird.f32 %v1148
      %vm1270 = vweird.f32 %v1264
      %vm1271 = vmor %vm1269, %vm1270
      %v1272 = vsel %vm1271, %v1264, %v1268
      %v1273 = vand.u32 2147483647, %v1148
      %vm1274 = vcmp.eq.f32.partialorder %v1273, 8.507059e+37
      %v1275 = vand.u32 %v1148, 2147483648
      %v1276 = vor.u32 1.1754944e-38, %v1275
      %v1277 = vsel %vm1274, %v1276, %v1272
      %v1278 = vmul.f32 1.0, %v1277
      %v1279 = vrcp.pop %v1149
      %v1280 = vmul.f32 %v1149, %v1279
      %v1281 = vsub.f32 1.0, %v1280
      %v1282 = vmul.f32 %v1279, %v1281
      %v1283 = vadd.f32 %v1279, %v1282
      %vm1284 = vweird.f32 %v1149
      %vm1285 = vweird.f32 %v1279
      %vm1286 = vmor %vm1284, %vm1285
      %v1287 = vsel %vm1286, %v1279, %v1283
      %v1288 = vand.u32 2147483647, %v1149
      %vm1289 = vcmp.eq.f32.partialorder %v1288, 8.507059e+37
      %v1290 = vand.u32 %v1149, 2147483648
      %v1291 = vor.u32 1.1754944e-38, %v1290
      %v1292 = vsel %vm1289, %v1291, %v1287
      %v1293 = vmul.f32 1.0, %v1292
      %v1294 = vrcp.pop %v1150
      %v1295 = vmul.f32 %v1150, %v1294
      %v1296 = vsub.f32 1.0, %v1295
      %v1297 = vmul.f32 %v1294, %v1296
      %v1298 = vadd.f32 %v1294, %v1297
      %vm1299 = vweird.f32 %v1150
      %vm1300 = vweird.f32 %v1294
      %vm1301 = vmor %vm1299, %vm1300
      %v1302 = vsel %vm1301, %v1294, %v1298
      %v1303 = vand.u32 2147483647, %v1150
      %vm1304 = vcmp.eq.f32.partialorder %v1303, 8.507059e+37
      %v1305 = vand.u32 %v1150, 2147483648
      %v1306 = vor.u32 1.1754944e-38, %v1305
      %v1307 = vsel %vm1304, %v1306, %v1302
      %v1308 = vmul.f32 1.0, %v1307
      %v1309 = vrcp.pop %v1151
      %v1310 = vmul.f32 %v1151, %v1309
      %v1311 = vsub.f32 1.0, %v1310
      %v1312 = vmul.f32 %v1309, %v1311
      %v1313 = vadd.f32 %v1309, %v1312
      %vm1314 = vweird.f32 %v1151
      %vm1315 = vweird.f32 %v1309
      %vm1316 = vmor %vm1314, %vm1315
      %v1317 = vsel %vm1316, %v1309, %v1313
      %v1318 = vand.u32 2147483647, %v1151
      %vm1319 = vcmp.eq.f32.partialorder %v1318, 8.507059e+37
      %v1320 = vand.u32 %v1151, 2147483648
      %v1321 = vor.u32 1.1754944e-38, %v1320
      %v1322 = vsel %vm1319, %v1321, %v1317
      %v1323 = vmul.f32 1.0, %v1322
      %v1324 = vrcp.pop %v1152
      %v1325 = vmul.f32 %v1152, %v1324
      %v1326 = vsub.f32 1.0, %v1325
      %v1327 = vmul.f32 %v1324, %v1326
      %v1328 = vadd.f32 %v1324, %v1327
      %vm1329 = vweird.f32 %v1152
      %vm1330 = vweird.f32 %v1324
      %vm1331 = vmor %vm1329, %vm1330
      %v1332 = vsel %vm1331, %v1324, %v1328
      %v1333 = vand.u32 2147483647, %v1152
      %vm1334 = vcmp.eq.f32.partialorder %v1333, 8.507059e+37
      %v1335 = vand.u32 %v1152, 2147483648
      %v1336 = vor.u32 1.1754944e-38, %v1335
      %v1337 = vsel %vm1334, %v1336, %v1332
      %v1338 = vmul.f32 1.0, %v1337
      %v1339 = vrcp.pop %v1153
      %v1340 = vmul.f32 %v1153, %v1339
      %v1341 = vsub.f32 1.0, %v1340
      %v1342 = vmul.f32 %v1339, %v1341
      %v1343 = vadd.f32 %v1339, %v1342
      %vm1344 = vweird.f32 %v1153
      %vm1345 = vweird.f32 %v1339
      %vm1346 = vmor %vm1344, %vm1345
      %v1347 = vsel %vm1346, %v1339, %v1343
      %v1348 = vand.u32 2147483647, %v1153
      %vm1349 = vcmp.eq.f32.partialorder %v1348, 8.507059e+37
      %v1350 = vand.u32 %v1153, 2147483648
      %v1351 = vor.u32 1.1754944e-38, %v1350
      %v1352 = vsel %vm1349, %v1351, %v1347
      %v1353 = vmul.f32 1.0, %v1352
      %v1354 = vrcp.pop %v1154
      %v1355 = vmul.f32 %v1154, %v1354
      %v1356 = vsub.f32 1.0, %v1355
      %v1357 = vmul.f32 %v1354, %v1356
      %v1358 = vadd.f32 %v1354, %v1357
      %vm1359 = vweird.f32 %v1154
      %vm1360 = vweird.f32 %v1354
      %vm1361 = vmor %vm1359, %vm1360
      %v1362 = vsel %vm1361, %v1354, %v1358
      %v1363 = vand.u32 2147483647, %v1154
      %vm1364 = vcmp.eq.f32.partialorder %v1363, 8.507059e+37
      %v1365 = vand.u32 %v1154, 2147483648
      %v1366 = vor.u32 1.1754944e-38, %v1365
      %v1367 = vsel %vm1364, %v1366, %v1362
      %v1368 = vmul.f32 1.0, %v1367
      %v1369 = vrcp.pop %v1155
      %v1370 = vmul.f32 %v1155, %v1369
      %v1371 = vsub.f32 1.0, %v1370
      %v1372 = vmul.f32 %v1369, %v1371
      %v1373 = vadd.f32 %v1369, %v1372
      %vm1374 = vweird.f32 %v1155
      %vm1375 = vweird.f32 %v1369
      %vm1376 = vmor %vm1374, %vm1375
      %v1377 = vsel %vm1376, %v1369, %v1373
      %v1378 = vand.u32 2147483647, %v1155
      %vm1379 = vcmp.eq.f32.partialorder %v1378, 8.507059e+37
      %v1380 = vand.u32 %v1155, 2147483648
      %v1381 = vor.u32 1.1754944e-38, %v1380
      %v1382 = vsel %vm1379, %v1381, %v1377
      %v1383 = vmul.f32 1.0, %v1382
      %v1384 = vrcp.pop %v1156
      %v1385 = vmul.f32 %v1156, %v1384
      %v1386 = vsub.f32 1.0, %v1385
      %v1387 = vmul.f32 %v1384, %v1386
      %v1388 = vadd.f32 %v1384, %v1387
      %vm1389 = vweird.f32 %v1156
      %vm1390 = vweird.f32 %v1384
      %vm1391 = vmor %vm1389, %vm1390
      %v1392 = vsel %vm1391, %v1384, %v1388
      %v1393 = vand.u32 2147483647, %v1156
      %vm1394 = vcmp.eq.f32.partialorder %v1393, 8.507059e+37
      %v1395 = vand.u32 %v1156, 2147483648
      %v1396 = vor.u32 1.1754944e-38, %v1395
      %v1397 = vsel %vm1394, %v1396, %v1392
      %v1398 = vmul.f32 1.0, %v1397
      %v1399 = vrcp.pop %v1157
      %v1400 = vmul.f32 %v1157, %v1399
      %v1401 = vsub.f32 1.0, %v1400
      %v1402 = vmul.f32 %v1399, %v1401
      %v1403 = vadd.f32 %v1399, %v1402
      %vm1404 = vweird.f32 %v1157
      %vm1405 = vweird.f32 %v1399
      %vm1406 = vmor %vm1404, %vm1405
      %v1407 = vsel %vm1406, %v1399, %v1403
      %v1408 = vand.u32 2147483647, %v1157
      %vm1409 = vcmp.eq.f32.partialorder %v1408, 8.507059e+37
      %v1410 = vand.u32 %v1157, 2147483648
      %v1411 = vor.u32 1.1754944e-38, %v1410
      %v1412 = vsel %vm1409, %v1411, %v1407
      %v1413 = vmul.f32 1.0, %v1412
      %v1414 = vrcp.pop %v1158
      %v1415 = vmul.f32 %v1158, %v1414
      %v1416 = vsub.f32 1.0, %v1415
      %v1417 = vmul.f32 %v1414, %v1416
      %v1418 = vadd.f32 %v1414, %v1417
      %vm1419 = vweird.f32 %v1158
      %vm1420 = vweird.f32 %v1414
      %vm1421 = vmor %vm1419, %vm1420
      %v1422 = vsel %vm1421, %v1414, %v1418
      %v1423 = vand.u32 2147483647, %v1158
      %vm1424 = vcmp.eq.f32.partialorder %v1423, 8.507059e+37
      %v1425 = vand.u32 %v1158, 2147483648
      %v1426 = vor.u32 1.1754944e-38, %v1425
      %v1427 = vsel %vm1424, %v1426, %v1422
      %v1428 = vmul.f32 1.0, %v1427
      %v1429 = vrcp.pop %v1159
      %v1430 = vmul.f32 %v1159, %v1429
      %v1431 = vsub.f32 1.0, %v1430
      %v1432 = vmul.f32 %v1429, %v1431
      %v1433 = vadd.f32 %v1429, %v1432
      %vm1434 = vweird.f32 %v1159
      %vm1435 = vweird.f32 %v1429
      %vm1436 = vmor %vm1434, %vm1435
      %v1437 = vsel %vm1436, %v1429, %v1433
      %v1438 = vand.u32 2147483647, %v1159
      %vm1439 = vcmp.eq.f32.partialorder %v1438, 8.507059e+37
      %v1440 = vand.u32 %v1159, 2147483648
      %v1441 = vor.u32 1.1754944e-38, %v1440
      %v1442 = vsel %vm1439, %v1441, %v1437
      %v1443 = vmul.f32 1.0, %v1442
      %v1444 = vrcp.pop %v1160
      %v1445 = vmul.f32 %v1160, %v1444
      %v1446 = vsub.f32 1.0, %v1445
      %v1447 = vmul.f32 %v1444, %v1446
      %v1448 = vadd.f32 %v1444, %v1447
      %vm1449 = vweird.f32 %v1160
      %vm1450 = vweird.f32 %v1444
      %vm1451 = vmor %vm1449, %vm1450
      %v1452 = vsel %vm1451, %v1444, %v1448
      %v1453 = vand.u32 2147483647, %v1160
      %vm1454 = vcmp.eq.f32.partialorder %v1453, 8.507059e+37
      %v1455 = vand.u32 %v1160, 2147483648
      %v1456 = vor.u32 1.1754944e-38, %v1455
      %v1457 = vsel %vm1454, %v1456, %v1452
      %v1458 = vmul.f32 1.0, %v1457
      %v1459 = vrcp.pop %v1161
      %v1460 = vmul.f32 %v1161, %v1459
      %v1461 = vsub.f32 1.0, %v1460
      %v1462 = vmul.f32 %v1459, %v1461
      %v1463 = vadd.f32 %v1459, %v1462
      %vm1464 = vweird.f32 %v1161
      %vm1465 = vweird.f32 %v1459
      %vm1466 = vmor %vm1464, %vm1465
      %v1467 = vsel %vm1466, %v1459, %v1463
      %v1468 = vand.u32 2147483647, %v1161
      %vm1469 = vcmp.eq.f32.partialorder %v1468, 8.507059e+37
      %v1470 = vand.u32 %v1161, 2147483648
      %v1471 = vor.u32 1.1754944e-38, %v1470
      %v1472 = vsel %vm1469, %v1471, %v1467
      %v1473 = vmul.f32 1.0, %v1472
      %v1474 = vrcp.pop %v1162
      %v1475 = vmul.f32 %v1162, %v1474
      %v1476 = vsub.f32 1.0, %v1475
      %v1477 = vmul.f32 %v1474, %v1476
      %v1478 = vadd.f32 %v1474, %v1477
      %vm1479 = vweird.f32 %v1162
      %vm1480 = vweird.f32 %v1474
      %vm1481 = vmor %vm1479, %vm1480
      %v1482 = vsel %vm1481, %v1474, %v1478
      %v1483 = vand.u32 2147483647, %v1162
      %vm1484 = vcmp.eq.f32.partialorder %v1483, 8.507059e+37
      %v1485 = vand.u32 %v1162, 2147483648
      %v1486 = vor.u32 1.1754944e-38, %v1485
      %v1487 = vsel %vm1484, %v1486, %v1482
      %v1488 = vmul.f32 1.0, %v1487
      %v1489 = vrcp.pop %v1163
      %v1490 = vmul.f32 %v1163, %v1489
      %v1491 = vsub.f32 1.0, %v1490
      %v1492 = vmul.f32 %v1489, %v1491
      %v1493 = vadd.f32 %v1489, %v1492
      %vm1494 = vweird.f32 %v1163
      %vm1495 = vweird.f32 %v1489
      %vm1496 = vmor %vm1494, %vm1495
      %v1497 = vsel %vm1496, %v1489, %v1493
      %v1498 = vand.u32 2147483647, %v1163
      %vm1499 = vcmp.eq.f32.partialorder %v1498, 8.507059e+37
      %v1500 = vand.u32 %v1163, 2147483648
      %v1501 = vor.u32 1.1754944e-38, %v1500
      %v1502 = vsel %vm1499, %v1501, %v1497
      %v1503 = vmul.f32 1.0, %v1502
      %v1504 = vrcp.pop %v1164
      %v1505 = vmul.f32 %v1164, %v1504
      %v1506 = vsub.f32 1.0, %v1505
      %v1507 = vmul.f32 %v1504, %v1506
      %v1508 = vadd.f32 %v1504, %v1507
      %vm1509 = vweird.f32 %v1164
      %vm1510 = vweird.f32 %v1504
      %vm1511 = vmor %vm1509, %vm1510
      %v1512 = vsel %vm1511, %v1504, %v1508
      %v1513 = vand.u32 2147483647, %v1164
      %vm1514 = vcmp.eq.f32.partialorder %v1513, 8.507059e+37
      %v1515 = vand.u32 %v1164, 2147483648
      %v1516 = vor.u32 1.1754944e-38, %v1515
      %v1517 = vsel %vm1514, %v1516, %v1512
      %v1518 = vmul.f32 1.0, %v1517
      %v1519 = vrcp.pop %v1165
      %v1520 = vmul.f32 %v1165, %v1519
      %v1521 = vsub.f32 1.0, %v1520
      %v1522 = vmul.f32 %v1519, %v1521
      %v1523 = vadd.f32 %v1519, %v1522
      %vm1524 = vweird.f32 %v1165
      %vm1525 = vweird.f32 %v1519
      %vm1526 = vmor %vm1524, %vm1525
      %v1527 = vsel %vm1526, %v1519, %v1523
      %v1528 = vand.u32 2147483647, %v1165
      %vm1529 = vcmp.eq.f32.partialorder %v1528, 8.507059e+37
      %v1530 = vand.u32 %v1165, 2147483648
      %v1531 = vor.u32 1.1754944e-38, %v1530
      %v1532 = vsel %vm1529, %v1531, %v1527
      %v1533 = vmul.f32 1.0, %v1532
      %v1534 = vrcp.pop %v1166
      %v1535 = vmul.f32 %v1166, %v1534
      %v1536 = vsub.f32 1.0, %v1535
      %v1537 = vmul.f32 %v1534, %v1536
      %v1538 = vadd.f32 %v1534, %v1537
      %vm1539 = vweird.f32 %v1166
      %vm1540 = vweird.f32 %v1534
      %vm1541 = vmor %vm1539, %vm1540
      %v1542 = vsel %vm1541, %v1534, %v1538
      %v1543 = vand.u32 2147483647, %v1166
      %vm1544 = vcmp.eq.f32.partialorder %v1543, 8.507059e+37
      %v1545 = vand.u32 %v1166, 2147483648
      %v1546 = vor.u32 1.1754944e-38, %v1545
      %v1547 = vsel %vm1544, %v1546, %v1542
      %v1548 = vmul.f32 1.0, %v1547
      %v1549 = vrcp.pop %v1167
      %v1550 = vmul.f32 %v1167, %v1549
      %v1551 = vsub.f32 1.0, %v1550
      %v1552 = vmul.f32 %v1549, %v1551
      %v1553 = vadd.f32 %v1549, %v1552
      %vm1554 = vweird.f32 %v1167
      %vm1555 = vweird.f32 %v1549
      %vm1556 = vmor %vm1554, %vm1555
      %v1557 = vsel %vm1556, %v1549, %v1553
      %v1558 = vand.u32 2147483647, %v1167
      %vm1559 = vcmp.eq.f32.partialorder %v1558, 8.507059e+37
      %v1560 = vand.u32 %v1167, 2147483648
      %v1561 = vor.u32 1.1754944e-38, %v1560
      %v1562 = vsel %vm1559, %v1561, %v1557
      %v1563 = vmul.f32 1.0, %v1562
      %v1564 = vrcp.pop %v1168
      %v1565 = vmul.f32 %v1168, %v1564
      %v1566 = vsub.f32 1.0, %v1565
      %v1567 = vmul.f32 %v1564, %v1566
      %v1568 = vadd.f32 %v1564, %v1567
      %vm1569 = vweird.f32 %v1168
      %vm1570 = vweird.f32 %v1564
      %vm1571 = vmor %vm1569, %vm1570
      %v1572 = vsel %vm1571, %v1564, %v1568
      %v1573 = vand.u32 2147483647, %v1168
      %vm1574 = vcmp.eq.f32.partialorder %v1573, 8.507059e+37
      %v1575 = vand.u32 %v1168, 2147483648
      %v1576 = vor.u32 1.1754944e-38, %v1575
      %v1577 = vsel %vm1574, %v1576, %v1572
      %v1578 = vmul.f32 1.0, %v1577
      %v1579 = vrcp.pop %v1169
      %v1580 = vmul.f32 %v1169, %v1579
      %v1581 = vsub.f32 1.0, %v1580
      %v1582 = vmul.f32 %v1579, %v1581
      %v1583 = vadd.f32 %v1579, %v1582
      %vm1584 = vweird.f32 %v1169
      %vm1585 = vweird.f32 %v1579
      %vm1586 = vmor %vm1584, %vm1585
      %v1587 = vsel %vm1586, %v1579, %v1583
      %v1588 = vand.u32 2147483647, %v1169
      %vm1589 = vcmp.eq.f32.partialorder %v1588, 8.507059e+37
      %v1590 = vand.u32 %v1169, 2147483648
      %v1591 = vor.u32 1.1754944e-38, %v1590
      %v1592 = vsel %vm1589, %v1591, %v1587
      %v1593 = vmul.f32 1.0, %v1592
      %v1594 = vrcp.pop %v1170
      %v1595 = vmul.f32 %v1170, %v1594
      %v1596 = vsub.f32 1.0, %v1595
      %v1597 = vmul.f32 %v1594, %v1596
      %v1598 = vadd.f32 %v1594, %v1597
      %vm1599 = vweird.f32 %v1170
      %vm1600 = vweird.f32 %v1594
      %vm1601 = vmor %vm1599, %vm1600
      %v1602 = vsel %vm1601, %v1594, %v1598
      %v1603 = vand.u32 2147483647, %v1170
      %vm1604 = vcmp.eq.f32.partialorder %v1603, 8.507059e+37
      %v1605 = vand.u32 %v1170, 2147483648
      %v1606 = vor.u32 1.1754944e-38, %v1605
      %v1607 = vsel %vm1604, %v1606, %v1602
      %v1608 = vmul.f32 1.0, %v1607
      %v1609 = vrcp.pop %v1171
      %v1610 = vmul.f32 %v1171, %v1609
      %v1611 = vsub.f32 1.0, %v1610
      %v1612 = vmul.f32 %v1609, %v1611
      %v1613 = vadd.f32 %v1609, %v1612
      %vm1614 = vweird.f32 %v1171
      %vm1615 = vweird.f32 %v1609
      %vm1616 = vmor %vm1614, %vm1615
      %v1617 = vsel %vm1616, %v1609, %v1613
      %v1618 = vand.u32 2147483647, %v1171
      %vm1619 = vcmp.eq.f32.partialorder %v1618, 8.507059e+37
      %v1620 = vand.u32 %v1171, 2147483648
      %v1621 = vor.u32 1.1754944e-38, %v1620
      %v1622 = vsel %vm1619, %v1621, %v1617
      %v1623 = vmul.f32 1.0, %v1622
      %v1624 = vrcp.pop %v1172
      %v1625 = vmul.f32 %v1172, %v1624
      %v1626 = vsub.f32 1.0, %v1625
      %v1627 = vmul.f32 %v1624, %v1626
      %v1628 = vadd.f32 %v1624, %v1627
      %vm1629 = vweird.f32 %v1172
      %vm1630 = vweird.f32 %v1624
      %vm1631 = vmor %vm1629, %vm1630
      %v1632 = vsel %vm1631, %v1624, %v1628
      %v1633 = vand.u32 2147483647, %v1172
      %vm1634 = vcmp.eq.f32.partialorder %v1633, 8.507059e+37
      %v1635 = vand.u32 %v1172, 2147483648
      %v1636 = vor.u32 1.1754944e-38, %v1635
      %v1637 = vsel %vm1634, %v1636, %v1632
      %v1638 = vmul.f32 1.0, %v1637
      %v1639 = vrcp.pop %v1173
      %v1640 = vmul.f32 %v1173, %v1639
      %v1641 = vsub.f32 1.0, %v1640
      %v1642 = vmul.f32 %v1639, %v1641
      %v1643 = vadd.f32 %v1639, %v1642
      %vm1644 = vweird.f32 %v1173
      %vm1645 = vweird.f32 %v1639
      %vm1646 = vmor %vm1644, %vm1645
      %v1647 = vsel %vm1646, %v1639, %v1643
      %v1648 = vand.u32 2147483647, %v1173
      %vm1649 = vcmp.eq.f32.partialorder %v1648, 8.507059e+37
      %v1650 = vand.u32 %v1173, 2147483648
      %v1651 = vor.u32 1.1754944e-38, %v1650
      %v1652 = vsel %vm1649, %v1651, %v1647
      %v1653 = vmul.f32 1.0, %v1652
      %1686 = vrot.lane.b32.xlu0 %v828, 64
      %v1687 = vpop.permute.xlu0 %1686
      %1688 = vrot.lane.b32.xlu0 %v829, 64
      %v1689 = vpop.permute.xlu0 %1688
      %1690 = vrot.lane.b32.xlu0 %v830, 64
      %v1691 = vpop.permute.xlu0 %1690
      %1692 = vrot.lane.b32.xlu0 %v831, 64
      %v1693 = vpop.permute.xlu0 %1692
      %1694 = vrot.lane.b32.xlu0 %v832, 64
      %v1695 = vpop.permute.xlu0 %1694
      %1696 = vrot.lane.b32.xlu0 %v833, 64
      %v1697 = vpop.permute.xlu0 %1696
      %1698 = vrot.lane.b32.xlu0 %v834, 64
      %v1699 = vpop.permute.xlu0 %1698
      %1700 = vrot.lane.b32.xlu0 %v835, 64
      %v1701 = vpop.permute.xlu0 %1700
      %1702 = vrot.lane.b32.xlu0 %v836, 64
      %v1703 = vpop.permute.xlu0 %1702
      %1704 = vrot.lane.b32.xlu0 %v837, 64
      %v1705 = vpop.permute.xlu0 %1704
      %1706 = vrot.lane.b32.xlu0 %v838, 64
      %v1707 = vpop.permute.xlu0 %1706
      %1708 = vrot.lane.b32.xlu0 %v839, 64
      %v1709 = vpop.permute.xlu0 %1708
      %1710 = vrot.lane.b32.xlu0 %v840, 64
      %v1711 = vpop.permute.xlu0 %1710
      %1712 = vrot.lane.b32.xlu0 %v841, 64
      %v1713 = vpop.permute.xlu0 %1712
      %1714 = vrot.lane.b32.xlu0 %v842, 64
      %v1715 = vpop.permute.xlu0 %1714
      %1716 = vrot.lane.b32.xlu0 %v843, 64
      %v1717 = vpop.permute.xlu0 %1716
      %1718 = vrot.lane.b32.xlu0 %v844, 64
      %v1719 = vpop.permute.xlu0 %1718
      %1720 = vrot.lane.b32.xlu0 %v845, 64
      %v1721 = vpop.permute.xlu0 %1720
      %1722 = vrot.lane.b32.xlu0 %v846, 64
      %v1723 = vpop.permute.xlu0 %1722
      %1724 = vrot.lane.b32.xlu0 %v847, 64
      %v1725 = vpop.permute.xlu0 %1724
      %1726 = vrot.lane.b32.xlu0 %v848, 64
      %v1727 = vpop.permute.xlu0 %1726
      %1728 = vrot.lane.b32.xlu0 %v849, 64
      %v1729 = vpop.permute.xlu0 %1728
      %1730 = vrot.lane.b32.xlu0 %v850, 64
      %v1731 = vpop.permute.xlu0 %1730
      %1732 = vrot.lane.b32.xlu0 %v851, 64
      %v1733 = vpop.permute.xlu0 %1732
      %1734 = vrot.lane.b32.xlu0 %v852, 64
      %v1735 = vpop.permute.xlu0 %1734
      %1736 = vrot.lane.b32.xlu0 %v853, 64
      %v1737 = vpop.permute.xlu0 %1736
      %1738 = vrot.lane.b32.xlu0 %v854, 64
      %v1739 = vpop.permute.xlu0 %1738
      %1740 = vrot.lane.b32.xlu0 %v855, 64
      %v1741 = vpop.permute.xlu0 %1740
      %1742 = vrot.lane.b32.xlu0 %v856, 64
      %v1743 = vpop.permute.xlu0 %1742
      %1744 = vrot.lane.b32.xlu0 %v857, 64
      %v1745 = vpop.permute.xlu0 %1744
      %1746 = vrot.lane.b32.xlu0 %v858, 64
      %v1747 = vpop.permute.xlu0 %1746
      %1748 = vrot.lane.b32.xlu0 %v859, 64
      %v1749 = vpop.permute.xlu0 %1748
      %v1782 = vmul.f32 %v1188, %v1687
      %v1783 = vmul.f32 %v1203, %v1689
      %v1784 = vmul.f32 %v1218, %v1691
      %v1785 = vmul.f32 %v1233, %v1693
      %v1786 = vmul.f32 %v1248, %v1695
      %v1787 = vmul.f32 %v1263, %v1697
      %v1788 = vmul.f32 %v1278, %v1699
      %v1789 = vmul.f32 %v1293, %v1701
      %v1790 = vmul.f32 %v1308, %v1703
      %v1791 = vmul.f32 %v1323, %v1705
      %v1792 = vmul.f32 %v1338, %v1707
      %v1793 = vmul.f32 %v1353, %v1709
      %v1794 = vmul.f32 %v1368, %v1711
      %v1795 = vmul.f32 %v1383, %v1713
      %v1796 = vmul.f32 %v1398, %v1715
      %v1797 = vmul.f32 %v1413, %v1717
      %v1798 = vmul.f32 %v1428, %v1719
      %v1799 = vmul.f32 %v1443, %v1721
      %v1800 = vmul.f32 %v1458, %v1723
      %v1801 = vmul.f32 %v1473, %v1725
      %v1802 = vmul.f32 %v1488, %v1727
      %v1803 = vmul.f32 %v1503, %v1729
      %v1804 = vmul.f32 %v1518, %v1731
      %v1805 = vmul.f32 %v1533, %v1733
      %v1806 = vmul.f32 %v1548, %v1735
      %v1807 = vmul.f32 %v1563, %v1737
      %v1808 = vmul.f32 %v1578, %v1739
      %v1809 = vmul.f32 %v1593, %v1741
      %v1810 = vmul.f32 %v1608, %v1743
      %v1811 = vmul.f32 %v1623, %v1745
      %v1812 = vmul.f32 %v1638, %v1747
      %v1813 = vmul.f32 %v1653, %v1749
      %v1814 = vpack.c.bf16 %v1783, %v1782
      %v1815 = vpack.c.bf16 %v1785, %v1784
      %v1816 = vpack.c.bf16 %v1787, %v1786
      %v1817 = vpack.c.bf16 %v1789, %v1788
      %v1818 = vpack.c.bf16 %v1791, %v1790
      %v1819 = vpack.c.bf16 %v1793, %v1792
      %v1820 = vpack.c.bf16 %v1795, %v1794
      %v1821 = vpack.c.bf16 %v1797, %v1796
      %v1822 = vpack.c.bf16 %v1799, %v1798
      %v1823 = vpack.c.bf16 %v1801, %v1800
      %v1824 = vpack.c.bf16 %v1803, %v1802
      %v1825 = vpack.c.bf16 %v1805, %v1804
      %v1826 = vpack.c.bf16 %v1807, %v1806
      %v1827 = vpack.c.bf16 %v1809, %v1808
      %v1828 = vpack.c.bf16 %v1811, %v1810
      %v1829 = vpack.c.bf16 %v1813, %v1812
      %v1830 = vld [vmem:[%s4] sm:$0xf]
      %v1831 = vld [vmem:[%s4 + $0x4] sm:$0xf]
      %v1832 = vld [vmem:[%s4 + $0x8] sm:$0xf]
      %v1833 = vld [vmem:[%s4 + $0xc] sm:$0xf]
      %v1834 = vld [vmem:[%s4 + $0x10] sm:$0xf]
      %v1835 = vld [vmem:[%s4 + $0x14] sm:$0xf]
      %v1836 = vld [vmem:[%s4 + $0x18] sm:$0xf]
      %v1837 = vld [vmem:[%s4 + $0x1c] sm:$0xf]
      %v1838 = vperm.slane %v587, 3
      %v1847 = vunpack.c.l.b16 %v1830
      %v1848 = vunpack.c.l.b16 %v1831
      %v1849 = vunpack.c.l.b16 %v1832
      %v1850 = vunpack.c.l.b16 %v1833
      %v1851 = vunpack.c.l.b16 %v1834
      %v1852 = vunpack.c.l.b16 %v1835
      %v1853 = vunpack.c.l.b16 %v1836
      %v1854 = vunpack.c.l.b16 %v1837
      %v1855 = vpack.c.b16 %v1848, %v1847
      %v1856 = vpack.c.b16 %v1850, %v1849
      %v1857 = vpack.c.b16 %v1852, %v1851
      %v1858 = vpack.c.b16 %v1854, %v1853
      %v1864 = vsel %vm620, %v1814, 0
      %v1867 = vsel %vm620, %v1815, 0
      %v1870 = vsel %vm620, %v1816, 0
      %v1873 = vsel %vm620, %v1817, 0
      %v1876 = vsel %vm620, %v1818, 0
      %v1879 = vsel %vm620, %v1819, 0
      %v1882 = vsel %vm620, %v1820, 0
      %v1885 = vsel %vm620, %v1821, 0
      %v1888 = vsel %vm620, %v1822, 0
      %v1891 = vsel %vm620, %v1823, 0
      %v1894 = vsel %vm620, %v1824, 0
      %v1897 = vsel %vm620, %v1825, 0
      %v1900 = vsel %vm620, %v1826, 0
      %v1903 = vsel %vm620, %v1827, 0
      %v1906 = vsel %vm620, %v1828, 0
      %v1909 = vsel %vm620, %v1829, 0
      %1911 = vmatpush.bf16.msra.mxu0 0
      %1912 = vmatpush.bf16.msra.mxu0 0
      %1913 = vmatpush.bf16.msra.mxu0 0
      %1914 = vmatpush.bf16.msra.mxu0 0
      %1915 = vmatpush.bf16.msra.mxu0 %v1858
      %1916 = vmatpush.bf16.msra.mxu0 %v1857
      %1917 = vmatpush.bf16.msra.mxu0 %v1856
      %1918 = vmatpush.bf16.msra.mxu0 %v1855
      %1919 = vmatmul.bf16.gmra.mxu0 %v1864
      %v1920 = vpop.f32.mrf.mxu0
      %v1921 = vadd.f32 %v1838, %v1920
      %v1922 = vpop.f32.mrf.mxu0
      %v1923 = vadd.f32 %v1838, %v1922
      %1924 = vmatmul.bf16.gmra.mxu0 %v1867
      %v1925 = vpop.f32.mrf.mxu0
      %v1926 = vadd.f32 %v1838, %v1925
      %v1927 = vpop.f32.mrf.mxu0
      %v1928 = vadd.f32 %v1838, %v1927
      %1929 = vmatmul.bf16.gmra.mxu0 %v1870
      %v1930 = vpop.f32.mrf.mxu0
      %v1931 = vadd.f32 %v1838, %v1930
      %v1932 = vpop.f32.mrf.mxu0
      %v1933 = vadd.f32 %v1838, %v1932
      %1934 = vmatmul.bf16.gmra.mxu0 %v1873
      %v1935 = vpop.f32.mrf.mxu0
      %v1936 = vadd.f32 %v1838, %v1935
      %v1937 = vpop.f32.mrf.mxu0
      %v1938 = vadd.f32 %v1838, %v1937
      %1939 = vmatmul.bf16.gmra.mxu0 %v1876
      %v1940 = vpop.f32.mrf.mxu0
      %v1941 = vadd.f32 %v1838, %v1940
      %v1942 = vpop.f32.mrf.mxu0
      %v1943 = vadd.f32 %v1838, %v1942
      %1944 = vmatmul.bf16.gmra.mxu0 %v1879
      %v1945 = vpop.f32.mrf.mxu0
      %v1946 = vadd.f32 %v1838, %v1945
      %v1947 = vpop.f32.mrf.mxu0
      %v1948 = vadd.f32 %v1838, %v1947
      %1949 = vmatmul.bf16.gmra.mxu0 %v1882
      %v1950 = vpop.f32.mrf.mxu0
      %v1951 = vadd.f32 %v1838, %v1950
      %v1952 = vpop.f32.mrf.mxu0
      %v1953 = vadd.f32 %v1838, %v1952
      %1954 = vmatmul.bf16.gmra.mxu0 %v1885
      %v1955 = vpop.f32.mrf.mxu0
      %v1956 = vadd.f32 %v1838, %v1955
      %v1957 = vpop.f32.mrf.mxu0
      %v1958 = vadd.f32 %v1838, %v1957
      %1959 = vmatmul.bf16.gmra.mxu0 %v1888
      %v1960 = vpop.f32.mrf.mxu0
      %v1961 = vadd.f32 %v1838, %v1960
      %v1962 = vpop.f32.mrf.mxu0
      %v1963 = vadd.f32 %v1838, %v1962
      %1964 = vmatmul.bf16.gmra.mxu0 %v1891
      %v1965 = vpop.f32.mrf.mxu0
      %v1966 = vadd.f32 %v1838, %v1965
      %v1967 = vpop.f32.mrf.mxu0
      %v1968 = vadd.f32 %v1838, %v1967
      %1969 = vmatmul.bf16.gmra.mxu0 %v1894
      %v1970 = vpop.f32.mrf.mxu0
      %v1971 = vadd.f32 %v1838, %v1970
      %v1972 = vpop.f32.mrf.mxu0
      %v1973 = vadd.f32 %v1838, %v1972
      %1974 = vmatmul.bf16.gmra.mxu0 %v1897
      %v1975 = vpop.f32.mrf.mxu0
      %v1976 = vadd.f32 %v1838, %v1975
      %v1977 = vpop.f32.mrf.mxu0
      %v1978 = vadd.f32 %v1838, %v1977
      %1979 = vmatmul.bf16.gmra.mxu0 %v1900
      %v1980 = vpop.f32.mrf.mxu0
      %v1981 = vadd.f32 %v1838, %v1980
      %v1982 = vpop.f32.mrf.mxu0
      %v1983 = vadd.f32 %v1838, %v1982
      %1984 = vmatmul.bf16.gmra.mxu0 %v1903
      %v1985 = vpop.f32.mrf.mxu0
      %v1986 = vadd.f32 %v1838, %v1985
      %v1987 = vpop.f32.mrf.mxu0
      %v1988 = vadd.f32 %v1838, %v1987
      %1989 = vmatmul.bf16.gmra.mxu0 %v1906
      %v1990 = vpop.f32.mrf.mxu0
      %v1991 = vadd.f32 %v1838, %v1990
      %v1992 = vpop.f32.mrf.mxu0
      %v1993 = vadd.f32 %v1838, %v1992
      %1994 = vmatmul.bf16.gmra.mxu0 %v1909
      %v1995 = vpop.f32.mrf.mxu0
      %v1996 = vadd.f32 %v1838, %v1995
      %v1997 = vpop.f32.mrf.mxu0
      %v1998 = vadd.f32 %v1838, %v1997
      %1999 = vdwg.mxu0
      %v2000 = vsel %vm538, 0.03125, 0.0
      %v2001 = vsel %vm538, 0.0, 0.03125
      %v2002 = vmul.f32 %v1921, %v1921
      %v2003 = vmul.f32 %v1923, %v1923
      %v2004 = vmul.f32 %v1926, %v1926
      %v2005 = vmul.f32 %v1928, %v1928
      %v2006 = vmul.f32 %v1931, %v1931
      %v2007 = vmul.f32 %v1933, %v1933
      %v2008 = vmul.f32 %v1936, %v1936
      %v2009 = vmul.f32 %v1938, %v1938
      %v2010 = vmul.f32 %v1941, %v1941
      %v2011 = vmul.f32 %v1943, %v1943
      %v2012 = vmul.f32 %v1946, %v1946
      %v2013 = vmul.f32 %v1948, %v1948
      %v2014 = vmul.f32 %v1951, %v1951
      %v2015 = vmul.f32 %v1953, %v1953
      %v2016 = vmul.f32 %v1956, %v1956
      %v2017 = vmul.f32 %v1958, %v1958
      %v2018 = vmul.f32 %v1961, %v1961
      %v2019 = vmul.f32 %v1963, %v1963
      %v2020 = vmul.f32 %v1966, %v1966
      %v2021 = vmul.f32 %v1968, %v1968
      %v2022 = vmul.f32 %v1971, %v1971
      %v2023 = vmul.f32 %v1973, %v1973
      %v2024 = vmul.f32 %v1976, %v1976
      %v2025 = vmul.f32 %v1978, %v1978
      %v2026 = vmul.f32 %v1981, %v1981
      %v2027 = vmul.f32 %v1983, %v1983
      %v2028 = vmul.f32 %v1986, %v1986
      %v2029 = vmul.f32 %v1988, %v1988
      %v2030 = vmul.f32 %v1991, %v1991
      %v2031 = vmul.f32 %v1993, %v1993
      %v2032 = vmul.f32 %v1996, %v1996
      %v2033 = vmul.f32 %v1998, %v1998
      %v2035 = vsel %vm620, %v1921, 0
      %v2038 = vsel %vm620, %v1923, 0
      %v2041 = vsel %vm620, %v1926, 0
      %v2044 = vsel %vm620, %v1928, 0
      %v2047 = vsel %vm620, %v1931, 0
      %v2050 = vsel %vm620, %v1933, 0
      %v2053 = vsel %vm620, %v1936, 0
      %v2056 = vsel %vm620, %v1938, 0
      %v2059 = vsel %vm620, %v1941, 0
      %v2062 = vsel %vm620, %v1943, 0
      %v2065 = vsel %vm620, %v1946, 0
      %v2068 = vsel %vm620, %v1948, 0
      %v2071 = vsel %vm620, %v1951, 0
      %v2074 = vsel %vm620, %v1953, 0
      %v2077 = vsel %vm620, %v1956, 0
      %v2080 = vsel %vm620, %v1958, 0
      %v2083 = vsel %vm620, %v1961, 0
      %v2086 = vsel %vm620, %v1963, 0
      %v2089 = vsel %vm620, %v1966, 0
      %v2092 = vsel %vm620, %v1968, 0
      %v2095 = vsel %vm620, %v1971, 0
      %v2098 = vsel %vm620, %v1973, 0
      %v2101 = vsel %vm620, %v1976, 0
      %v2104 = vsel %vm620, %v1978, 0
      %v2107 = vsel %vm620, %v1981, 0
      %v2110 = vsel %vm620, %v1983, 0
      %v2113 = vsel %vm620, %v1986, 0
      %v2116 = vsel %vm620, %v1988, 0
      %v2119 = vsel %vm620, %v1991, 0
      %v2122 = vsel %vm620, %v1993, 0
      %v2125 = vsel %vm620, %v1996, 0
      %v2128 = vsel %vm620, %v1998, 0
      %v2131 = vsel %vm620, %v2002, 0
      %v2134 = vsel %vm620, %v2003, 0
      %v2137 = vsel %vm620, %v2004, 0
      %v2140 = vsel %vm620, %v2005, 0
      %v2143 = vsel %vm620, %v2006, 0
      %v2146 = vsel %vm620, %v2007, 0
      %v2149 = vsel %vm620, %v2008, 0
      %v2152 = vsel %vm620, %v2009, 0
      %v2155 = vsel %vm620, %v2010, 0
      %v2158 = vsel %vm620, %v2011, 0
      %v2161 = vsel %vm620, %v2012, 0
      %v2164 = vsel %vm620, %v2013, 0
      %v2167 = vsel %vm620, %v2014, 0
      %v2170 = vsel %vm620, %v2015, 0
      %v2173 = vsel %vm620, %v2016, 0
      %v2176 = vsel %vm620, %v2017, 0
      %v2179 = vsel %vm620, %v2018, 0
      %v2182 = vsel %vm620, %v2019, 0
      %v2185 = vsel %vm620, %v2020, 0
      %v2188 = vsel %vm620, %v2021, 0
      %v2191 = vsel %vm620, %v2022, 0
      %v2194 = vsel %vm620, %v2023, 0
      %v2197 = vsel %vm620, %v2024, 0
      %v2200 = vsel %vm620, %v2025, 0
      %v2203 = vsel %vm620, %v2026, 0
      %v2206 = vsel %vm620, %v2027, 0
      %v2209 = vsel %vm620, %v2028, 0
      %v2212 = vsel %vm620, %v2029, 0
      %v2215 = vsel %vm620, %v2030, 0
      %v2218 = vsel %vm620, %v2031, 0
      %v2221 = vsel %vm620, %v2032, 0
      %v2224 = vsel %vm620, %v2033, 0
      %2226 = vmatpush.msra.mxu0 0.0
      %2227 = vmatpush.msra.mxu0 0.0
      %2228 = vmatpush.msra.mxu0 0.0
      %2229 = vmatpush.msra.mxu0 0.0
      %2230 = vmatpush.msra.mxu0 0.0
      %2231 = vmatpush.msra.mxu0 0.0
      %2232 = vmatpush.msra.mxu0 0.0
      %2233 = vmatpush.msra.mxu0 0.0
      %2234 = vmatpush.msra.mxu0 %v2001
      %2235 = vmatpush.msra.mxu0 %v2001
      %2236 = vmatpush.msra.mxu0 %v2001
      %2237 = vmatpush.msra.mxu0 %v2001
      %2238 = vmatpush.msra.mxu0 %v2000
      %2239 = vmatpush.msra.mxu0 %v2000
      %2240 = vmatpush.msra.mxu0 %v2000
      %2241 = vmatpush.msra.mxu0 %v2000
      %2242 = vmatmul.f32.gmra.mxu0 %v2035
      %v2243 = vpop.f32.mrf.mxu0
      %v2244 = vadd.f32 0.0, %v2243
      %2245 = vmatmul.f32.gmra.mxu0 %v2038
      %v2246 = vpop.f32.mrf.mxu0
      %v2247 = vadd.f32 0.0, %v2246
      %2248 = vmatmul.f32.gmra.mxu0 %v2041
      %v2249 = vpop.f32.mrf.mxu0
      %v2250 = vadd.f32 0.0, %v2249
      %2251 = vmatmul.f32.gmra.mxu0 %v2044
      %v2252 = vpop.f32.mrf.mxu0
      %v2253 = vadd.f32 0.0, %v2252
      %2254 = vmatmul.f32.gmra.mxu0 %v2047
      %v2255 = vpop.f32.mrf.mxu0
      %v2256 = vadd.f32 0.0, %v2255
      %2257 = vmatmul.f32.gmra.mxu0 %v2050
      %v2258 = vpop.f32.mrf.mxu0
      %v2259 = vadd.f32 0.0, %v2258
      %2260 = vmatmul.f32.gmra.mxu0 %v2053
      %v2261 = vpop.f32.mrf.mxu0
      %v2262 = vadd.f32 0.0, %v2261
      %2263 = vmatmul.f32.gmra.mxu0 %v2056
      %v2264 = vpop.f32.mrf.mxu0
      %v2265 = vadd.f32 0.0, %v2264
      %2266 = vmatmul.f32.gmra.mxu0 %v2059
      %v2267 = vpop.f32.mrf.mxu0
      %v2268 = vadd.f32 0.0, %v2267
      %2269 = vmatmul.f32.gmra.mxu0 %v2062
      %v2270 = vpop.f32.mrf.mxu0
      %v2271 = vadd.f32 0.0, %v2270
      %2272 = vmatmul.f32.gmra.mxu0 %v2065
      %v2273 = vpop.f32.mrf.mxu0
      %v2274 = vadd.f32 0.0, %v2273
      %2275 = vmatmul.f32.gmra.mxu0 %v2068
      %v2276 = vpop.f32.mrf.mxu0
      %v2277 = vadd.f32 0.0, %v2276
      %2278 = vmatmul.f32.gmra.mxu0 %v2071
      %v2279 = vpop.f32.mrf.mxu0
      %v2280 = vadd.f32 0.0, %v2279
      %2281 = vmatmul.f32.gmra.mxu0 %v2074
      %v2282 = vpop.f32.mrf.mxu0
      %v2283 = vadd.f32 0.0, %v2282
      %2284 = vmatmul.f32.gmra.mxu0 %v2077
      %v2285 = vpop.f32.mrf.mxu0
      %v2286 = vadd.f32 0.0, %v2285
      %2287 = vmatmul.f32.gmra.mxu0 %v2080
      %v2288 = vpop.f32.mrf.mxu0
      %v2289 = vadd.f32 0.0, %v2288
      %2290 = vmatmul.f32.gmra.mxu0 %v2083
      %v2291 = vpop.f32.mrf.mxu0
      %v2292 = vadd.f32 0.0, %v2291
      %2293 = vmatmul.f32.gmra.mxu0 %v2086
      %v2294 = vpop.f32.mrf.mxu0
      %v2295 = vadd.f32 0.0, %v2294
      %2296 = vmatmul.f32.gmra.mxu0 %v2089
      %v2297 = vpop.f32.mrf.mxu0
      %v2298 = vadd.f32 0.0, %v2297
      %2299 = vmatmul.f32.gmra.mxu0 %v2092
      %v2300 = vpop.f32.mrf.mxu0
      %v2301 = vadd.f32 0.0, %v2300
      %2302 = vmatmul.f32.gmra.mxu0 %v2095
      %v2303 = vpop.f32.mrf.mxu0
      %v2304 = vadd.f32 0.0, %v2303
      %2305 = vmatmul.f32.gmra.mxu0 %v2098
      %v2306 = vpop.f32.mrf.mxu0
      %v2307 = vadd.f32 0.0, %v2306
      %2308 = vmatmul.f32.gmra.mxu0 %v2101
      %v2309 = vpop.f32.mrf.mxu0
      %v2310 = vadd.f32 0.0, %v2309
      %2311 = vmatmul.f32.gmra.mxu0 %v2104
      %v2312 = vpop.f32.mrf.mxu0
      %v2313 = vadd.f32 0.0, %v2312
      %2314 = vmatmul.f32.gmra.mxu0 %v2107
      %v2315 = vpop.f32.mrf.mxu0
      %v2316 = vadd.f32 0.0, %v2315
      %2317 = vmatmul.f32.gmra.mxu0 %v2110
      %v2318 = vpop.f32.mrf.mxu0
      %v2319 = vadd.f32 0.0, %v2318
      %2320 = vmatmul.f32.gmra.mxu0 %v2113
      %v2321 = vpop.f32.mrf.mxu0
      %v2322 = vadd.f32 0.0, %v2321
      %2323 = vmatmul.f32.gmra.mxu0 %v2116
      %v2324 = vpop.f32.mrf.mxu0
      %v2325 = vadd.f32 0.0, %v2324
      %2326 = vmatmul.f32.gmra.mxu0 %v2119
      %v2327 = vpop.f32.mrf.mxu0
      %v2328 = vadd.f32 0.0, %v2327
      %2329 = vmatmul.f32.gmra.mxu0 %v2122
      %v2330 = vpop.f32.mrf.mxu0
      %v2331 = vadd.f32 0.0, %v2330
      %2332 = vmatmul.f32.gmra.mxu0 %v2125
      %v2333 = vpop.f32.mrf.mxu0
      %v2334 = vadd.f32 0.0, %v2333
      %2335 = vmatmul.f32.gmra.mxu0 %v2128
      %v2336 = vpop.f32.mrf.mxu0
      %v2337 = vadd.f32 0.0, %v2336
      %2338 = vmatmul.f32.gmra.mxu0 %v2131
      %v2339 = vpop.f32.mrf.mxu0
      %v2340 = vadd.f32 0.0, %v2339
      %2341 = vmatmul.f32.gmra.mxu0 %v2134
      %v2342 = vpop.f32.mrf.mxu0
      %v2343 = vadd.f32 0.0, %v2342
      %2344 = vmatmul.f32.gmra.mxu0 %v2137
      %v2345 = vpop.f32.mrf.mxu0
      %v2346 = vadd.f32 0.0, %v2345
      %2347 = vmatmul.f32.gmra.mxu0 %v2140
      %v2348 = vpop.f32.mrf.mxu0
      %v2349 = vadd.f32 0.0, %v2348
      %2350 = vmatmul.f32.gmra.mxu0 %v2143
      %v2351 = vpop.f32.mrf.mxu0
      %v2352 = vadd.f32 0.0, %v2351
      %2353 = vmatmul.f32.gmra.mxu0 %v2146
      %v2354 = vpop.f32.mrf.mxu0
      %v2355 = vadd.f32 0.0, %v2354
      %2356 = vmatmul.f32.gmra.mxu0 %v2149
      %v2357 = vpop.f32.mrf.mxu0
      %v2358 = vadd.f32 0.0, %v2357
      %2359 = vmatmul.f32.gmra.mxu0 %v2152
      %v2360 = vpop.f32.mrf.mxu0
      %v2361 = vadd.f32 0.0, %v2360
      %2362 = vmatmul.f32.gmra.mxu0 %v2155
      %v2363 = vpop.f32.mrf.mxu0
      %v2364 = vadd.f32 0.0, %v2363
      %2365 = vmatmul.f32.gmra.mxu0 %v2158
      %v2366 = vpop.f32.mrf.mxu0
      %v2367 = vadd.f32 0.0, %v2366
      %2368 = vmatmul.f32.gmra.mxu0 %v2161
      %v2369 = vpop.f32.mrf.mxu0
      %v2370 = vadd.f32 0.0, %v2369
      %2371 = vmatmul.f32.gmra.mxu0 %v2164
      %v2372 = vpop.f32.mrf.mxu0
      %v2373 = vadd.f32 0.0, %v2372
      %2374 = vmatmul.f32.gmra.mxu0 %v2167
      %v2375 = vpop.f32.mrf.mxu0
      %v2376 = vadd.f32 0.0, %v2375
      %2377 = vmatmul.f32.gmra.mxu0 %v2170
      %v2378 = vpop.f32.mrf.mxu0
      %v2379 = vadd.f32 0.0, %v2378
      %2380 = vmatmul.f32.gmra.mxu0 %v2173
      %v2381 = vpop.f32.mrf.mxu0
      %v2382 = vadd.f32 0.0, %v2381
      %2383 = vmatmul.f32.gmra.mxu0 %v2176
      %v2384 = vpop.f32.mrf.mxu0
      %v2385 = vadd.f32 0.0, %v2384
      %2386 = vmatmul.f32.gmra.mxu0 %v2179
      %v2387 = vpop.f32.mrf.mxu0
      %v2388 = vadd.f32 0.0, %v2387
      %2389 = vmatmul.f32.gmra.mxu0 %v2182
      %v2390 = vpop.f32.mrf.mxu0
      %v2391 = vadd.f32 0.0, %v2390
      %2392 = vmatmul.f32.gmra.mxu0 %v2185
      %v2393 = vpop.f32.mrf.mxu0
      %v2394 = vadd.f32 0.0, %v2393
      %2395 = vmatmul.f32.gmra.mxu0 %v2188
      %v2396 = vpop.f32.mrf.mxu0
      %v2397 = vadd.f32 0.0, %v2396
      %2398 = vmatmul.f32.gmra.mxu0 %v2191
      %v2399 = vpop.f32.mrf.mxu0
      %v2400 = vadd.f32 0.0, %v2399
      %2401 = vmatmul.f32.gmra.mxu0 %v2194
      %v2402 = vpop.f32.mrf.mxu0
      %v2403 = vadd.f32 0.0, %v2402
      %2404 = vmatmul.f32.gmra.mxu0 %v2197
      %v2405 = vpop.f32.mrf.mxu0
      %v2406 = vadd.f32 0.0, %v2405
      %2407 = vmatmul.f32.gmra.mxu0 %v2200
      %v2408 = vpop.f32.mrf.mxu0
      %v2409 = vadd.f32 0.0, %v2408
      %2410 = vmatmul.f32.gmra.mxu0 %v2203
      %v2411 = vpop.f32.mrf.mxu0
      %v2412 = vadd.f32 0.0, %v2411
      %2413 = vmatmul.f32.gmra.mxu0 %v2206
      %v2414 = vpop.f32.mrf.mxu0
      %v2415 = vadd.f32 0.0, %v2414
      %2416 = vmatmul.f32.gmra.mxu0 %v2209
      %v2417 = vpop.f32.mrf.mxu0
      %v2418 = vadd.f32 0.0, %v2417
      %2419 = vmatmul.f32.gmra.mxu0 %v2212
      %v2420 = vpop.f32.mrf.mxu0
      %v2421 = vadd.f32 0.0, %v2420
      %2422 = vmatmul.f32.gmra.mxu0 %v2215
      %v2423 = vpop.f32.mrf.mxu0
      %v2424 = vadd.f32 0.0, %v2423
      %2425 = vmatmul.f32.gmra.mxu0 %v2218
      %v2426 = vpop.f32.mrf.mxu0
      %v2427 = vadd.f32 0.0, %v2426
      %2428 = vmatmul.f32.gmra.mxu0 %v2221
      %v2429 = vpop.f32.mrf.mxu0
      %v2430 = vadd.f32 0.0, %v2429
      %2431 = vmatmul.f32.gmra.mxu0 %v2224
      %v2432 = vpop.f32.mrf.mxu0
      %v2433 = vadd.f32 0.0, %v2432
      %2434 = vdwg.mxu0
      %v2435 = vmul.f32 %v2244, %v2244
      %v2436 = vmul.f32 %v2247, %v2247
      %v2437 = vmul.f32 %v2250, %v2250
      %v2438 = vmul.f32 %v2253, %v2253
      %v2439 = vmul.f32 %v2256, %v2256
      %v2440 = vmul.f32 %v2259, %v2259
      %v2441 = vmul.f32 %v2262, %v2262
      %v2442 = vmul.f32 %v2265, %v2265
      %v2443 = vmul.f32 %v2268, %v2268
      %v2444 = vmul.f32 %v2271, %v2271
      %v2445 = vmul.f32 %v2274, %v2274
      %v2446 = vmul.f32 %v2277, %v2277
      %v2447 = vmul.f32 %v2280, %v2280
      %v2448 = vmul.f32 %v2283, %v2283
      %v2449 = vmul.f32 %v2286, %v2286
      %v2450 = vmul.f32 %v2289, %v2289
      %v2451 = vmul.f32 %v2292, %v2292
      %v2452 = vmul.f32 %v2295, %v2295
      %v2453 = vmul.f32 %v2298, %v2298
      %v2454 = vmul.f32 %v2301, %v2301
      %v2455 = vmul.f32 %v2304, %v2304
      %v2456 = vmul.f32 %v2307, %v2307
      %v2457 = vmul.f32 %v2310, %v2310
      %v2458 = vmul.f32 %v2313, %v2313
      %v2459 = vmul.f32 %v2316, %v2316
      %v2460 = vmul.f32 %v2319, %v2319
      %v2461 = vmul.f32 %v2322, %v2322
      %v2462 = vmul.f32 %v2325, %v2325
      %v2463 = vmul.f32 %v2328, %v2328
      %v2464 = vmul.f32 %v2331, %v2331
      %v2465 = vmul.f32 %v2334, %v2334
      %v2466 = vmul.f32 %v2337, %v2337
      %v2467 = vsub.f32 %v2340, %v2435
      %v2468 = vsub.f32 %v2343, %v2436
      %v2469 = vsub.f32 %v2346, %v2437
      %v2470 = vsub.f32 %v2349, %v2438
      %v2471 = vsub.f32 %v2352, %v2439
      %v2472 = vsub.f32 %v2355, %v2440
      %v2473 = vsub.f32 %v2358, %v2441
      %v2474 = vsub.f32 %v2361, %v2442
      %v2475 = vsub.f32 %v2364, %v2443
      %v2476 = vsub.f32 %v2367, %v2444
      %v2477 = vsub.f32 %v2370, %v2445
      %v2478 = vsub.f32 %v2373, %v2446
      %v2479 = vsub.f32 %v2376, %v2447
      %v2480 = vsub.f32 %v2379, %v2448
      %v2481 = vsub.f32 %v2382, %v2449
      %v2482 = vsub.f32 %v2385, %v2450
      %v2483 = vsub.f32 %v2388, %v2451
      %v2484 = vsub.f32 %v2391, %v2452
      %v2485 = vsub.f32 %v2394, %v2453
      %v2486 = vsub.f32 %v2397, %v2454
      %v2487 = vsub.f32 %v2400, %v2455
      %v2488 = vsub.f32 %v2403, %v2456
      %v2489 = vsub.f32 %v2406, %v2457
      %v2490 = vsub.f32 %v2409, %v2458
      %v2491 = vsub.f32 %v2412, %v2459
      %v2492 = vsub.f32 %v2415, %v2460
      %v2493 = vsub.f32 %v2418, %v2461
      %v2494 = vsub.f32 %v2421, %v2462
      %v2495 = vsub.f32 %v2424, %v2463
      %v2496 = vsub.f32 %v2427, %v2464
      %v2497 = vsub.f32 %v2430, %v2465
      %v2498 = vsub.f32 %v2433, %v2466
      %v2499 = vsub.f32 %v1921, %v2244
      %v2500 = vsub.f32 %v1923, %v2247
      %v2501 = vsub.f32 %v1926, %v2250
      %v2502 = vsub.f32 %v1928, %v2253
      %v2503 = vsub.f32 %v1931, %v2256
      %v2504 = vsub.f32 %v1933, %v2259
      %v2505 = vsub.f32 %v1936, %v2262
      %v2506 = vsub.f32 %v1938, %v2265
      %v2507 = vsub.f32 %v1941, %v2268
      %v2508 = vsub.f32 %v1943, %v2271
      %v2509 = vsub.f32 %v1946, %v2274
      %v2510 = vsub.f32 %v1948, %v2277
      %v2511 = vsub.f32 %v1951, %v2280
      %v2512 = vsub.f32 %v1953, %v2283
      %v2513 = vsub.f32 %v1956, %v2286
      %v2514 = vsub.f32 %v1958, %v2289
      %v2515 = vsub.f32 %v1961, %v2292
      %v2516 = vsub.f32 %v1963, %v2295
      %v2517 = vsub.f32 %v1966, %v2298
      %v2518 = vsub.f32 %v1968, %v2301
      %v2519 = vsub.f32 %v1971, %v2304
      %v2520 = vsub.f32 %v1973, %v2307
      %v2521 = vsub.f32 %v1976, %v2310
      %v2522 = vsub.f32 %v1978, %v2313
      %v2523 = vsub.f32 %v1981, %v2316
      %v2524 = vsub.f32 %v1983, %v2319
      %v2525 = vsub.f32 %v1986, %v2322
      %v2526 = vsub.f32 %v1988, %v2325
      %v2527 = vsub.f32 %v1991, %v2328
      %v2528 = vsub.f32 %v1993, %v2331
      %v2529 = vsub.f32 %v1996, %v2334
      %v2530 = vsub.f32 %v1998, %v2337
      %v2531 = vadd.f32 %v2467, 1e-05
      %v2532 = vadd.f32 %v2468, 1e-05
      %v2533 = vadd.f32 %v2469, 1e-05
      %v2534 = vadd.f32 %v2470, 1e-05
      %v2535 = vadd.f32 %v2471, 1e-05
      %v2536 = vadd.f32 %v2472, 1e-05
      %v2537 = vadd.f32 %v2473, 1e-05
      %v2538 = vadd.f32 %v2474, 1e-05
      %v2539 = vadd.f32 %v2475, 1e-05
      %v2540 = vadd.f32 %v2476, 1e-05
      %v2541 = vadd.f32 %v2477, 1e-05
      %v2542 = vadd.f32 %v2478, 1e-05
      %v2543 = vadd.f32 %v2479, 1e-05
      %v2544 = vadd.f32 %v2480, 1e-05
      %v2545 = vadd.f32 %v2481, 1e-05
      %v2546 = vadd.f32 %v2482, 1e-05
      %v2547 = vadd.f32 %v2483, 1e-05
      %v2548 = vadd.f32 %v2484, 1e-05
      %v2549 = vadd.f32 %v2485, 1e-05
      %v2550 = vadd.f32 %v2486, 1e-05
      %v2551 = vadd.f32 %v2487, 1e-05
      %v2552 = vadd.f32 %v2488, 1e-05
      %v2553 = vadd.f32 %v2489, 1e-05
      %v2554 = vadd.f32 %v2490, 1e-05
      %v2555 = vadd.f32 %v2491, 1e-05
      %v2556 = vadd.f32 %v2492, 1e-05
      %v2557 = vadd.f32 %v2493, 1e-05
      %v2558 = vadd.f32 %v2494, 1e-05
      %v2559 = vadd.f32 %v2495, 1e-05
      %v2560 = vadd.f32 %v2496, 1e-05
      %v2561 = vadd.f32 %v2497, 1e-05
      %v2562 = vadd.f32 %v2498, 1e-05
      %v2563 = vrsqrt.pop %v2531
      %v2564 = vmul.f32 %v2563, %v2531
      %v2565 = vmul.f32 %v2564, %v2563
      %v2566 = vmul.f32 0.5, %v2565
      %v2567 = vsub.f32 1.5, %v2566
      %v2568 = vmul.f32 %v2563, %v2567
      %vm2569 = vweird.f32 %v2531
      %vm2570 = vweird.f32 %v2563
      %vm2571 = vmor %vm2569, %vm2570
      %v2572 = vsel %vm2571, %v2563, %v2568
      %v2573 = vrsqrt.pop %v2532
      %v2574 = vmul.f32 %v2573, %v2532
      %v2575 = vmul.f32 %v2574, %v2573
      %v2576 = vmul.f32 0.5, %v2575
      %v2577 = vsub.f32 1.5, %v2576
      %v2578 = vmul.f32 %v2573, %v2577
      %vm2579 = vweird.f32 %v2532
      %vm2580 = vweird.f32 %v2573
      %vm2581 = vmor %vm2579, %vm2580
      %v2582 = vsel %vm2581, %v2573, %v2578
      %v2583 = vrsqrt.pop %v2533
      %v2584 = vmul.f32 %v2583, %v2533
      %v2585 = vmul.f32 %v2584, %v2583
      %v2586 = vmul.f32 0.5, %v2585
      %v2587 = vsub.f32 1.5, %v2586
      %v2588 = vmul.f32 %v2583, %v2587
      %vm2589 = vweird.f32 %v2533
      %vm2590 = vweird.f32 %v2583
      %vm2591 = vmor %vm2589, %vm2590
      %v2592 = vsel %vm2591, %v2583, %v2588
      %v2593 = vrsqrt.pop %v2534
      %v2594 = vmul.f32 %v2593, %v2534
      %v2595 = vmul.f32 %v2594, %v2593
      %v2596 = vmul.f32 0.5, %v2595
      %v2597 = vsub.f32 1.5, %v2596
      %v2598 = vmul.f32 %v2593, %v2597
      %vm2599 = vweird.f32 %v2534
      %vm2600 = vweird.f32 %v2593
      %vm2601 = vmor %vm2599, %vm2600
      %v2602 = vsel %vm2601, %v2593, %v2598
      %v2603 = vrsqrt.pop %v2535
      %v2604 = vmul.f32 %v2603, %v2535
      %v2605 = vmul.f32 %v2604, %v2603
      %v2606 = vmul.f32 0.5, %v2605
      %v2607 = vsub.f32 1.5, %v2606
      %v2608 = vmul.f32 %v2603, %v2607
      %vm2609 = vweird.f32 %v2535
      %vm2610 = vweird.f32 %v2603
      %vm2611 = vmor %vm2609, %vm2610
      %v2612 = vsel %vm2611, %v2603, %v2608
      %v2613 = vrsqrt.pop %v2536
      %v2614 = vmul.f32 %v2613, %v2536
      %v2615 = vmul.f32 %v2614, %v2613
      %v2616 = vmul.f32 0.5, %v2615
      %v2617 = vsub.f32 1.5, %v2616
      %v2618 = vmul.f32 %v2613, %v2617
      %vm2619 = vweird.f32 %v2536
      %vm2620 = vweird.f32 %v2613
      %vm2621 = vmor %vm2619, %vm2620
      %v2622 = vsel %vm2621, %v2613, %v2618
      %v2623 = vrsqrt.pop %v2537
      %v2624 = vmul.f32 %v2623, %v2537
      %v2625 = vmul.f32 %v2624, %v2623
      %v2626 = vmul.f32 0.5, %v2625
      %v2627 = vsub.f32 1.5, %v2626
      %v2628 = vmul.f32 %v2623, %v2627
      %vm2629 = vweird.f32 %v2537
      %vm2630 = vweird.f32 %v2623
      %vm2631 = vmor %vm2629, %vm2630
      %v2632 = vsel %vm2631, %v2623, %v2628
      %v2633 = vrsqrt.pop %v2538
      %v2634 = vmul.f32 %v2633, %v2538
      %v2635 = vmul.f32 %v2634, %v2633
      %v2636 = vmul.f32 0.5, %v2635
      %v2637 = vsub.f32 1.5, %v2636
      %v2638 = vmul.f32 %v2633, %v2637
      %vm2639 = vweird.f32 %v2538
      %vm2640 = vweird.f32 %v2633
      %vm2641 = vmor %vm2639, %vm2640
      %v2642 = vsel %vm2641, %v2633, %v2638
      %v2643 = vrsqrt.pop %v2539
      %v2644 = vmul.f32 %v2643, %v2539
      %v2645 = vmul.f32 %v2644, %v2643
      %v2646 = vmul.f32 0.5, %v2645
      %v2647 = vsub.f32 1.5, %v2646
      %v2648 = vmul.f32 %v2643, %v2647
      %vm2649 = vweird.f32 %v2539
      %vm2650 = vweird.f32 %v2643
      %vm2651 = vmor %vm2649, %vm2650
      %v2652 = vsel %vm2651, %v2643, %v2648
      %v2653 = vrsqrt.pop %v2540
      %v2654 = vmul.f32 %v2653, %v2540
      %v2655 = vmul.f32 %v2654, %v2653
      %v2656 = vmul.f32 0.5, %v2655
      %v2657 = vsub.f32 1.5, %v2656
      %v2658 = vmul.f32 %v2653, %v2657
      %vm2659 = vweird.f32 %v2540
      %vm2660 = vweird.f32 %v2653
      %vm2661 = vmor %vm2659, %vm2660
      %v2662 = vsel %vm2661, %v2653, %v2658
      %v2663 = vrsqrt.pop %v2541
      %v2664 = vmul.f32 %v2663, %v2541
      %v2665 = vmul.f32 %v2664, %v2663
      %v2666 = vmul.f32 0.5, %v2665
      %v2667 = vsub.f32 1.5, %v2666
      %v2668 = vmul.f32 %v2663, %v2667
      %vm2669 = vweird.f32 %v2541
      %vm2670 = vweird.f32 %v2663
      %vm2671 = vmor %vm2669, %vm2670
      %v2672 = vsel %vm2671, %v2663, %v2668
      %v2673 = vrsqrt.pop %v2542
      %v2674 = vmul.f32 %v2673, %v2542
      %v2675 = vmul.f32 %v2674, %v2673
      %v2676 = vmul.f32 0.5, %v2675
      %v2677 = vsub.f32 1.5, %v2676
      %v2678 = vmul.f32 %v2673, %v2677
      %vm2679 = vweird.f32 %v2542
      %vm2680 = vweird.f32 %v2673
      %vm2681 = vmor %vm2679, %vm2680
      %v2682 = vsel %vm2681, %v2673, %v2678
      %v2683 = vrsqrt.pop %v2543
      %v2684 = vmul.f32 %v2683, %v2543
      %v2685 = vmul.f32 %v2684, %v2683
      %v2686 = vmul.f32 0.5, %v2685
      %v2687 = vsub.f32 1.5, %v2686
      %v2688 = vmul.f32 %v2683, %v2687
      %vm2689 = vweird.f32 %v2543
      %vm2690 = vweird.f32 %v2683
      %vm2691 = vmor %vm2689, %vm2690
      %v2692 = vsel %vm2691, %v2683, %v2688
      %v2693 = vrsqrt.pop %v2544
      %v2694 = vmul.f32 %v2693, %v2544
      %v2695 = vmul.f32 %v2694, %v2693
      %v2696 = vmul.f32 0.5, %v2695
      %v2697 = vsub.f32 1.5, %v2696
      %v2698 = vmul.f32 %v2693, %v2697
      %vm2699 = vweird.f32 %v2544
      %vm2700 = vweird.f32 %v2693
      %vm2701 = vmor %vm2699, %vm2700
      %v2702 = vsel %vm2701, %v2693, %v2698
      %v2703 = vrsqrt.pop %v2545
      %v2704 = vmul.f32 %v2703, %v2545
      %v2705 = vmul.f32 %v2704, %v2703
      %v2706 = vmul.f32 0.5, %v2705
      %v2707 = vsub.f32 1.5, %v2706
      %v2708 = vmul.f32 %v2703, %v2707
      %vm2709 = vweird.f32 %v2545
      %vm2710 = vweird.f32 %v2703
      %vm2711 = vmor %vm2709, %vm2710
      %v2712 = vsel %vm2711, %v2703, %v2708
      %v2713 = vrsqrt.pop %v2546
      %v2714 = vmul.f32 %v2713, %v2546
      %v2715 = vmul.f32 %v2714, %v2713
      %v2716 = vmul.f32 0.5, %v2715
      %v2717 = vsub.f32 1.5, %v2716
      %v2718 = vmul.f32 %v2713, %v2717
      %vm2719 = vweird.f32 %v2546
      %vm2720 = vweird.f32 %v2713
      %vm2721 = vmor %vm2719, %vm2720
      %v2722 = vsel %vm2721, %v2713, %v2718
      %v2723 = vrsqrt.pop %v2547
      %v2724 = vmul.f32 %v2723, %v2547
      %v2725 = vmul.f32 %v2724, %v2723
      %v2726 = vmul.f32 0.5, %v2725
      %v2727 = vsub.f32 1.5, %v2726
      %v2728 = vmul.f32 %v2723, %v2727
      %vm2729 = vweird.f32 %v2547
      %vm2730 = vweird.f32 %v2723
      %vm2731 = vmor %vm2729, %vm2730
      %v2732 = vsel %vm2731, %v2723, %v2728
      %v2733 = vrsqrt.pop %v2548
      %v2734 = vmul.f32 %v2733, %v2548
      %v2735 = vmul.f32 %v2734, %v2733
      %v2736 = vmul.f32 0.5, %v2735
      %v2737 = vsub.f32 1.5, %v2736
      %v2738 = vmul.f32 %v2733, %v2737
      %vm2739 = vweird.f32 %v2548
      %vm2740 = vweird.f32 %v2733
      %vm2741 = vmor %vm2739, %vm2740
      %v2742 = vsel %vm2741, %v2733, %v2738
      %v2743 = vrsqrt.pop %v2549
      %v2744 = vmul.f32 %v2743, %v2549
      %v2745 = vmul.f32 %v2744, %v2743
      %v2746 = vmul.f32 0.5, %v2745
      %v2747 = vsub.f32 1.5, %v2746
      %v2748 = vmul.f32 %v2743, %v2747
      %vm2749 = vweird.f32 %v2549
      %vm2750 = vweird.f32 %v2743
      %vm2751 = vmor %vm2749, %vm2750
      %v2752 = vsel %vm2751, %v2743, %v2748
      %v2753 = vrsqrt.pop %v2550
      %v2754 = vmul.f32 %v2753, %v2550
      %v2755 = vmul.f32 %v2754, %v2753
      %v2756 = vmul.f32 0.5, %v2755
      %v2757 = vsub.f32 1.5, %v2756
      %v2758 = vmul.f32 %v2753, %v2757
      %vm2759 = vweird.f32 %v2550
      %vm2760 = vweird.f32 %v2753
      %vm2761 = vmor %vm2759, %vm2760
      %v2762 = vsel %vm2761, %v2753, %v2758
      %v2763 = vrsqrt.pop %v2551
      %v2764 = vmul.f32 %v2763, %v2551
      %v2765 = vmul.f32 %v2764, %v2763
      %v2766 = vmul.f32 0.5, %v2765
      %v2767 = vsub.f32 1.5, %v2766
      %v2768 = vmul.f32 %v2763, %v2767
      %vm2769 = vweird.f32 %v2551
      %vm2770 = vweird.f32 %v2763
      %vm2771 = vmor %vm2769, %vm2770
      %v2772 = vsel %vm2771, %v2763, %v2768
      %v2773 = vrsqrt.pop %v2552
      %v2774 = vmul.f32 %v2773, %v2552
      %v2775 = vmul.f32 %v2774, %v2773
      %v2776 = vmul.f32 0.5, %v2775
      %v2777 = vsub.f32 1.5, %v2776
      %v2778 = vmul.f32 %v2773, %v2777
      %vm2779 = vweird.f32 %v2552
      %vm2780 = vweird.f32 %v2773
      %vm2781 = vmor %vm2779, %vm2780
      %v2782 = vsel %vm2781, %v2773, %v2778
      %v2783 = vrsqrt.pop %v2553
      %v2784 = vmul.f32 %v2783, %v2553
      %v2785 = vmul.f32 %v2784, %v2783
      %v2786 = vmul.f32 0.5, %v2785
      %v2787 = vsub.f32 1.5, %v2786
      %v2788 = vmul.f32 %v2783, %v2787
      %vm2789 = vweird.f32 %v2553
      %vm2790 = vweird.f32 %v2783
      %vm2791 = vmor %vm2789, %vm2790
      %v2792 = vsel %vm2791, %v2783, %v2788
      %v2793 = vrsqrt.pop %v2554
      %v2794 = vmul.f32 %v2793, %v2554
      %v2795 = vmul.f32 %v2794, %v2793
      %v2796 = vmul.f32 0.5, %v2795
      %v2797 = vsub.f32 1.5, %v2796
      %v2798 = vmul.f32 %v2793, %v2797
      %vm2799 = vweird.f32 %v2554
      %vm2800 = vweird.f32 %v2793
      %vm2801 = vmor %vm2799, %vm2800
      %v2802 = vsel %vm2801, %v2793, %v2798
      %v2803 = vrsqrt.pop %v2555
      %v2804 = vmul.f32 %v2803, %v2555
      %v2805 = vmul.f32 %v2804, %v2803
      %v2806 = vmul.f32 0.5, %v2805
      %v2807 = vsub.f32 1.5, %v2806
      %v2808 = vmul.f32 %v2803, %v2807
      %vm2809 = vweird.f32 %v2555
      %vm2810 = vweird.f32 %v2803
      %vm2811 = vmor %vm2809, %vm2810
      %v2812 = vsel %vm2811, %v2803, %v2808
      %v2813 = vrsqrt.pop %v2556
      %v2814 = vmul.f32 %v2813, %v2556
      %v2815 = vmul.f32 %v2814, %v2813
      %v2816 = vmul.f32 0.5, %v2815
      %v2817 = vsub.f32 1.5, %v2816
      %v2818 = vmul.f32 %v2813, %v2817
      %vm2819 = vweird.f32 %v2556
      %vm2820 = vweird.f32 %v2813
      %vm2821 = vmor %vm2819, %vm2820
      %v2822 = vsel %vm2821, %v2813, %v2818
      %v2823 = vrsqrt.pop %v2557
      %v2824 = vmul.f32 %v2823, %v2557
      %v2825 = vmul.f32 %v2824, %v2823
      %v2826 = vmul.f32 0.5, %v2825
      %v2827 = vsub.f32 1.5, %v2826
      %v2828 = vmul.f32 %v2823, %v2827
      %vm2829 = vweird.f32 %v2557
      %vm2830 = vweird.f32 %v2823
      %vm2831 = vmor %vm2829, %vm2830
      %v2832 = vsel %vm2831, %v2823, %v2828
      %v2833 = vrsqrt.pop %v2558
      %v2834 = vmul.f32 %v2833, %v2558
      %v2835 = vmul.f32 %v2834, %v2833
      %v2836 = vmul.f32 0.5, %v2835
      %v2837 = vsub.f32 1.5, %v2836
      %v2838 = vmul.f32 %v2833, %v2837
      %vm2839 = vweird.f32 %v2558
      %vm2840 = vweird.f32 %v2833
      %vm2841 = vmor %vm2839, %vm2840
      %v2842 = vsel %vm2841, %v2833, %v2838
      %v2843 = vrsqrt.pop %v2559
      %v2844 = vmul.f32 %v2843, %v2559
      %v2845 = vmul.f32 %v2844, %v2843
      %v2846 = vmul.f32 0.5, %v2845
      %v2847 = vsub.f32 1.5, %v2846
      %v2848 = vmul.f32 %v2843, %v2847
      %vm2849 = vweird.f32 %v2559
      %vm2850 = vweird.f32 %v2843
      %vm2851 = vmor %vm2849, %vm2850
      %v2852 = vsel %vm2851, %v2843, %v2848
      %v2853 = vrsqrt.pop %v2560
      %v2854 = vmul.f32 %v2853, %v2560
      %v2855 = vmul.f32 %v2854, %v2853
      %v2856 = vmul.f32 0.5, %v2855
      %v2857 = vsub.f32 1.5, %v2856
      %v2858 = vmul.f32 %v2853, %v2857
      %vm2859 = vweird.f32 %v2560
      %vm2860 = vweird.f32 %v2853
      %vm2861 = vmor %vm2859, %vm2860
      %v2862 = vsel %vm2861, %v2853, %v2858
      %v2863 = vrsqrt.pop %v2561
      %v2864 = vmul.f32 %v2863, %v2561
      %v2865 = vmul.f32 %v2864, %v2863
      %v2866 = vmul.f32 0.5, %v2865
      %v2867 = vsub.f32 1.5, %v2866
      %v2868 = vmul.f32 %v2863, %v2867
      %vm2869 = vweird.f32 %v2561
      %vm2870 = vweird.f32 %v2863
      %vm2871 = vmor %vm2869, %vm2870
      %v2872 = vsel %vm2871, %v2863, %v2868
      %v2873 = vrsqrt.pop %v2562
      %v2874 = vmul.f32 %v2873, %v2562
      %v2875 = vmul.f32 %v2874, %v2873
      %v2876 = vmul.f32 0.5, %v2875
      %v2877 = vsub.f32 1.5, %v2876
      %v2878 = vmul.f32 %v2873, %v2877
      %vm2879 = vweird.f32 %v2562
      %vm2880 = vweird.f32 %v2873
      %vm2881 = vmor %vm2879, %vm2880
      %v2882 = vsel %vm2881, %v2873, %v2878
      %v2883 = vmul.f32 %v2499, %v2572
      %v2884 = vmul.f32 %v2500, %v2582
      %v2885 = vmul.f32 %v2501, %v2592
      %v2886 = vmul.f32 %v2502, %v2602
      %v2887 = vmul.f32 %v2503, %v2612
      %v2888 = vmul.f32 %v2504, %v2622
      %v2889 = vmul.f32 %v2505, %v2632
      %v2890 = vmul.f32 %v2506, %v2642
      %v2891 = vmul.f32 %v2507, %v2652
      %v2892 = vmul.f32 %v2508, %v2662
      %v2893 = vmul.f32 %v2509, %v2672
      %v2894 = vmul.f32 %v2510, %v2682
      %v2895 = vmul.f32 %v2511, %v2692
      %v2896 = vmul.f32 %v2512, %v2702
      %v2897 = vmul.f32 %v2513, %v2712
      %v2898 = vmul.f32 %v2514, %v2722
      %v2899 = vmul.f32 %v2515, %v2732
      %v2900 = vmul.f32 %v2516, %v2742
      %v2901 = vmul.f32 %v2517, %v2752
      %v2902 = vmul.f32 %v2518, %v2762
      %v2903 = vmul.f32 %v2519, %v2772
      %v2904 = vmul.f32 %v2520, %v2782
      %v2905 = vmul.f32 %v2521, %v2792
      %v2906 = vmul.f32 %v2522, %v2802
      %v2907 = vmul.f32 %v2523, %v2812
      %v2908 = vmul.f32 %v2524, %v2822
      %v2909 = vmul.f32 %v2525, %v2832
      %v2910 = vmul.f32 %v2526, %v2842
      %v2911 = vmul.f32 %v2527, %v2852
      %v2912 = vmul.f32 %v2528, %v2862
      %v2913 = vmul.f32 %v2529, %v2872
      %v2914 = vmul.f32 %v2530, %v2882
      %v2915 = vperm.slane %v587, 4
      %v2916 = vmul.f32 %v2883, %v2915
      %v2917 = vmul.f32 %v2884, %v2915
      %v2918 = vmul.f32 %v2885, %v2915
      %v2919 = vmul.f32 %v2886, %v2915
      %v2920 = vmul.f32 %v2887, %v2915
      %v2921 = vmul.f32 %v2888, %v2915
      %v2922 = vmul.f32 %v2889, %v2915
      %v2923 = vmul.f32 %v2890, %v2915
      %v2924 = vmul.f32 %v2891, %v2915
      %v2925 = vmul.f32 %v2892, %v2915
      %v2926 = vmul.f32 %v2893, %v2915
      %v2927 = vmul.f32 %v2894, %v2915
      %v2928 = vmul.f32 %v2895, %v2915
      %v2929 = vmul.f32 %v2896, %v2915
      %v2930 = vmul.f32 %v2897, %v2915
      %v2931 = vmul.f32 %v2898, %v2915
      %v2932 = vmul.f32 %v2899, %v2915
      %v2933 = vmul.f32 %v2900, %v2915
      %v2934 = vmul.f32 %v2901, %v2915
      %v2935 = vmul.f32 %v2902, %v2915
      %v2936 = vmul.f32 %v2903, %v2915
      %v2937 = vmul.f32 %v2904, %v2915
      %v2938 = vmul.f32 %v2905, %v2915
      %v2939 = vmul.f32 %v2906, %v2915
      %v2940 = vmul.f32 %v2907, %v2915
      %v2941 = vmul.f32 %v2908, %v2915
      %v2942 = vmul.f32 %v2909, %v2915
      %v2943 = vmul.f32 %v2910, %v2915
      %v2944 = vmul.f32 %v2911, %v2915
      %v2945 = vmul.f32 %v2912, %v2915
      %v2946 = vmul.f32 %v2913, %v2915
      %v2947 = vmul.f32 %v2914, %v2915
      %v2948 = vperm.slane %v587, 5
      %v2949 = vadd.f32 %v2916, %v2948
      %v2950 = vadd.f32 %v2917, %v2948
      %v2951 = vadd.f32 %v2918, %v2948
      %v2952 = vadd.f32 %v2919, %v2948
      %v2953 = vadd.f32 %v2920, %v2948
      %v2954 = vadd.f32 %v2921, %v2948
      %v2955 = vadd.f32 %v2922, %v2948
      %v2956 = vadd.f32 %v2923, %v2948
      %v2957 = vadd.f32 %v2924, %v2948
      %v2958 = vadd.f32 %v2925, %v2948
      %v2959 = vadd.f32 %v2926, %v2948
      %v2960 = vadd.f32 %v2927, %v2948
      %v2961 = vadd.f32 %v2928, %v2948
      %v2962 = vadd.f32 %v2929, %v2948
      %v2963 = vadd.f32 %v2930, %v2948
      %v2964 = vadd.f32 %v2931, %v2948
      %v2965 = vadd.f32 %v2932, %v2948
      %v2966 = vadd.f32 %v2933, %v2948
      %v2967 = vadd.f32 %v2934, %v2948
      %v2968 = vadd.f32 %v2935, %v2948
      %v2969 = vadd.f32 %v2936, %v2948
      %v2970 = vadd.f32 %v2937, %v2948
      %v2971 = vadd.f32 %v2938, %v2948
      %v2972 = vadd.f32 %v2939, %v2948
      %v2973 = vadd.f32 %v2940, %v2948
      %v2974 = vadd.f32 %v2941, %v2948
      %v2975 = vadd.f32 %v2942, %v2948
      %v2976 = vadd.f32 %v2943, %v2948
      %v2977 = vadd.f32 %v2944, %v2948
      %v2978 = vadd.f32 %v2945, %v2948
      %v2979 = vadd.f32 %v2946, %v2948
      %v2980 = vadd.f32 %v2947, %v2948
      %v2981 = vmax.f32 %v2949, 0.0
      %v2982 = vmax.f32 %v2950, 0.0
      %v2983 = vmax.f32 %v2951, 0.0
      %v2984 = vmax.f32 %v2952, 0.0
      %v2985 = vmax.f32 %v2953, 0.0
      %v2986 = vmax.f32 %v2954, 0.0
      %v2987 = vmax.f32 %v2955, 0.0
      %v2988 = vmax.f32 %v2956, 0.0
      %v2989 = vmax.f32 %v2957, 0.0
      %v2990 = vmax.f32 %v2958, 0.0
      %v2991 = vmax.f32 %v2959, 0.0
      %v2992 = vmax.f32 %v2960, 0.0
      %v2993 = vmax.f32 %v2961, 0.0
      %v2994 = vmax.f32 %v2962, 0.0
      %v2995 = vmax.f32 %v2963, 0.0
      %v2996 = vmax.f32 %v2964, 0.0
      %v2997 = vmax.f32 %v2965, 0.0
      %v2998 = vmax.f32 %v2966, 0.0
      %v2999 = vmax.f32 %v2967, 0.0
      %v3000 = vmax.f32 %v2968, 0.0
      %v3001 = vmax.f32 %v2969, 0.0
      %v3002 = vmax.f32 %v2970, 0.0
      %v3003 = vmax.f32 %v2971, 0.0
      %v3004 = vmax.f32 %v2972, 0.0
      %v3005 = vmax.f32 %v2973, 0.0
      %v3006 = vmax.f32 %v2974, 0.0
      %v3007 = vmax.f32 %v2975, 0.0
      %v3008 = vmax.f32 %v2976, 0.0
      %v3009 = vmax.f32 %v2977, 0.0
      %v3010 = vmax.f32 %v2978, 0.0
      %v3011 = vmax.f32 %v2979, 0.0
      %v3012 = vmax.f32 %v2980, 0.0
      %v3013 = vpack.c.bf16 %v2982, %v2981
      %v3014 = vpack.c.bf16 %v2984, %v2983
      %v3015 = vpack.c.bf16 %v2986, %v2985
      %v3016 = vpack.c.bf16 %v2988, %v2987
      %v3017 = vpack.c.bf16 %v2990, %v2989
      %v3018 = vpack.c.bf16 %v2992, %v2991
      %v3019 = vpack.c.bf16 %v2994, %v2993
      %v3020 = vpack.c.bf16 %v2996, %v2995
      %v3021 = vpack.c.bf16 %v2998, %v2997
      %v3022 = vpack.c.bf16 %v3000, %v2999
      %v3023 = vpack.c.bf16 %v3002, %v3001
      %v3024 = vpack.c.bf16 %v3004, %v3003
      %v3025 = vpack.c.bf16 %v3006, %v3005
      %v3026 = vpack.c.bf16 %v3008, %v3007
      %v3027 = vpack.c.bf16 %v3010, %v3009
      %v3028 = vpack.c.bf16 %v3012, %v3011
      %v3029 = vld [vmem:[%s5] sm:$0xf]
      %v3030 = vld [vmem:[%s5 + $0x4] sm:$0xf]
      %v3031 = vld [vmem:[%s5 + $0x8] sm:$0xf]
      %v3032 = vld [vmem:[%s5 + $0xc] sm:$0xf]
      %v3033 = vld [vmem:[%s5 + $0x10] sm:$0xf]
      %v3034 = vld [vmem:[%s5 + $0x14] sm:$0xf]
      %v3035 = vld [vmem:[%s5 + $0x18] sm:$0xf]
      %v3036 = vld [vmem:[%s5 + $0x1c] sm:$0xf]
      %v3045 = vunpack.c.l.b16 %v3029
      %v3046 = vunpack.c.l.b16 %v3030
      %v3047 = vunpack.c.l.b16 %v3031
      %v3048 = vunpack.c.l.b16 %v3032
      %v3049 = vunpack.c.l.b16 %v3033
      %v3050 = vunpack.c.l.b16 %v3034
      %v3051 = vunpack.c.l.b16 %v3035
      %v3052 = vunpack.c.l.b16 %v3036
      %v3053 = vpack.c.b16 %v3046, %v3045
      %v3054 = vpack.c.b16 %v3048, %v3047
      %v3055 = vpack.c.b16 %v3050, %v3049
      %v3056 = vpack.c.b16 %v3052, %v3051
      %v3062 = vsel %vm620, %v3013, 0
      %v3065 = vsel %vm620, %v3014, 0
      %v3068 = vsel %vm620, %v3015, 0
      %v3071 = vsel %vm620, %v3016, 0
      %v3074 = vsel %vm620, %v3017, 0
      %v3077 = vsel %vm620, %v3018, 0
      %v3080 = vsel %vm620, %v3019, 0
      %v3083 = vsel %vm620, %v3020, 0
      %v3086 = vsel %vm620, %v3021, 0
      %v3089 = vsel %vm620, %v3022, 0
      %v3092 = vsel %vm620, %v3023, 0
      %v3095 = vsel %vm620, %v3024, 0
      %v3098 = vsel %vm620, %v3025, 0
      %v3101 = vsel %vm620, %v3026, 0
      %v3104 = vsel %vm620, %v3027, 0
      %v3107 = vsel %vm620, %v3028, 0
      %3109 = vmatpush.bf16.msra.mxu0 0
      %3110 = vmatpush.bf16.msra.mxu0 0
      %3111 = vmatpush.bf16.msra.mxu0 0
      %3112 = vmatpush.bf16.msra.mxu0 0
      %3113 = vmatpush.bf16.msra.mxu0 %v3056
      %3114 = vmatpush.bf16.msra.mxu0 %v3055
      %3115 = vmatpush.bf16.msra.mxu0 %v3054
      %3116 = vmatpush.bf16.msra.mxu0 %v3053
      %3117 = vmatmul.bf16.gmra.mxu0 %v3062
      %v3118 = vpop.f32.mrf.mxu0
      %v3119 = vadd.f32 0.0, %v3118
      %v3120 = vpop.f32.mrf.mxu0
      %v3121 = vadd.f32 0.0, %v3120
      %3122 = vmatmul.bf16.gmra.mxu0 %v3065
      %v3123 = vpop.f32.mrf.mxu0
      %v3124 = vadd.f32 0.0, %v3123
      %v3125 = vpop.f32.mrf.mxu0
      %v3126 = vadd.f32 0.0, %v3125
      %3127 = vmatmul.bf16.gmra.mxu0 %v3068
      %v3128 = vpop.f32.mrf.mxu0
      %v3129 = vadd.f32 0.0, %v3128
      %v3130 = vpop.f32.mrf.mxu0
      %v3131 = vadd.f32 0.0, %v3130
      %3132 = vmatmul.bf16.gmra.mxu0 %v3071
      %v3133 = vpop.f32.mrf.mxu0
      %v3134 = vadd.f32 0.0, %v3133
      %v3135 = vpop.f32.mrf.mxu0
      %v3136 = vadd.f32 0.0, %v3135
      %3137 = vmatmul.bf16.gmra.mxu0 %v3074
      %v3138 = vpop.f32.mrf.mxu0
      %v3139 = vadd.f32 0.0, %v3138
      %v3140 = vpop.f32.mrf.mxu0
      %v3141 = vadd.f32 0.0, %v3140
      %3142 = vmatmul.bf16.gmra.mxu0 %v3077
      %v3143 = vpop.f32.mrf.mxu0
      %v3144 = vadd.f32 0.0, %v3143
      %v3145 = vpop.f32.mrf.mxu0
      %v3146 = vadd.f32 0.0, %v3145
      %3147 = vmatmul.bf16.gmra.mxu0 %v3080
      %v3148 = vpop.f32.mrf.mxu0
      %v3149 = vadd.f32 0.0, %v3148
      %v3150 = vpop.f32.mrf.mxu0
      %v3151 = vadd.f32 0.0, %v3150
      %3152 = vmatmul.bf16.gmra.mxu0 %v3083
      %v3153 = vpop.f32.mrf.mxu0
      %v3154 = vadd.f32 0.0, %v3153
      %v3155 = vpop.f32.mrf.mxu0
      %v3156 = vadd.f32 0.0, %v3155
      %3157 = vmatmul.bf16.gmra.mxu0 %v3086
      %v3158 = vpop.f32.mrf.mxu0
      %v3159 = vadd.f32 0.0, %v3158
      %v3160 = vpop.f32.mrf.mxu0
      %v3161 = vadd.f32 0.0, %v3160
      %3162 = vmatmul.bf16.gmra.mxu0 %v3089
      %v3163 = vpop.f32.mrf.mxu0
      %v3164 = vadd.f32 0.0, %v3163
      %v3165 = vpop.f32.mrf.mxu0
      %v3166 = vadd.f32 0.0, %v3165
      %3167 = vmatmul.bf16.gmra.mxu0 %v3092
      %v3168 = vpop.f32.mrf.mxu0
      %v3169 = vadd.f32 0.0, %v3168
      %v3170 = vpop.f32.mrf.mxu0
      %v3171 = vadd.f32 0.0, %v3170
      %3172 = vmatmul.bf16.gmra.mxu0 %v3095
      %v3173 = vpop.f32.mrf.mxu0
      %v3174 = vadd.f32 0.0, %v3173
      %v3175 = vpop.f32.mrf.mxu0
      %v3176 = vadd.f32 0.0, %v3175
      %3177 = vmatmul.bf16.gmra.mxu0 %v3098
      %v3178 = vpop.f32.mrf.mxu0
      %v3179 = vadd.f32 0.0, %v3178
      %v3180 = vpop.f32.mrf.mxu0
      %v3181 = vadd.f32 0.0, %v3180
      %3182 = vmatmul.bf16.gmra.mxu0 %v3101
      %v3183 = vpop.f32.mrf.mxu0
      %v3184 = vadd.f32 0.0, %v3183
      %v3185 = vpop.f32.mrf.mxu0
      %v3186 = vadd.f32 0.0, %v3185
      %3187 = vmatmul.bf16.gmra.mxu0 %v3104
      %v3188 = vpop.f32.mrf.mxu0
      %v3189 = vadd.f32 0.0, %v3188
      %v3190 = vpop.f32.mrf.mxu0
      %v3191 = vadd.f32 0.0, %v3190
      %3192 = vmatmul.bf16.gmra.mxu0 %v3107
      %v3193 = vpop.f32.mrf.mxu0
      %v3194 = vadd.f32 0.0, %v3193
      %v3195 = vpop.f32.mrf.mxu0
      %v3196 = vadd.f32 0.0, %v3195
      %3197 = vdwg.mxu0
      %v3198 = vadd.f32 %v539, %v3119
      %v3199 = vadd.f32 %v540, %v3121
      %v3200 = vadd.f32 %v541, %v3124
      %v3201 = vadd.f32 %v542, %v3126
      %v3202 = vadd.f32 %v543, %v3129
      %v3203 = vadd.f32 %v544, %v3131
      %v3204 = vadd.f32 %v545, %v3134
      %v3205 = vadd.f32 %v546, %v3136
      %v3206 = vadd.f32 %v547, %v3139
      %v3207 = vadd.f32 %v548, %v3141
      %v3208 = vadd.f32 %v549, %v3144
      %v3209 = vadd.f32 %v550, %v3146
      %v3210 = vadd.f32 %v551, %v3149
      %v3211 = vadd.f32 %v552, %v3151
      %v3212 = vadd.f32 %v553, %v3154
      %v3213 = vadd.f32 %v554, %v3156
      %v3214 = vadd.f32 %v555, %v3159
      %v3215 = vadd.f32 %v556, %v3161
      %v3216 = vadd.f32 %v557, %v3164
      %v3217 = vadd.f32 %v558, %v3166
      %v3218 = vadd.f32 %v559, %v3169
      %v3219 = vadd.f32 %v560, %v3171
      %v3220 = vadd.f32 %v561, %v3174
      %v3221 = vadd.f32 %v562, %v3176
      %v3222 = vadd.f32 %v563, %v3179
      %v3223 = vadd.f32 %v564, %v3181
      %v3224 = vadd.f32 %v565, %v3184
      %v3225 = vadd.f32 %v566, %v3186
      %v3226 = vadd.f32 %v567, %v3189
      %v3227 = vadd.f32 %v568, %v3191
      %v3228 = vadd.f32 %v569, %v3194
      %v3229 = vadd.f32 %v570, %v3196
      %v3230 = vperm.slane %v587, 6
      %v3231 = vadd.f32 %v3198, %v3230
      %v3232 = vadd.f32 %v3199, %v3230
      %v3233 = vadd.f32 %v3200, %v3230
      %v3234 = vadd.f32 %v3201, %v3230
      %v3235 = vadd.f32 %v3202, %v3230
      %v3236 = vadd.f32 %v3203, %v3230
      %v3237 = vadd.f32 %v3204, %v3230
      %v3238 = vadd.f32 %v3205, %v3230
      %v3239 = vadd.f32 %v3206, %v3230
      %v3240 = vadd.f32 %v3207, %v3230
      %v3241 = vadd.f32 %v3208, %v3230
      %v3242 = vadd.f32 %v3209, %v3230
      %v3243 = vadd.f32 %v3210, %v3230
      %v3244 = vadd.f32 %v3211, %v3230
      %v3245 = vadd.f32 %v3212, %v3230
      %v3246 = vadd.f32 %v3213, %v3230
      %v3247 = vadd.f32 %v3214, %v3230
      %v3248 = vadd.f32 %v3215, %v3230
      %v3249 = vadd.f32 %v3216, %v3230
      %v3250 = vadd.f32 %v3217, %v3230
      %v3251 = vadd.f32 %v3218, %v3230
      %v3252 = vadd.f32 %v3219, %v3230
      %v3253 = vadd.f32 %v3220, %v3230
      %v3254 = vadd.f32 %v3221, %v3230
      %v3255 = vadd.f32 %v3222, %v3230
      %v3256 = vadd.f32 %v3223, %v3230
      %v3257 = vadd.f32 %v3224, %v3230
      %v3258 = vadd.f32 %v3225, %v3230
      %v3259 = vadd.f32 %v3226, %v3230
      %v3260 = vadd.f32 %v3227, %v3230
      %v3261 = vadd.f32 %v3228, %v3230
      %v3262 = vadd.f32 %v3229, %v3230
      %3263 = vst.msk [vmem:[%s337] sm:$0xff] %vm538, %v3231
      %3264 = vst.msk [vmem:[%s337 + $0x8] sm:$0xff] %vm538, %v3232
      %3265 = vst.msk [vmem:[%s337 + $0x10] sm:$0xff] %vm538, %v3233
      %3266 = vst.msk [vmem:[%s337 + $0x18] sm:$0xff] %vm538, %v3234
      %3267 = vst.msk [vmem:[%s337 + $0x20] sm:$0xff] %vm538, %v3235
      %3268 = vst.msk [vmem:[%s337 + $0x28] sm:$0xff] %vm538, %v3236
      %3269 = vst.msk [vmem:[%s337 + $0x30] sm:$0xff] %vm538, %v3237
      %3270 = vst.msk [vmem:[%s337 + $0x38] sm:$0xff] %vm538, %v3238
      %3271 = vst.msk [vmem:[%s337 + $0x40] sm:$0xff] %vm538, %v3239
      %3272 = vst.msk [vmem:[%s337 + $0x48] sm:$0xff] %vm538, %v3240
      %3273 = vst.msk [vmem:[%s337 + $0x50] sm:$0xff] %vm538, %v3241
      %3274 = vst.msk [vmem:[%s337 + $0x58] sm:$0xff] %vm538, %v3242
      %3275 = vst.msk [vmem:[%s337 + $0x60] sm:$0xff] %vm538, %v3243
      %3276 = vst.msk [vmem:[%s337 + $0x68] sm:$0xff] %vm538, %v3244
      %3277 = vst.msk [vmem:[%s337 + $0x70] sm:$0xff] %vm538, %v3245
      %3278 = vst.msk [vmem:[%s337 + $0x78] sm:$0xff] %vm538, %v3246
      %3279 = vst.msk [vmem:[%s337 + $0x80] sm:$0xff] %vm538, %v3247
      %3280 = vst.msk [vmem:[%s337 + $0x88] sm:$0xff] %vm538, %v3248
      %3281 = vst.msk [vmem:[%s337 + $0x90] sm:$0xff] %vm538, %v3249
      %3282 = vst.msk [vmem:[%s337 + $0x98] sm:$0xff] %vm538, %v3250
      %3283 = vst.msk [vmem:[%s337 + $0xa0] sm:$0xff] %vm538, %v3251
      %3284 = vst.msk [vmem:[%s337 + $0xa8] sm:$0xff] %vm538, %v3252
      %3285 = vst.msk [vmem:[%s337 + $0xb0] sm:$0xff] %vm538, %v3253
      %3286 = vst.msk [vmem:[%s337 + $0xb8] sm:$0xff] %vm538, %v3254
      %3287 = vst.msk [vmem:[%s337 + $0xc0] sm:$0xff] %vm538, %v3255
      %3288 = vst.msk [vmem:[%s337 + $0xc8] sm:$0xff] %vm538, %v3256
      %3289 = vst.msk [vmem:[%s337 + $0xd0] sm:$0xff] %vm538, %v3257
      %3290 = vst.msk [vmem:[%s337 + $0xd8] sm:$0xff] %vm538, %v3258
      %3291 = vst.msk [vmem:[%s337 + $0xe0] sm:$0xff] %vm538, %v3259
      %3292 = vst.msk [vmem:[%s337 + $0xe8] sm:$0xff] %vm538, %v3260
      %3293 = vst.msk [vmem:[%s337 + $0xf0] sm:$0xff] %vm538, %v3261
      %3294 = vst.msk [vmem:[%s337 + $0xf8] sm:$0xff] %vm538, %v3262
      %3327 = vrot.lane.b32.xlu0 %v3231, 96
      %v3328 = vpop.permute.xlu0 %3327
      %3329 = vrot.lane.b32.xlu0 %v3232, 96
      %v3330 = vpop.permute.xlu0 %3329
      %3331 = vrot.lane.b32.xlu0 %v3233, 96
      %v3332 = vpop.permute.xlu0 %3331
      %3333 = vrot.lane.b32.xlu0 %v3234, 96
      %v3334 = vpop.permute.xlu0 %3333
      %3335 = vrot.lane.b32.xlu0 %v3235, 96
      %v3336 = vpop.permute.xlu0 %3335
      %3337 = vrot.lane.b32.xlu0 %v3236, 96
      %v3338 = vpop.permute.xlu0 %3337
      %3339 = vrot.lane.b32.xlu0 %v3237, 96
      %v3340 = vpop.permute.xlu0 %3339
      %3341 = vrot.lane.b32.xlu0 %v3238, 96
      %v3342 = vpop.permute.xlu0 %3341
      %3343 = vrot.lane.b32.xlu0 %v3239, 96
      %v3344 = vpop.permute.xlu0 %3343
      %3345 = vrot.lane.b32.xlu0 %v3240, 96
      %v3346 = vpop.permute.xlu0 %3345
      %3347 = vrot.lane.b32.xlu0 %v3241, 96
      %v3348 = vpop.permute.xlu0 %3347
      %3349 = vrot.lane.b32.xlu0 %v3242, 96
      %v3350 = vpop.permute.xlu0 %3349
      %3351 = vrot.lane.b32.xlu0 %v3243, 96
      %v3352 = vpop.permute.xlu0 %3351
      %3353 = vrot.lane.b32.xlu0 %v3244, 96
      %v3354 = vpop.permute.xlu0 %3353
      %3355 = vrot.lane.b32.xlu0 %v3245, 96
      %v3356 = vpop.permute.xlu0 %3355
      %3357 = vrot.lane.b32.xlu0 %v3246, 96
      %v3358 = vpop.permute.xlu0 %3357
      %3359 = vrot.lane.b32.xlu0 %v3247, 96
      %v3360 = vpop.permute.xlu0 %3359
      %3361 = vrot.lane.b32.xlu0 %v3248, 96
      %v3362 = vpop.permute.xlu0 %3361
      %3363 = vrot.lane.b32.xlu0 %v3249, 96
      %v3364 = vpop.permute.xlu0 %3363
      %3365 = vrot.lane.b32.xlu0 %v3250, 96
      %v3366 = vpop.permute.xlu0 %3365
      %3367 = vrot.lane.b32.xlu0 %v3251, 96
      %v3368 = vpop.permute.xlu0 %3367
      %3369 = vrot.lane.b32.xlu0 %v3252, 96
      %v3370 = vpop.permute.xlu0 %3369
      %3371 = vrot.lane.b32.xlu0 %v3253, 96
      %v3372 = vpop.permute.xlu0 %3371
      %3373 = vrot.lane.b32.xlu0 %v3254, 96
      %v3374 = vpop.permute.xlu0 %3373
      %3375 = vrot.lane.b32.xlu0 %v3255, 96
      %v3376 = vpop.permute.xlu0 %3375
      %3377 = vrot.lane.b32.xlu0 %v3256, 96
      %v3378 = vpop.permute.xlu0 %3377
      %3379 = vrot.lane.b32.xlu0 %v3257, 96
      %v3380 = vpop.permute.xlu0 %3379
      %3381 = vrot.lane.b32.xlu0 %v3258, 96
      %v3382 = vpop.permute.xlu0 %3381
      %3383 = vrot.lane.b32.xlu0 %v3259, 96
      %v3384 = vpop.permute.xlu0 %3383
      %3385 = vrot.lane.b32.xlu0 %v3260, 96
      %v3386 = vpop.permute.xlu0 %3385
      %3387 = vrot.lane.b32.xlu0 %v3261, 96
      %v3388 = vpop.permute.xlu0 %3387
      %3389 = vrot.lane.b32.xlu0 %v3262, 96
      %v3390 = vpop.permute.xlu0 %3389
      %3423 = vst.msk [vmem:[%s343] sm:$0xff] %vm538, %v3328
      %3424 = vst.msk [vmem:[%s343 + $0x8] sm:$0xff] %vm538, %v3330
      %3425 = vst.msk [vmem:[%s343 + $0x10] sm:$0xff] %vm538, %v3332
      %3426 = vst.msk [vmem:[%s343 + $0x18] sm:$0xff] %vm538, %v3334
      %3427 = vst.msk [vmem:[%s343 + $0x20] sm:$0xff] %vm538, %v3336
      %3428 = vst.msk [vmem:[%s343 + $0x28] sm:$0xff] %vm538, %v3338
      %3429 = vst.msk [vmem:[%s343 + $0x30] sm:$0xff] %vm538, %v3340
      %3430 = vst.msk [vmem:[%s343 + $0x38] sm:$0xff] %vm538, %v3342
      %3431 = vst.msk [vmem:[%s343 + $0x40] sm:$0xff] %vm538, %v3344
      %3432 = vst.msk [vmem:[%s343 + $0x48] sm:$0xff] %vm538, %v3346
      %3433 = vst.msk [vmem:[%s343 + $0x50] sm:$0xff] %vm538, %v3348
      %3434 = vst.msk [vmem:[%s343 + $0x58] sm:$0xff] %vm538, %v3350
      %3435 = vst.msk [vmem:[%s343 + $0x60] sm:$0xff] %vm538, %v3352
      %3436 = vst.msk [vmem:[%s343 + $0x68] sm:$0xff] %vm538, %v3354
      %3437 = vst.msk [vmem:[%s343 + $0x70] sm:$0xff] %vm538, %v3356
      %3438 = vst.msk [vmem:[%s343 + $0x78] sm:$0xff] %vm538, %v3358
      %3439 = vst.msk [vmem:[%s343 + $0x80] sm:$0xff] %vm538, %v3360
      %3440 = vst.msk [vmem:[%s343 + $0x88] sm:$0xff] %vm538, %v3362
      %3441 = vst.msk [vmem:[%s343 + $0x90] sm:$0xff] %vm538, %v3364
      %3442 = vst.msk [vmem:[%s343 + $0x98] sm:$0xff] %vm538, %v3366
      %3443 = vst.msk [vmem:[%s343 + $0xa0] sm:$0xff] %vm538, %v3368
      %3444 = vst.msk [vmem:[%s343 + $0xa8] sm:$0xff] %vm538, %v3370
      %3445 = vst.msk [vmem:[%s343 + $0xb0] sm:$0xff] %vm538, %v3372
      %3446 = vst.msk [vmem:[%s343 + $0xb8] sm:$0xff] %vm538, %v3374
      %3447 = vst.msk [vmem:[%s343 + $0xc0] sm:$0xff] %vm538, %v3376
      %3448 = vst.msk [vmem:[%s343 + $0xc8] sm:$0xff] %vm538, %v3378
      %3449 = vst.msk [vmem:[%s343 + $0xd0] sm:$0xff] %vm538, %v3380
      %3450 = vst.msk [vmem:[%s343 + $0xd8] sm:$0xff] %vm538, %v3382
      %3451 = vst.msk [vmem:[%s343 + $0xe0] sm:$0xff] %vm538, %v3384
      %3452 = vst.msk [vmem:[%s343 + $0xe8] sm:$0xff] %vm538, %v3386
      %3453 = vst.msk [vmem:[%s343 + $0xf0] sm:$0xff] %vm538, %v3388
      %3454 = vst.msk [vmem:[%s343 + $0xf8] sm:$0xff] %vm538, %v3390
      %s3455 = smul.u32 32, %s20
      %p3456 = scmp.lt.s32.totalorder %s3455, 63
      %s3457 = scalar_select %p3456, %s3455, 63
      %s3458 = smul.addr %s3457, 8
      %s3459 = scalar_lea.vmem %s7, %s3458
      %s3460 = smul.u32 32, %s20
      %p3461 = scmp.lt.s32.totalorder %s3460, 63
      %s3462 = scalar_select %p3461, %s3460, 63
      %s3463 = smul.addr %s3462, 8
      %s3464 = scalar_lea.vmem %s8, %s3463
      // Predicated region
      $region49: #{mh_cross_att_layer.1} parent=47 // pred_check
        %p3465 = pneg %p195
      $region50: #{mh_cross_att_layer.1} parent=47 // pred_check_branch
        %3467 = sbr.rel (%p3465) target = $region52
      $region51: #{mh_cross_att_layer.1} parent=47 // pred_region
        %s3468 = smul.u32 32, %s20
      $region52: #{mh_cross_att_layer.1} parent=47 // pred_fallthru
        _
      // Predicated region
      $region53: #{mh_cross_att_layer.1} parent=47 // pred_check
        %p3469 = pneg %p221
      $region54: #{mh_cross_att_layer.1} parent=47 // pred_check_branch
        %3471 = sbr.rel (%p3469) target = $region56
      $region55: #{mh_cross_att_layer.1} parent=47 // pred_region
        %s3472 = smul.u32 32, %s20
      $region56: #{mh_cross_att_layer.1} parent=47 // pred_fallthru
        _
    $region48: #{mh_cross_att_layer.1} parent=5 // pred_fallthru
      _
    %p3473 = scmp.le.s32.totalorder 2, %s15
    // Predicated region
    $region57: #{mh_cross_att_layer.1} parent=5 // pred_check
      %p3474 = pneg %p3473
    $region58: #{mh_cross_att_layer.1} parent=5 // pred_check_branch
      %3476 = sbr.rel (%p3474) target = $region60
    $region59: #{mh_cross_att_layer.1} parent=5 // pred_region
      %s3477 = ssub.s32 %s15, 2
      // Predicated region
      $region61: #{mh_cross_att_layer.1} parent=59 // pred_check
        %p3478 = pneg %p201
      $region62: #{mh_cross_att_layer.1} parent=59 // pred_check_branch
        %3480 = sbr.rel (%p3478) target = $region64
      $region63: #{mh_cross_att_layer.1} parent=59 // pred_region
        %s3481 = smul.u32 32, %s21
        %p3482 = scmp.lt.s32.totalorder %s3481, 63
        %s3483 = scalar_select %p3482, %s3481, 63
        %s3484 = smul.addr %s3483, 8
        %s3485 = scalar_lea.vmem %s7, %s3484
      $region64: #{mh_cross_att_layer.1} parent=59 // pred_fallthru
        _
      // Predicated region
      $region65: #{mh_cross_att_layer.1} parent=59 // pred_check
        %p3486 = pneg %p227
      $region66: #{mh_cross_att_layer.1} parent=59 // pred_check_branch
        %3488 = sbr.rel (%p3486) target = $region68
      $region67: #{mh_cross_att_layer.1} parent=59 // pred_region
        %s3489 = smul.u32 32, %s21
        %p3490 = scmp.lt.s32.totalorder %s3489, 63
        %s3491 = scalar_select %p3490, %s3489, 63
        %s3492 = smul.addr %s3491, 8
        %s3493 = scalar_lea.vmem %s8, %s3492
      $region68: #{mh_cross_att_layer.1} parent=59 // pred_fallthru
        _
    $region60: #{mh_cross_att_layer.1} parent=5 // pred_fallthru
      _
  $region6: #{mh_cross_att_layer.1} parent=0 // loop_footer
    %s19 = sadd.s32 1, %s15
  $region7: #{mh_cross_att_layer.1} parent=0 // loop_footer_branch
    %14 = sbr.rel target = $region3
  $region8: #{mh_cross_att_layer.1} parent=0 // loop_exit
    _

</llo_original>
